<compile_context>
chip_gen: v7x
topology: tpu7x:2x2x1
jax: 0.10.0
libtpu: 0.0.40
codegen_flags: <defaults>
</compile_context>

<pallas_src>
import jax
import jax.numpy as jnp
from jax import lax
from jax.experimental import pallas as pl
from jax.experimental.pallas import tpu as pltpu


def _round_up(n, m):
    return ((n + m - 1) // m) * m


# --------------------------------------------------------------------------- #
# Kernel
# --------------------------------------------------------------------------- #
def _make_lstm_kernel(T_real, Tt, Hp, compute_dtype):
    f32 = jnp.float32

    def kernel(x_ref, wih1_ref, whh1_ref, wih2_ref, whh2_ref,
               b1_ref, b2_ref, wfc_ref, bfc_ref,
               out_ref,
               pre_ref, h1_ref, c1_ref, h2_ref, c2_ref):
        k = pl.program_id(0)
        Bp = x_ref.shape[1]
        Dp = x_ref.shape[2]

        @pl.when(k == 0)
        def _init():
            h1_ref[...] = jnp.zeros_like(h1_ref)
            c1_ref[...] = jnp.zeros_like(c1_ref)
            h2_ref[...] = jnp.zeros_like(h2_ref)
            c2_ref[...] = jnp.zeros_like(c2_ref)

        # Loop-invariant values, hoisted (JAX does not CSE broadcast_in_dim
        # inside loops).
        w_hh1 = whh1_ref[...]                     # (Hp, 4Hp)  compute_dtype
        w_ih2 = wih2_ref[...]                     # (Hp, 4Hp)
        w_hh2 = whh2_ref[...]                     # (Hp, 4Hp)
        b2 = jnp.broadcast_to(b2_ref[...], (Bp, 4 * Hp))       # f32

        # ------------------------------------------------------------------ #
        # Hoisted layer-1 input projection for the whole chunk: one batched
        # MXU matmul with M = Tt*Bp (instead of Tt tiny M = Bp matmuls on the
        # serial recurrence path).  Layer-1 bias folded in here.
        # ------------------------------------------------------------------ #
        x_chunk = x_ref[...].reshape(Tt * Bp, Dp)
        pre = jnp.dot(x_chunk, wih1_ref[...], preferred_element_type=f32)
        pre = pre + jnp.broadcast_to(b1_ref[...], (Tt * Bp, 4 * Hp))
        pre_ref[...] = pre.reshape(Tt, Bp, 4 * Hp)

        t0 = k * Tt

        def gates_to_hc(gates, c_prev):
            # PyTorch gate order i, f, g, o; each slice is a full 128-lane block.
            i = jax.nn.sigmoid(gates[:, 0 * Hp:1 * Hp])
            f = jax.nn.sigmoid(gates[:, 1 * Hp:2 * Hp])
            g = jnp.tanh(gates[:, 2 * Hp:3 * Hp])
            o = jax.nn.sigmoid(gates[:, 3 * Hp:4 * Hp])
            c_new = f * c_prev + i * g
            h_new = o * jnp.tanh(c_new)
            return h_new, c_new

        def step(t, carry):
            # Carry at global step g = t0 + t:
            #   h1 = h1_{g-1}, c1 = c1_{g-1}, h2 = h2_{g-2}, c2 = c2_{g-2}
            h1, c1, h2, c2 = carry
            g = t0 + t
            h1c = h1.astype(compute_dtype)

            # Software-pipelined pair: layer-2 at step g-1 and layer-1 at
            # step g both depend only on h1_{g-1}.  Issue all MXU matmuls
            # before any gate nonlinearity so their fills overlap.
            gates2 = (jnp.dot(h1c, w_ih2, preferred_element_type=f32)
                      + jnp.dot(h2.astype(compute_dtype), w_hh2,
                                preferred_element_type=f32)
                      + b2)
            gates1 = pre_ref[t] + jnp.dot(h1c, w_hh1,
                                          preferred_element_type=f32)
            h2n, c2n = gates_to_hc(gates2, c2)
            h1n, c1n = gates_to_hc(gates1, c1)

            # Freeze masks: out-of-range / padded steps are no-ops; the final
            # layer-2 step (g-1 == T_real-1) is always left to the epilogue.
            v1 = g < T_real
            v2 = jnp.logical_and(g >= 1, g < T_real)
            h1 = jnp.where(v1, h1n, h1)
            c1 = jnp.where(v1, c1n, c1)
            h2 = jnp.where(v2, h2n, h2)
            c2 = jnp.where(v2, c2n, c2)
            return (h1, c1, h2, c2)

        carry0 = (h1_ref[...], c1_ref[...], h2_ref[...], c2_ref[...])
        # Bounded unroll keeps LLO scheduling visibility without exploding
        # program size / vreg live ranges for long chunks.
        h1, c1, h2, c2 = lax.fori_loop(0, Tt, step, carry0,
                                       unroll=min(Tt, 8))

        h1_ref[...] = h1
        c1_ref[...] = c1
        h2_ref[...] = h2
        c2_ref[...] = c2

        @pl.when(k == pl.num_programs(0) - 1)
        def _finalize():
            # Trailing layer-2 step at the true last timestep, then the FC.
            h1c = h1.astype(compute_dtype)
            gates2 = (jnp.dot(h1c, w_ih2, preferred_element_type=f32)
                      + jnp.dot(h2.astype(compute_dtype), w_hh2,
                                preferred_element_type=f32)
                      + b2)
            h2f, _ = gates_to_hc(gates2, c2)
            out = (jnp.dot(h2f.astype(compute_dtype), wfc_ref[...],
                           preferred_element_type=f32)
                   + bfc_ref[...])
            out_ref[...] = out.astype(out_ref.dtype)   # lane-dense (Bp, Op) store

    return kernel


# --------------------------------------------------------------------------- #
# Parameter packing (pad + cast) for the kernel
# --------------------------------------------------------------------------- #
def _pad_gate_cols(w, H, Hp):
    """(rows, 4H) -> (rows, 4Hp): zero-pad each of the i,f,g,o gate blocks."""
    rows = w.shape[0]
    w4 = w.reshape(rows, 4, H)
    out = jnp.zeros((rows, 4, Hp), w.dtype).at[:, :, :H].set(w4)
    return out.reshape(rows, 4 * Hp)


def _pad_rows(w, rows_p):
    return jnp.zeros((rows_p, w.shape[1]), w.dtype).at[:w.shape[0]].set(w)


def pack_params(params, input_size, hidden_size, output_size, compute_dtype):
    D, H, O = input_size, hidden_size, output_size
    Dp = _round_up(D, 128)
    Hp = _round_up(H, 128)
    Op = _round_up(O, 128)

    w_ih1 = _pad_rows(_pad_gate_cols(params["wih1"], H, Hp), Dp)   # (Dp, 4Hp)
    w_hh1 = _pad_rows(_pad_gate_cols(params["whh1"], H, Hp), Hp)   # (Hp, 4Hp)
    w_ih2 = _pad_rows(_pad_gate_cols(params["wih2"], H, Hp), Hp)   # (Hp, 4Hp)
    w_hh2 = _pad_rows(_pad_gate_cols(params["whh2"], H, Hp), Hp)   # (Hp, 4Hp)
    b1 = _pad_gate_cols(params["b1"], H, Hp)                       # (1, 4Hp) f32
    b2 = _pad_gate_cols(params["b2"], H, Hp)
    wfc = jnp.zeros((Hp, Op), jnp.float32).at[:H, :O].set(params["wfc"])
    bfc = jnp.zeros((1, Op), jnp.float32).at[:, :O].set(params["bfc"])

    return {
        "w_ih1": w_ih1.astype(compute_dtype),
        "w_hh1": w_hh1.astype(compute_dtype),
        "w_ih2": w_ih2.astype(compute_dtype),
        "w_hh2": w_hh2.astype(compute_dtype),
        "wfc": wfc.astype(compute_dtype),
        "b1": b1, "b2": b2, "bfc": bfc,
        "Dp": Dp, "Hp": Hp, "Op": Op,
    }


# --------------------------------------------------------------------------- #
# Wrapper
# --------------------------------------------------------------------------- #
def lstm_model_forward(x, params, *, compute_dtype=jnp.bfloat16, time_tile=64):
    """x: (B, T, D) float32, batch_first like the PyTorch module. Returns (B, O)."""
    B, T, D = x.shape
    H = params["whh1"].shape[0]
    O = params["wfc"].shape[1]
    assert T >= 1, "sequence length must be >= 1"

    packed = pack_params(params, D, H, O, compute_dtype)
    Dp, Hp, Op = packed["Dp"], packed["Hp"], packed["Op"]
    Bp = _round_up(max(B, 8), 8)

    Tt = min(T, time_tile)
    num_chunks = (T + Tt - 1) // Tt
    Tp = num_chunks * Tt

    # Time-major, zero-padded to sublane/lane alignment, pre-cast to the matmul
    # compute dtype so no per-step VPU cast of x sits in the recurrence.
    x_pad = jnp.zeros((Tp, Bp, Dp), compute_dtype)
    x_pad = x_pad.at[:T, :B, :D].set(
        jnp.transpose(x, (1, 0, 2)).astype(compute_dtype))

    kernel = _make_lstm_kernel(T, Tt, Hp, compute_dtype)

    # VMEM budget derived from the problem size and the chip's capacity.
    itemsize = jnp.dtype(compute_dtype).itemsize
    vmem_bytes = (
        (Dp + 3 * Hp) * 4 * Hp * itemsize          # resident LSTM weights
        + Hp * Op * itemsize + Op * 4              # FC weight + bias
        + 2 * Tt * Bp * Dp * itemsize              # x chunk (double buffered)
        + Tt * Bp * 4 * Hp * 4                     # per-chunk input projection
        + 4 * Bp * Hp * 4 + Bp * Op * 4            # state scratch + output
        + 3 * Bp * 4 * Hp * 4                      # biases / gate temporaries
    )
    try:
        vmem_physical = pltpu.get_tpu_info().vmem_capacity_bytes
    except Exception:
        vmem_physical = 128 << 20
    vmem_cap = (3 * vmem_physical) // 4            # headroom for Mosaic internals
    vmem_limit = min(max(int(1.5 * vmem_bytes) + (4 << 20), 32 << 20), vmem_cap)

    grid_spec = pltpu.PrefetchScalarGridSpec(
        num_scalar_prefetch=0,
        grid=(num_chunks,),
        in_specs=[
            pl.BlockSpec((Tt, Bp, Dp), lambda k: (k, 0, 0)),      # x chunk
            pl.BlockSpec((Dp, 4 * Hp), lambda k: (0, 0)),         # W_ih1
            pl.BlockSpec((Hp, 4 * Hp), lambda k: (0, 0)),         # W_hh1
            pl.BlockSpec((Hp, 4 * Hp), lambda k: (0, 0)),         # W_ih2
            pl.BlockSpec((Hp, 4 * Hp), lambda k: (0, 0)),         # W_hh2
            pl.BlockSpec((1, 4 * Hp), lambda k: (0, 0)),          # b1
            pl.BlockSpec((1, 4 * Hp), lambda k: (0, 0)),          # b2
            pl.BlockSpec((Hp, Op), lambda k: (0, 0)),             # W_fc
            pl.BlockSpec((1, Op), lambda k: (0, 0)),              # b_fc
        ],
        out_specs=pl.BlockSpec((Bp, Op), lambda k: (0, 0)),
        scratch_shapes=[
            pltpu.VMEM((Tt, Bp, 4 * Hp), jnp.float32),            # pre-projection
            pltpu.VMEM((Bp, Hp), jnp.float32),                    # h1
            pltpu.VMEM((Bp, Hp), jnp.float32),                    # c1
            pltpu.VMEM((Bp, Hp), jnp.float32),                    # h2
            pltpu.VMEM((Bp, Hp), jnp.float32),                    # c2
        ],
    )

    out_pad = pl.pallas_call(
        kernel,
        out_shape=jax.ShapeDtypeStruct((Bp, Op), jnp.float32),
        grid_spec=grid_spec,
        compiler_params=pltpu.CompilerParams(
            dimension_semantics=("arbitrary",),
            vmem_limit_bytes=vmem_limit,
        ),
    )(x_pad, packed["w_ih1"], packed["w_hh1"], packed["w_ih2"],
      packed["w_hh2"], packed["b1"], packed["b2"], packed["wfc"],
      packed["bfc"])

    return out_pad[:B, :O]


# --------------------------------------------------------------------------- #
# Parameters & pure-JAX reference (PyTorch semantics) for validation
# --------------------------------------------------------------------------- #
def init_params(key, input_size, hidden_size, output_size):
    """Deterministic synthetic parameters (PyTorch-style uniform init)."""
    H = hidden_size
    bound = 1.0 / jnp.sqrt(jnp.float32(H))
    ks = jax.random.split(key, 10)

    def u(k, shape):
        return jax.random.uniform(k, shape, jnp.float32, -bound, bound)

    # PyTorch stores W_ih:(4H,in), W_hh:(4H,H); we keep transposed for x @ W.
    return {
        "wih1": u(ks[0], (input_size, 4 * H)),
        "whh1": u(ks[1], (H, 4 * H)),
        "b1":   u(ks[2], (1, 4 * H)) + u(ks[3], (1, 4 * H)),   # b_ih + b_hh
        "wih2": u(ks[4], (H, 4 * H)),
        "whh2": u(ks[5], (H, 4 * H)),
        "b2":   u(ks[6], (1, 4 * H)) + u(ks[7], (1, 4 * H)),
        "wfc":  u(ks[8], (H, output_size)),
        "bfc":  u(ks[9], (1, output_size)),
    }


def lstm_model_reference(x, params):
    """Pure-JAX reference of the PyTorch forward."""
    B, T, D = x.shape
    H = params["whh1"].shape[0]

    def cell(carry, x_t, w_ih, w_hh, b):
        h, c = carry
        gates = x_t @ w_ih + h @ w_hh + b
        i = jax.nn.sigmoid(gates[:, 0 * H:1 * H])
        f = jax.nn.sigmoid(gates[:, 1 * H:2 * H])
        g = jnp.tanh(gates[:, 2 * H:3 * H])
        o = jax.nn.sigmoid(gates[:, 3 * H:4 * H])
        c = f * c + i * g
        h = o * jnp.tanh(c)
        return (h, c), h

    def run_layer(seq, w_ih, w_hh, b):
        init = (jnp.zeros((B, H), jnp.float32), jnp.zeros((B, H), jnp.float32))
        _, hs = jax.lax.scan(
            lambda carry, x_t: cell(carry, x_t, w_ih, w_hh, b), init, seq)
        return hs                                        # (T, B, H)

    seq = jnp.transpose(x, (1, 0, 2))
    h1_seq = run_layer(seq, params["wih1"], params["whh1"], params["b1"])
    h2_seq = run_layer(h1_seq, params["wih2"], params["whh2"], params["b2"])
    last = h2_seq[-1]                                    # out[:, -1, :]
    return last @ params["wfc"] + params["bfc"]


if __name__ == "__main__":
    B, T = 2, 8
    input_size, hidden_size, output_size = 16, 32, 8

    key = jax.random.PRNGKey(0)
    k_x, k_p = jax.random.split(key)
    x = jax.random.normal(k_x, (B, T, input_size), jnp.float32)
    params = init_params(k_p, input_size, hidden_size, output_size)

    ref = jax.block_until_ready(lstm_model_reference(x, params))

    # Exact-path check: f32 compute with multiple time chunks (exercises the
    # chunked recurrence, the padding freeze masks and the epilogue step).
    out_f32 = jax.block_until_ready(
        lstm_model_forward(x, params, compute_dtype=jnp.float32, time_tile=3))
    assert out_f32.shape == (B, output_size)
    assert jnp.allclose(out_f32, ref, atol=1e-4, rtol=1e-4), (out_f32, ref)

    # Default fast path: bf16 matmul operands (f32 gates/state/accumulation),
    # single time chunk.  Tolerance relaxed for the bf16 operand rounding.
    out_bf16 = jax.block_until_ready(lstm_model_forward(x, params))
    assert out_bf16.shape == (B, output_size)
    assert jnp.allclose(out_bf16, ref, atol=5e-2, rtol=5e-2), (out_bf16, ref)

    print("KERNEL_OK")
</pallas_src>

<mosaic_0001>
module attributes {stable_mosaic.version = 11 : i64} {
  func.func @kernel(%arg0: i32, %arg1: memref<3x8x128xf32, #tpu.memory_space<vmem>>, %arg2: memref<128x512xf32, #tpu.memory_space<vmem>>, %arg3: memref<128x512xf32, #tpu.memory_space<vmem>>, %arg4: memref<128x512xf32, #tpu.memory_space<vmem>>, %arg5: memref<128x512xf32, #tpu.memory_space<vmem>>, %arg6: memref<1x512xf32, #tpu.memory_space<vmem>>, %arg7: memref<1x512xf32, #tpu.memory_space<vmem>>, %arg8: memref<128x128xf32, #tpu.memory_space<vmem>>, %arg9: memref<1x128xf32, #tpu.memory_space<vmem>>, %arg10: memref<8x128xf32, #tpu.memory_space<vmem>>, %arg11: memref<3x8x512xf32, #tpu.memory_space<vmem>>, %arg12: memref<8x128xf32, #tpu.memory_space<vmem>>, %arg13: memref<8x128xf32, #tpu.memory_space<vmem>>, %arg14: memref<8x128xf32, #tpu.memory_space<vmem>>, %arg15: memref<8x128xf32, #tpu.memory_space<vmem>>) attributes {dimension_semantics = [#tpu.dimension_semantics<arbitrary>], iteration_bounds = array<i64: 3>, scalar_prefetch = 0 : i64, scratch_operands = 5 : i64, tpu.core_type = #tpu.core_type<tc>, window_params = [{transform_indices = @transform_0, window_bounds = array<i64: 3, 8, 128>}, {pipeline_mode = #tpu.pipeline_mode<synchronous>, transform_indices = @transform_1, window_bounds = array<i64: 128, 512>}, {pipeline_mode = #tpu.pipeline_mode<synchronous>, transform_indices = @transform_2, window_bounds = array<i64: 128, 512>}, {pipeline_mode = #tpu.pipeline_mode<synchronous>, transform_indices = @transform_3, window_bounds = array<i64: 128, 512>}, {pipeline_mode = #tpu.pipeline_mode<synchronous>, transform_indices = @transform_4, window_bounds = array<i64: 128, 512>}, {pipeline_mode = #tpu.pipeline_mode<synchronous>, transform_indices = @transform_5, window_bounds = array<i64: 1, 512>}, {pipeline_mode = #tpu.pipeline_mode<synchronous>, transform_indices = @transform_6, window_bounds = array<i64: 1, 512>}, {pipeline_mode = #tpu.pipeline_mode<synchronous>, transform_indices = @transform_7, window_bounds = array<i64: 128, 128>}, {pipeline_mode = #tpu.pipeline_mode<synchronous>, transform_indices = @transform_8, window_bounds = array<i64: 1, 128>}, {pipeline_mode = #tpu.pipeline_mode<synchronous>, transform_indices = @transform_9, window_bounds = array<i64: 8, 128>}]} {
    %c0_i32 = arith.constant 0 : i32
    %0 = arith.cmpi eq, %arg0, %c0_i32 : i32
    %1 = arith.extui %0 : i1 to i32
    %c0_i32_0 = arith.constant 0 : i32
    %2 = arith.cmpi ne, %1, %c0_i32_0 : i32
    scf.if %2 {
      %cst_79 = arith.constant 0.000000e+00 : f32
      %235 = vector.broadcast %cst_79 : f32 to vector<8x128xf32>
      %c0_80 = arith.constant 0 : index
      %c0_81 = arith.constant 0 : index
      %236 = vector.load %arg12[%c0_80, %c0_81] : memref<8x128xf32, #tpu.memory_space<vmem>>, vector<8x128xf32>
      tpu.vector_store %arg12[%c0_80, %c0_81], %235 {strides = array<i32>} : memref<8x128xf32, #tpu.memory_space<vmem>>, vector<8x128xf32>,
      %cst_82 = arith.constant 0.000000e+00 : f32
      %237 = vector.broadcast %cst_82 : f32 to vector<8x128xf32>
      %c0_83 = arith.constant 0 : index
      %c0_84 = arith.constant 0 : index
      %238 = vector.load %arg13[%c0_83, %c0_84] : memref<8x128xf32, #tpu.memory_space<vmem>>, vector<8x128xf32>
      tpu.vector_store %arg13[%c0_83, %c0_84], %237 {strides = array<i32>} : memref<8x128xf32, #tpu.memory_space<vmem>>, vector<8x128xf32>,
      %cst_85 = arith.constant 0.000000e+00 : f32
      %239 = vector.broadcast %cst_85 : f32 to vector<8x128xf32>
      %c0_86 = arith.constant 0 : index
      %c0_87 = arith.constant 0 : index
      %240 = vector.load %arg14[%c0_86, %c0_87] : memref<8x128xf32, #tpu.memory_space<vmem>>, vector<8x128xf32>
      tpu.vector_store %arg14[%c0_86, %c0_87], %239 {strides = array<i32>} : memref<8x128xf32, #tpu.memory_space<vmem>>, vector<8x128xf32>,
      %cst_88 = arith.constant 0.000000e+00 : f32
      %241 = vector.broadcast %cst_88 : f32 to vector<8x128xf32>
      %c0_89 = arith.constant 0 : index
      %c0_90 = arith.constant 0 : index
      %242 = vector.load %arg15[%c0_89, %c0_90] : memref<8x128xf32, #tpu.memory_space<vmem>>, vector<8x128xf32>
      tpu.vector_store %arg15[%c0_89, %c0_90], %241 {strides = array<i32>} : memref<8x128xf32, #tpu.memory_space<vmem>>, vector<8x128xf32>,
    } else {
    }
    %c0 = arith.constant 0 : index
    %c0_1 = arith.constant 0 : index
    %3 = vector.load %arg3[%c0, %c0_1] : memref<128x512xf32, #tpu.memory_space<vmem>>, vector<128x512xf32>
    %c0_2 = arith.constant 0 : index
    %c0_3 = arith.constant 0 : index
    %4 = vector.load %arg4[%c0_2, %c0_3] : memref<128x512xf32, #tpu.memory_space<vmem>>, vector<128x512xf32>
    %c0_4 = arith.constant 0 : index
    %c0_5 = arith.constant 0 : index
    %5 = vector.load %arg5[%c0_4, %c0_5] : memref<128x512xf32, #tpu.memory_space<vmem>>, vector<128x512xf32>
    %c0_6 = arith.constant 0 : index
    %c0_7 = arith.constant 0 : index
    %6 = vector.load %arg7[%c0_6, %c0_7] : memref<1x512xf32, #tpu.memory_space<vmem>>, vector<1x512xf32>
    %7 = vector.shape_cast %6 : vector<1x512xf32> to vector<1x512xf32>
    %8 = vector.broadcast %7 : vector<1x512xf32> to vector<8x512xf32>
    %c0_8 = arith.constant 0 : index
    %c0_9 = arith.constant 0 : index
    %c0_10 = arith.constant 0 : index
    %9 = vector.load %arg1[%c0_8, %c0_9, %c0_10] : memref<3x8x128xf32, #tpu.memory_space<vmem>>, vector<3x8x128xf32>
    %10 = vector.shape_cast %9 : vector<3x8x128xf32> to vector<24x128xf32>
    %c0_11 = arith.constant 0 : index
    %c0_12 = arith.constant 0 : index
    %11 = vector.load %arg2[%c0_11, %c0_12] : memref<128x512xf32, #tpu.memory_space<vmem>>, vector<128x512xf32>
    %cst = arith.constant dense<0.000000e+00> : vector<24x512xf32>
    %12 = tpu.matmul %10, %11, %cst {dimension_numbers = #tpu.dot_dimension_numbers<[1], [0], [0], [1], [0, 0, 1, 1], [], []>} : vector<24x128xf32>, vector<128x512xf32>, vector<24x512xf32> -> vector<24x512xf32>
    %c0_13 = arith.constant 0 : index
    %c0_14 = arith.constant 0 : index
    %13 = vector.load %arg6[%c0_13, %c0_14] : memref<1x512xf32, #tpu.memory_space<vmem>>, vector<1x512xf32>
    %14 = vector.shape_cast %13 : vector<1x512xf32> to vector<1x512xf32>
    %15 = vector.broadcast %14 : vector<1x512xf32> to vector<24x512xf32>
    %16 = arith.addf %12, %15 : vector<24x512xf32>
    %17 = vector.shape_cast %16 : vector<24x512xf32> to vector<3x8x512xf32>
    %c0_15 = arith.constant 0 : index
    %c0_16 = arith.constant 0 : index
    %c0_17 = arith.constant 0 : index
    %18 = vector.load %arg11[%c0_15, %c0_16, %c0_17] : memref<3x8x512xf32, #tpu.memory_space<vmem>>, vector<3x8x512xf32>
    tpu.vector_store %arg11[%c0_15, %c0_16, %c0_17], %17 {strides = array<i32>} : memref<3x8x512xf32, #tpu.memory_space<vmem>>, vector<3x8x512xf32>,
    %c3_i32 = arith.constant 3 : i32
    %19 = arith.muli %arg0, %c3_i32 : i32
    %c0_18 = arith.constant 0 : index
    %c0_19 = arith.constant 0 : index
    %20 = vector.load %arg12[%c0_18, %c0_19] : memref<8x128xf32, #tpu.memory_space<vmem>>, vector<8x128xf32>
    %c0_20 = arith.constant 0 : index
    %c0_21 = arith.constant 0 : index
    %21 = vector.load %arg13[%c0_20, %c0_21] : memref<8x128xf32, #tpu.memory_space<vmem>>, vector<8x128xf32>
    %c0_22 = arith.constant 0 : index
    %c0_23 = arith.constant 0 : index
    %22 = vector.load %arg14[%c0_22, %c0_23] : memref<8x128xf32, #tpu.memory_space<vmem>>, vector<8x128xf32>
    %c0_24 = arith.constant 0 : index
    %c0_25 = arith.constant 0 : index
    %23 = vector.load %arg15[%c0_24, %c0_25] : memref<8x128xf32, #tpu.memory_space<vmem>>, vector<8x128xf32>
    %c0_i32_26 = arith.constant 0 : i32
    %24 = arith.addi %19, %c0_i32_26 : i32
    %cst_27 = arith.constant dense<0.000000e+00> : vector<8x512xf32>
    %25 = tpu.matmul %20, %4, %cst_27 {dimension_numbers = #tpu.dot_dimension_numbers<[1], [0], [0], [1], [0, 0, 1, 1], [], []>} : vector<8x128xf32>, vector<128x512xf32>, vector<8x512xf32> -> vector<8x512xf32>
    %cst_28 = arith.constant dense<0.000000e+00> : vector<8x512xf32>
    %26 = tpu.matmul %22, %5, %cst_28 {dimension_numbers = #tpu.dot_dimension_numbers<[1], [0], [0], [1], [0, 0, 1, 1], [], []>} : vector<8x128xf32>, vector<128x512xf32>, vector<8x512xf32> -> vector<8x512xf32>
    %27 = arith.addf %25, %26 : vector<8x512xf32>
    %28 = arith.addf %27, %8 : vector<8x512xf32>
    %29 = arith.index_cast %c0_i32_26 : i32 to index
    %c0_29 = arith.constant 0 : index
    %c0_30 = arith.constant 0 : index
    %30 = vector.load %arg11[%29, %c0_29, %c0_30] : memref<3x8x512xf32, #tpu.memory_space<vmem>>, vector<1x8x512xf32>
    %31 = vector.shape_cast %30 : vector<1x8x512xf32> to vector<8x512xf32>
    %cst_31 = arith.constant dense<0.000000e+00> : vector<8x512xf32>
    %32 = tpu.matmul %20, %3, %cst_31 {dimension_numbers = #tpu.dot_dimension_numbers<[1], [0], [0], [1], [0, 0, 1, 1], [], []>} : vector<8x128xf32>, vector<128x512xf32>, vector<8x512xf32> -> vector<8x512xf32>
    %33 = arith.addf %31, %32 : vector<8x512xf32>
    %34 = vector.extract_strided_slice %28 {offsets = [0, 0], sizes = [8, 128], strides = [1, 1]} : vector<8x512xf32> to vector<8x128xf32>
    %35 = arith.negf %34 : vector<8x128xf32>
    %36 = math.exp %35 : vector<8x128xf32>
    %cst_32 = arith.constant 1.000000e+00 : f32
    %37 = vector.broadcast %cst_32 : f32 to vector<8x128xf32>
    %38 = arith.addf %37, %36 : vector<8x128xf32>
    %39 = arith.divf %37, %38 : vector<8x128xf32>
    %40 = vector.extract_strided_slice %28 {offsets = [0, 128], sizes = [8, 128], strides = [1, 1]} : vector<8x512xf32> to vector<8x128xf32>
    %41 = arith.negf %40 : vector<8x128xf32>
    %42 = math.exp %41 : vector<8x128xf32>
    %cst_33 = arith.constant 1.000000e+00 : f32
    %43 = vector.broadcast %cst_33 : f32 to vector<8x128xf32>
    %44 = arith.addf %43, %42 : vector<8x128xf32>
    %45 = arith.divf %43, %44 : vector<8x128xf32>
    %46 = vector.extract_strided_slice %28 {offsets = [0, 256], sizes = [8, 128], strides = [1, 1]} : vector<8x512xf32> to vector<8x128xf32>
    %47 = math.tanh %46 : vector<8x128xf32>
    %48 = vector.extract_strided_slice %28 {offsets = [0, 384], sizes = [8, 128], strides = [1, 1]} : vector<8x512xf32> to vector<8x128xf32>
    %49 = arith.negf %48 : vector<8x128xf32>
    %50 = math.exp %49 : vector<8x128xf32>
    %cst_34 = arith.constant 1.000000e+00 : f32
    %51 = vector.broadcast %cst_34 : f32 to vector<8x128xf32>
    %52 = arith.addf %51, %50 : vector<8x128xf32>
    %53 = arith.divf %51, %52 : vector<8x128xf32>
    %54 = arith.mulf %45, %23 : vector<8x128xf32>
    %55 = arith.mulf %39, %47 : vector<8x128xf32>
    %56 = arith.addf %54, %55 : vector<8x128xf32>
    %57 = math.tanh %56 : vector<8x128xf32>
    %58 = arith.mulf %53, %57 : vector<8x128xf32>
    %59 = vector.extract_strided_slice %33 {offsets = [0, 0], sizes = [8, 128], strides = [1, 1]} : vector<8x512xf32> to vector<8x128xf32>
    %60 = arith.negf %59 : vector<8x128xf32>
    %61 = math.exp %60 : vector<8x128xf32>
    %cst_35 = arith.constant 1.000000e+00 : f32
    %62 = vector.broadcast %cst_35 : f32 to vector<8x128xf32>
    %63 = arith.addf %62, %61 : vector<8x128xf32>
    %64 = arith.divf %62, %63 : vector<8x128xf32>
    %65 = vector.extract_strided_slice %33 {offsets = [0, 128], sizes = [8, 128], strides = [1, 1]} : vector<8x512xf32> to vector<8x128xf32>
    %66 = arith.negf %65 : vector<8x128xf32>
    %67 = math.exp %66 : vector<8x128xf32>
    %cst_36 = arith.constant 1.000000e+00 : f32
    %68 = vector.broadcast %cst_36 : f32 to vector<8x128xf32>
    %69 = arith.addf %68, %67 : vector<8x128xf32>
    %70 = arith.divf %68, %69 : vector<8x128xf32>
    %71 = vector.extract_strided_slice %33 {offsets = [0, 256], sizes = [8, 128], strides = [1, 1]} : vector<8x512xf32> to vector<8x128xf32>
    %72 = math.tanh %71 : vector<8x128xf32>
    %73 = vector.extract_strided_slice %33 {offsets = [0, 384], sizes = [8, 128], strides = [1, 1]} : vector<8x512xf32> to vector<8x128xf32>
    %74 = arith.negf %73 : vector<8x128xf32>
    %75 = math.exp %74 : vector<8x128xf32>
    %cst_37 = arith.constant 1.000000e+00 : f32
    %76 = vector.broadcast %cst_37 : f32 to vector<8x128xf32>
    %77 = arith.addf %76, %75 : vector<8x128xf32>
    %78 = arith.divf %76, %77 : vector<8x128xf32>
    %79 = arith.mulf %70, %21 : vector<8x128xf32>
    %80 = arith.mulf %64, %72 : vector<8x128xf32>
    %81 = arith.addf %79, %80 : vector<8x128xf32>
    %82 = math.tanh %81 : vector<8x128xf32>
    %83 = arith.mulf %78, %82 : vector<8x128xf32>
    %c8_i32 = arith.constant 8 : i32
    %84 = arith.cmpi slt, %24, %c8_i32 : i32
    %c1_i32 = arith.constant 1 : i32
    %85 = arith.cmpi sge, %24, %c1_i32 : i32
    %c8_i32_38 = arith.constant 8 : i32
    %86 = arith.cmpi slt, %24, %c8_i32_38 : i32
    %87 = arith.andi %85, %86 : i1
    %88 = arith.select %84, %83, %20 : vector<8x128xf32>
    %89 = arith.select %84, %81, %21 : vector<8x128xf32>
    %90 = arith.select %87, %58, %22 : vector<8x128xf32>
    %91 = arith.select %87, %56, %23 : vector<8x128xf32>
    %c1_i32_39 = arith.constant 1 : i32
    %92 = arith.addi %19, %c1_i32_39 : i32
    %cst_40 = arith.constant dense<0.000000e+00> : vector<8x512xf32>
    %93 = tpu.matmul %88, %4, %cst_40 {dimension_numbers = #tpu.dot_dimension_numbers<[1], [0], [0], [1], [0, 0, 1, 1], [], []>} : vector<8x128xf32>, vector<128x512xf32>, vector<8x512xf32> -> vector<8x512xf32>
    %cst_41 = arith.constant dense<0.000000e+00> : vector<8x512xf32>
    %94 = tpu.matmul %90, %5, %cst_41 {dimension_numbers = #tpu.dot_dimension_numbers<[1], [0], [0], [1], [0, 0, 1, 1], [], []>} : vector<8x128xf32>, vector<128x512xf32>, vector<8x512xf32> -> vector<8x512xf32>
    %95 = arith.addf %93, %94 : vector<8x512xf32>
    %96 = arith.addf %95, %8 : vector<8x512xf32>
    %97 = arith.index_cast %c1_i32_39 : i32 to index
    %c0_42 = arith.constant 0 : index
    %c0_43 = arith.constant 0 : index
    %98 = vector.load %arg11[%97, %c0_42, %c0_43] : memref<3x8x512xf32, #tpu.memory_space<vmem>>, vector<1x8x512xf32>
    %99 = vector.shape_cast %98 : vector<1x8x512xf32> to vector<8x512xf32>
    %cst_44 = arith.constant dense<0.000000e+00> : vector<8x512xf32>
    %100 = tpu.matmul %88, %3, %cst_44 {dimension_numbers = #tpu.dot_dimension_numbers<[1], [0], [0], [1], [0, 0, 1, 1], [], []>} : vector<8x128xf32>, vector<128x512xf32>, vector<8x512xf32> -> vector<8x512xf32>
    %101 = arith.addf %99, %100 : vector<8x512xf32>
    %102 = vector.extract_strided_slice %96 {offsets = [0, 0], sizes = [8, 128], strides = [1, 1]} : vector<8x512xf32> to vector<8x128xf32>
    %103 = arith.negf %102 : vector<8x128xf32>
    %104 = math.exp %103 : vector<8x128xf32>
    %cst_45 = arith.constant 1.000000e+00 : f32
    %105 = vector.broadcast %cst_45 : f32 to vector<8x128xf32>
    %106 = arith.addf %105, %104 : vector<8x128xf32>
    %107 = arith.divf %105, %106 : vector<8x128xf32>
    %108 = vector.extract_strided_slice %96 {offsets = [0, 128], sizes = [8, 128], strides = [1, 1]} : vector<8x512xf32> to vector<8x128xf32>
    %109 = arith.negf %108 : vector<8x128xf32>
    %110 = math.exp %109 : vector<8x128xf32>
    %cst_46 = arith.constant 1.000000e+00 : f32
    %111 = vector.broadcast %cst_46 : f32 to vector<8x128xf32>
    %112 = arith.addf %111, %110 : vector<8x128xf32>
    %113 = arith.divf %111, %112 : vector<8x128xf32>
    %114 = vector.extract_strided_slice %96 {offsets = [0, 256], sizes = [8, 128], strides = [1, 1]} : vector<8x512xf32> to vector<8x128xf32>
    %115 = math.tanh %114 : vector<8x128xf32>
    %116 = vector.extract_strided_slice %96 {offsets = [0, 384], sizes = [8, 128], strides = [1, 1]} : vector<8x512xf32> to vector<8x128xf32>
    %117 = arith.negf %116 : vector<8x128xf32>
    %118 = math.exp %117 : vector<8x128xf32>
    %cst_47 = arith.constant 1.000000e+00 : f32
    %119 = vector.broadcast %cst_47 : f32 to vector<8x128xf32>
    %120 = arith.addf %119, %118 : vector<8x128xf32>
    %121 = arith.divf %119, %120 : vector<8x128xf32>
    %122 = arith.mulf %113, %91 : vector<8x128xf32>
    %123 = arith.mulf %107, %115 : vector<8x128xf32>
    %124 = arith.addf %122, %123 : vector<8x128xf32>
    %125 = math.tanh %124 : vector<8x128xf32>
    %126 = arith.mulf %121, %125 : vector<8x128xf32>
    %127 = vector.extract_strided_slice %101 {offsets = [0, 0], sizes = [8, 128], strides = [1, 1]} : vector<8x512xf32> to vector<8x128xf32>
    %128 = arith.negf %127 : vector<8x128xf32>
    %129 = math.exp %128 : vector<8x128xf32>
    %cst_48 = arith.constant 1.000000e+00 : f32
    %130 = vector.broadcast %cst_48 : f32 to vector<8x128xf32>
    %131 = arith.addf %130, %129 : vector<8x128xf32>
    %132 = arith.divf %130, %131 : vector<8x128xf32>
    %133 = vector.extract_strided_slice %101 {offsets = [0, 128], sizes = [8, 128], strides = [1, 1]} : vector<8x512xf32> to vector<8x128xf32>
    %134 = arith.negf %133 : vector<8x128xf32>
    %135 = math.exp %134 : vector<8x128xf32>
    %cst_49 = arith.constant 1.000000e+00 : f32
    %136 = vector.broadcast %cst_49 : f32 to vector<8x128xf32>
    %137 = arith.addf %136, %135 : vector<8x128xf32>
    %138 = arith.divf %136, %137 : vector<8x128xf32>
    %139 = vector.extract_strided_slice %101 {offsets = [0, 256], sizes = [8, 128], strides = [1, 1]} : vector<8x512xf32> to vector<8x128xf32>
    %140 = math.tanh %139 : vector<8x128xf32>
    %141 = vector.extract_strided_slice %101 {offsets = [0, 384], sizes = [8, 128], strides = [1, 1]} : vector<8x512xf32> to vector<8x128xf32>
    %142 = arith.negf %141 : vector<8x128xf32>
    %143 = math.exp %142 : vector<8x128xf32>
    %cst_50 = arith.constant 1.000000e+00 : f32
    %144 = vector.broadcast %cst_50 : f32 to vector<8x128xf32>
    %145 = arith.addf %144, %143 : vector<8x128xf32>
    %146 = arith.divf %144, %145 : vector<8x128xf32>
    %147 = arith.mulf %138, %89 : vector<8x128xf32>
    %148 = arith.mulf %132, %140 : vector<8x128xf32>
    %149 = arith.addf %147, %148 : vector<8x128xf32>
    %150 = math.tanh %149 : vector<8x128xf32>
    %151 = arith.mulf %146, %150 : vector<8x128xf32>
    %c8_i32_51 = arith.constant 8 : i32
    %152 = arith.cmpi slt, %92, %c8_i32_51 : i32
    %c1_i32_52 = arith.constant 1 : i32
    %153 = arith.cmpi sge, %92, %c1_i32_52 : i32
    %c8_i32_53 = arith.constant 8 : i32
    %154 = arith.cmpi slt, %92, %c8_i32_53 : i32
    %155 = arith.andi %153, %154 : i1
    %156 = arith.select %152, %151, %88 : vector<8x128xf32>
    %157 = arith.select %152, %149, %89 : vector<8x128xf32>
    %158 = arith.select %155, %126, %90 : vector<8x128xf32>
    %159 = arith.select %155, %124, %91 : vector<8x128xf32>
    %c2_i32 = arith.constant 2 : i32
    %160 = arith.addi %19, %c2_i32 : i32
    %cst_54 = arith.constant dense<0.000000e+00> : vector<8x512xf32>
    %161 = tpu.matmul %156, %4, %cst_54 {dimension_numbers = #tpu.dot_dimension_numbers<[1], [0], [0], [1], [0, 0, 1, 1], [], []>} : vector<8x128xf32>, vector<128x512xf32>, vector<8x512xf32> -> vector<8x512xf32>
    %cst_55 = arith.constant dense<0.000000e+00> : vector<8x512xf32>
    %162 = tpu.matmul %158, %5, %cst_55 {dimension_numbers = #tpu.dot_dimension_numbers<[1], [0], [0], [1], [0, 0, 1, 1], [], []>} : vector<8x128xf32>, vector<128x512xf32>, vector<8x512xf32> -> vector<8x512xf32>
    %163 = arith.addf %161, %162 : vector<8x512xf32>
    %164 = arith.addf %163, %8 : vector<8x512xf32>
    %165 = arith.index_cast %c2_i32 : i32 to index
    %c0_56 = arith.constant 0 : index
    %c0_57 = arith.constant 0 : index
    %166 = vector.load %arg11[%165, %c0_56, %c0_57] : memref<3x8x512xf32, #tpu.memory_space<vmem>>, vector<1x8x512xf32>
    %167 = vector.shape_cast %166 : vector<1x8x512xf32> to vector<8x512xf32>
    %cst_58 = arith.constant dense<0.000000e+00> : vector<8x512xf32>
    %168 = tpu.matmul %156, %3, %cst_58 {dimension_numbers = #tpu.dot_dimension_numbers<[1], [0], [0], [1], [0, 0, 1, 1], [], []>} : vector<8x128xf32>, vector<128x512xf32>, vector<8x512xf32> -> vector<8x512xf32>
    %169 = arith.addf %167, %168 : vector<8x512xf32>
    %170 = vector.extract_strided_slice %164 {offsets = [0, 0], sizes = [8, 128], strides = [1, 1]} : vector<8x512xf32> to vector<8x128xf32>
    %171 = arith.negf %170 : vector<8x128xf32>
    %172 = math.exp %171 : vector<8x128xf32>
    %cst_59 = arith.constant 1.000000e+00 : f32
    %173 = vector.broadcast %cst_59 : f32 to vector<8x128xf32>
    %174 = arith.addf %173, %172 : vector<8x128xf32>
    %175 = arith.divf %173, %174 : vector<8x128xf32>
    %176 = vector.extract_strided_slice %164 {offsets = [0, 128], sizes = [8, 128], strides = [1, 1]} : vector<8x512xf32> to vector<8x128xf32>
    %177 = arith.negf %176 : vector<8x128xf32>
    %178 = math.exp %177 : vector<8x128xf32>
    %cst_60 = arith.constant 1.000000e+00 : f32
    %179 = vector.broadcast %cst_60 : f32 to vector<8x128xf32>
    %180 = arith.addf %179, %178 : vector<8x128xf32>
    %181 = arith.divf %179, %180 : vector<8x128xf32>
    %182 = vector.extract_strided_slice %164 {offsets = [0, 256], sizes = [8, 128], strides = [1, 1]} : vector<8x512xf32> to vector<8x128xf32>
    %183 = math.tanh %182 : vector<8x128xf32>
    %184 = vector.extract_strided_slice %164 {offsets = [0, 384], sizes = [8, 128], strides = [1, 1]} : vector<8x512xf32> to vector<8x128xf32>
    %185 = arith.negf %184 : vector<8x128xf32>
    %186 = math.exp %185 : vector<8x128xf32>
    %cst_61 = arith.constant 1.000000e+00 : f32
    %187 = vector.broadcast %cst_61 : f32 to vector<8x128xf32>
    %188 = arith.addf %187, %186 : vector<8x128xf32>
    %189 = arith.divf %187, %188 : vector<8x128xf32>
    %190 = arith.mulf %181, %159 : vector<8x128xf32>
    %191 = arith.mulf %175, %183 : vector<8x128xf32>
    %192 = arith.addf %190, %191 : vector<8x128xf32>
    %193 = math.tanh %192 : vector<8x128xf32>
    %194 = arith.mulf %189, %193 : vector<8x128xf32>
    %195 = vector.extract_strided_slice %169 {offsets = [0, 0], sizes = [8, 128], strides = [1, 1]} : vector<8x512xf32> to vector<8x128xf32>
    %196 = arith.negf %195 : vector<8x128xf32>
    %197 = math.exp %196 : vector<8x128xf32>
    %cst_62 = arith.constant 1.000000e+00 : f32
    %198 = vector.broadcast %cst_62 : f32 to vector<8x128xf32>
    %199 = arith.addf %198, %197 : vector<8x128xf32>
    %200 = arith.divf %198, %199 : vector<8x128xf32>
    %201 = vector.extract_strided_slice %169 {offsets = [0, 128], sizes = [8, 128], strides = [1, 1]} : vector<8x512xf32> to vector<8x128xf32>
    %202 = arith.negf %201 : vector<8x128xf32>
    %203 = math.exp %202 : vector<8x128xf32>
    %cst_63 = arith.constant 1.000000e+00 : f32
    %204 = vector.broadcast %cst_63 : f32 to vector<8x128xf32>
    %205 = arith.addf %204, %203 : vector<8x128xf32>
    %206 = arith.divf %204, %205 : vector<8x128xf32>
    %207 = vector.extract_strided_slice %169 {offsets = [0, 256], sizes = [8, 128], strides = [1, 1]} : vector<8x512xf32> to vector<8x128xf32>
    %208 = math.tanh %207 : vector<8x128xf32>
    %209 = vector.extract_strided_slice %169 {offsets = [0, 384], sizes = [8, 128], strides = [1, 1]} : vector<8x512xf32> to vector<8x128xf32>
    %210 = arith.negf %209 : vector<8x128xf32>
    %211 = math.exp %210 : vector<8x128xf32>
    %cst_64 = arith.constant 1.000000e+00 : f32
    %212 = vector.broadcast %cst_64 : f32 to vector<8x128xf32>
    %213 = arith.addf %212, %211 : vector<8x128xf32>
    %214 = arith.divf %212, %213 : vector<8x128xf32>
    %215 = arith.mulf %206, %157 : vector<8x128xf32>
    %216 = arith.mulf %200, %208 : vector<8x128xf32>
    %217 = arith.addf %215, %216 : vector<8x128xf32>
    %218 = math.tanh %217 : vector<8x128xf32>
    %219 = arith.mulf %214, %218 : vector<8x128xf32>
    %c8_i32_65 = arith.constant 8 : i32
    %220 = arith.cmpi slt, %160, %c8_i32_65 : i32
    %c1_i32_66 = arith.constant 1 : i32
    %221 = arith.cmpi sge, %160, %c1_i32_66 : i32
    %c8_i32_67 = arith.constant 8 : i32
    %222 = arith.cmpi slt, %160, %c8_i32_67 : i32
    %223 = arith.andi %221, %222 : i1
    %224 = arith.select %220, %219, %156 : vector<8x128xf32>
    %225 = arith.select %220, %217, %157 : vector<8x128xf32>
    %226 = arith.select %223, %194, %158 : vector<8x128xf32>
    %227 = arith.select %223, %192, %159 : vector<8x128xf32>
    %c3_i32_68 = arith.constant 3 : i32
    %c0_69 = arith.constant 0 : index
    %c0_70 = arith.constant 0 : index
    %228 = vector.load %arg12[%c0_69, %c0_70] : memref<8x128xf32, #tpu.memory_space<vmem>>, vector<8x128xf32>
    tpu.vector_store %arg12[%c0_69, %c0_70], %224 {strides = array<i32>} : memref<8x128xf32, #tpu.memory_space<vmem>>, vector<8x128xf32>,
    %c0_71 = arith.constant 0 : index
    %c0_72 = arith.constant 0 : index
    %229 = vector.load %arg13[%c0_71, %c0_72] : memref<8x128xf32, #tpu.memory_space<vmem>>, vector<8x128xf32>
    tpu.vector_store %arg13[%c0_71, %c0_72], %225 {strides = array<i32>} : memref<8x128xf32, #tpu.memory_space<vmem>>, vector<8x128xf32>,
    %c0_73 = arith.constant 0 : index
    %c0_74 = arith.constant 0 : index
    %230 = vector.load %arg14[%c0_73, %c0_74] : memref<8x128xf32, #tpu.memory_space<vmem>>, vector<8x128xf32>
    tpu.vector_store %arg14[%c0_73, %c0_74], %226 {strides = array<i32>} : memref<8x128xf32, #tpu.memory_space<vmem>>, vector<8x128xf32>,
    %c0_75 = arith.constant 0 : index
    %c0_76 = arith.constant 0 : index
    %231 = vector.load %arg15[%c0_75, %c0_76] : memref<8x128xf32, #tpu.memory_space<vmem>>, vector<8x128xf32>
    tpu.vector_store %arg15[%c0_75, %c0_76], %227 {strides = array<i32>} : memref<8x128xf32, #tpu.memory_space<vmem>>, vector<8x128xf32>,
    %c2_i32_77 = arith.constant 2 : i32
    %232 = arith.cmpi eq, %arg0, %c2_i32_77 : i32
    %233 = arith.extui %232 : i1 to i32
    %c0_i32_78 = arith.constant 0 : i32
    %234 = arith.cmpi ne, %233, %c0_i32_78 : i32
    scf.if %234 {
      %cst_79 = arith.constant dense<0.000000e+00> : vector<8x512xf32>
      %235 = tpu.matmul %224, %4, %cst_79 {dimension_numbers = #tpu.dot_dimension_numbers<[1], [0], [0], [1], [0, 0, 1, 1], [], []>} : vector<8x128xf32>, vector<128x512xf32>, vector<8x512xf32> -> vector<8x512xf32>
      %cst_80 = arith.constant dense<0.000000e+00> : vector<8x512xf32>
      %236 = tpu.matmul %226, %5, %cst_80 {dimension_numbers = #tpu.dot_dimension_numbers<[1], [0], [0], [1], [0, 0, 1, 1], [], []>} : vector<8x128xf32>, vector<128x512xf32>, vector<8x512xf32> -> vector<8x512xf32>
      %237 = arith.addf %235, %236 : vector<8x512xf32>
      %238 = arith.addf %237, %8 : vector<8x512xf32>
      %239 = vector.extract_strided_slice %238 {offsets = [0, 0], sizes = [8, 128], strides = [1, 1]} : vector<8x512xf32> to vector<8x128xf32>
      %240 = arith.negf %239 : vector<8x128xf32>
      %241 = math.exp %240 : vector<8x128xf32>
      %cst_81 = arith.constant 1.000000e+00 : f32
      %242 = vector.broadcast %cst_81 : f32 to vector<8x128xf32>
      %243 = arith.addf %242, %241 : vector<8x128xf32>
      %244 = arith.divf %242, %243 : vector<8x128xf32>
      %245 = vector.extract_strided_slice %238 {offsets = [0, 128], sizes = [8, 128], strides = [1, 1]} : vector<8x512xf32> to vector<8x128xf32>
      %246 = arith.negf %245 : vector<8x128xf32>
      %247 = math.exp %246 : vector<8x128xf32>
      %cst_82 = arith.constant 1.000000e+00 : f32
      %248 = vector.broadcast %cst_82 : f32 to vector<8x128xf32>
      %249 = arith.addf %248, %247 : vector<8x128xf32>
      %250 = arith.divf %248, %249 : vector<8x128xf32>
      %251 = vector.extract_strided_slice %238 {offsets = [0, 256], sizes = [8, 128], strides = [1, 1]} : vector<8x512xf32> to vector<8x128xf32>
      %252 = math.tanh %251 : vector<8x128xf32>
      %253 = vector.extract_strided_slice %238 {offsets = [0, 384], sizes = [8, 128], strides = [1, 1]} : vector<8x512xf32> to vector<8x128xf32>
      %254 = arith.negf %253 : vector<8x128xf32>
      %255 = math.exp %254 : vector<8x128xf32>
      %cst_83 = arith.constant 1.000000e+00 : f32
      %256 = vector.broadcast %cst_83 : f32 to vector<8x128xf32>
      %257 = arith.addf %256, %255 : vector<8x128xf32>
      %258 = arith.divf %256, %257 : vector<8x128xf32>
      %259 = arith.mulf %250, %227 : vector<8x128xf32>
      %260 = arith.mulf %244, %252 : vector<8x128xf32>
      %261 = arith.addf %259, %260 : vector<8x128xf32>
      %262 = math.tanh %261 : vector<8x128xf32>
      %263 = arith.mulf %258, %262 : vector<8x128xf32>
      %c0_84 = arith.constant 0 : index
      %c0_85 = arith.constant 0 : index
      %264 = vector.load %arg8[%c0_84, %c0_85] : memref<128x128xf32, #tpu.memory_space<vmem>>, vector<128x128xf32>
      %cst_86 = arith.constant dense<0.000000e+00> : vector<8x128xf32>
      %265 = tpu.matmul %263, %264, %cst_86 {dimension_numbers = #tpu.dot_dimension_numbers<[1], [0], [0], [1], [0, 0, 1, 1], [], []>} : vector<8x128xf32>, vector<128x128xf32>, vector<8x128xf32> -> vector<8x128xf32>
      %c0_87 = arith.constant 0 : index
      %c0_88 = arith.constant 0 : index
      %266 = vector.load %arg9[%c0_87, %c0_88] : memref<1x128xf32, #tpu.memory_space<vmem>>, vector<1x128xf32>
      %267 = vector.broadcast %266 : vector<1x128xf32> to vector<8x128xf32>
      %268 = arith.addf %265, %267 : vector<8x128xf32>
      %c0_89 = arith.constant 0 : index
      %c0_90 = arith.constant 0 : index
      %269 = vector.load %arg10[%c0_89, %c0_90] : memref<8x128xf32, #tpu.memory_space<vmem>>, vector<8x128xf32>
      tpu.vector_store %arg10[%c0_89, %c0_90], %268 {strides = array<i32>} : memref<8x128xf32, #tpu.memory_space<vmem>>, vector<8x128xf32>,
    } else {
    }
    return
  }
  func.func @transform_0(%arg0: i32) -> (i32, i32, i32) {
    %c0_i32 = arith.constant 0 : i32
    %c0_i32_0 = arith.constant 0 : i32
    %c0_i32_1 = arith.constant 0 : i32
    return %arg0, %c0_i32, %c0_i32_0 : i32, i32, i32
  }
  func.func @transform_1(%arg0: i32) -> (i32, i32) {
    %c0_i32 = arith.constant 0 : i32
    %c0_i32_0 = arith.constant 0 : i32
    %c0_i32_1 = arith.constant 0 : i32
    return %c0_i32, %c0_i32_0 : i32, i32
  }
  func.func @transform_2(%arg0: i32) -> (i32, i32) {
    %c0_i32 = arith.constant 0 : i32
    %c0_i32_0 = arith.constant 0 : i32
    %c0_i32_1 = arith.constant 0 : i32
    return %c0_i32, %c0_i32_0 : i32, i32
  }
  func.func @transform_3(%arg0: i32) -> (i32, i32) {
    %c0_i32 = arith.constant 0 : i32
    %c0_i32_0 = arith.constant 0 : i32
    %c0_i32_1 = arith.constant 0 : i32
    return %c0_i32, %c0_i32_0 : i32, i32
  }
  func.func @transform_4(%arg0: i32) -> (i32, i32) {
    %c0_i32 = arith.constant 0 : i32
    %c0_i32_0 = arith.constant 0 : i32
    %c0_i32_1 = arith.constant 0 : i32
    return %c0_i32, %c0_i32_0 : i32, i32
  }
  func.func @transform_5(%arg0: i32) -> (i32, i32) {
    %c0_i32 = arith.constant 0 : i32
    %c0_i32_0 = arith.constant 0 : i32
    %c0_i32_1 = arith.constant 0 : i32
    return %c0_i32, %c0_i32_0 : i32, i32
  }
  func.func @transform_6(%arg0: i32) -> (i32, i32) {
    %c0_i32 = arith.constant 0 : i32
    %c0_i32_0 = arith.constant 0 : i32
    %c0_i32_1 = arith.constant 0 : i32
    return %c0_i32, %c0_i32_0 : i32, i32
  }
  func.func @transform_7(%arg0: i32) -> (i32, i32) {
    %c0_i32 = arith.constant 0 : i32
    %c0_i32_0 = arith.constant 0 : i32
    %c0_i32_1 = arith.constant 0 : i32
    return %c0_i32, %c0_i32_0 : i32, i32
  }
  func.func @transform_8(%arg0: i32) -> (i32, i32) {
    %c0_i32 = arith.constant 0 : i32
    %c0_i32_0 = arith.constant 0 : i32
    %c0_i32_1 = arith.constant 0 : i32
    return %c0_i32, %c0_i32_0 : i32, i32
  }
  func.func @transform_9(%arg0: i32) -> (i32, i32) {
    %c0_i32 = arith.constant 0 : i32
    %c0_i32_0 = arith.constant 0 : i32
    %c0_i32_1 = arith.constant 0 : i32
    return %c0_i32, %c0_i32_0 : i32, i32
  }
}

</mosaic_0001>

<llo_original>
// kernel: tpu_custom_call.1
$region0: #{tpu_custom_call.1}
  #allocation0 [shape = 'u32[]', space=smem, size = 0x4, offset = 0x4, fixed_abs, tag = 'smem constant byte address 0x4 - core index']
  #allocation1 [shape = 'u32[144,128]{1,0:T(1,128)}', space=vmem, size = 0x12000, scoped, tag = 'internal scratch']
  #allocation2 [shape = 'f32[3,8,512]{2,1,0:T(8,128)}', space=vmem, size = 0xc000, scoped, tag = 'scratch operand']
  #allocation3 [shape = 'f32[8,128]{1,0:T(8,128)}', space=vmem, size = 0x1000, scoped, tag = 'scratch operand']
  #allocation4 [shape = 'f32[8,128]{1,0:T(8,128)}', space=vmem, size = 0x1000, scoped, tag = 'scratch operand']
  #allocation5 [shape = 'f32[8,128]{1,0:T(8,128)}', space=vmem, size = 0x1000, scoped, tag = 'scratch operand']
  #allocation6 [shape = 'f32[8,128]{1,0:T(8,128)}', space=vmem, size = 0x1000, scoped, tag = 'scratch operand']
  %s0 = inlined_call_operand.hbm [shape: f32[9,8,128], index: 0, kind: input, shape index: {}]
  %s1 = inlined_call_operand.hbm [shape: f32[128,512], index: 1, kind: input, shape index: {}]
  %s2 = inlined_call_operand.hbm [shape: f32[128,512], index: 2, kind: input, shape index: {}]
  %s3 = inlined_call_operand.hbm [shape: f32[128,512], index: 3, kind: input, shape index: {}]
  %s4 = inlined_call_operand.hbm [shape: f32[128,512], index: 4, kind: input, shape index: {}]
  %s5 = inlined_call_operand.vmem [shape: f32[1,512], index: 5, kind: input, shape index: {}]
  %s6 = inlined_call_operand.vmem [shape: f32[1,512], index: 6, kind: input, shape index: {}]
  %s7 = inlined_call_operand.hbm [shape: f32[128,128], index: 7, kind: input, shape index: {}]
  %s8 = inlined_call_operand.vmem [shape: f32[1,128], index: 8, kind: input, shape index: {}]
  %s9 = inlined_call_operand.hbm [shape: f32[8,128], index: 9, kind: output, shape index: {}]
  %s10 = sld [smem:[#allocation0]]
  $region101: #{tpu_custom_call.1} parent=0
    _
  %s12 = ssub.s32 1, %s10
  %s13 = scalar_select 0, %s12, %s10
  $region1: #{tpu_custom_call.1} parent=0
    #allocation7 [shape = 'u8[24576]{0}', space=vmem, size = 0x6000, scoped, tag = 'input window, operand 0']
    #allocation8 [shape = 's32[2]{0}', space=sflag, size = 0x8, scoped, tag = 'scoped memory for tpu_custom_call.1']
    #allocation9 [shape = 's32[2]{0}', space=sflag, size = 0x8, scoped, tag = 'scoped memory for tpu_custom_call.1']
    #allocation10 [shape = 'u8[262144]{0}', space=vmem, size = 0x40000, scoped, tag = 'input window, operand 1, single buffered']
    #allocation11 [shape = 's32[1]{0}', space=sflag, size = 0x4, scoped, tag = 'scoped memory for tpu_custom_call.1']
    #allocation12 [shape = 'u8[262144]{0}', space=vmem, size = 0x40000, scoped, tag = 'input window, operand 2, single buffered']
    #allocation13 [shape = 'u8[262144]{0}', space=vmem, size = 0x40000, scoped, tag = 'input window, operand 3, single buffered']
    #allocation14 [shape = 's32[1]{0}', space=sflag, size = 0x4, scoped, tag = 'scoped memory for tpu_custom_call.1']
    #allocation15 [shape = 'u8[262144]{0}', space=vmem, size = 0x40000, scoped, tag = 'input window, operand 4, single buffered']
    #allocation16 [shape = 'u8[65536]{0}', space=vmem, size = 0x10000, scoped, tag = 'input window, operand 7, single buffered']
    #allocation17 [shape = 's32[1]{0}', space=sflag, size = 0x4, scoped, tag = 'scoped memory for tpu_custom_call.1']
    #allocation18 [shape = 'u8[4096]{0}', space=vmem, size = 0x1000, scoped, tag = 'output window, operand 0, single buffered']
    %14 = vsyncpa [#allocation8], 0
    %s15 = scalar_lea.sflag [#allocation8], 1
    %16 = vsyncpa %s15, 0
    %17 = vsyncpa [#allocation11], 0
    %18 = vsyncpa [#allocation14], 0
    %19 = vsyncpa [#allocation17], 0
    %20 = vsyncpa [#allocation9], 0
    loop: start=0, step=1, limit=5
    $region2: #{tpu_custom_call.1} parent=1 // loop_pre_header
      _
    $region3: #{tpu_custom_call.1} parent=1 // loop_header
      %s22 = sphi 0, %s26
      %p23 = scmp.ge.s32.totalorder %s22, 5
      %s32 = sphi 0, %s34
      %s35 = sphi 0, %s32
      %s36 = sphi 0, %s35
      %s52 = sphi 0, %s36
      %s56 = sphi 0, %s56
      %s58 = sphi 0, %s56
      %s59 = sphi 0, %s58
      %s73 = sphi 0, %s59
      %s77 = sphi 0, %s77
      %s79 = sphi 0, %s77
      %s80 = sphi 0, %s79
      %s94 = sphi 0, %s80
      %s98 = sphi 0, %s98
      %s100 = sphi 0, %s98
      %s101 = sphi 0, %s100
      %s115 = sphi 0, %s101
      %s119 = sphi 0, %s119
      %s121 = sphi 0, %s119
      %s122 = sphi 0, %s121
      %s136 = sphi 0, %s122
      %s140 = sphi 0, %s140
      %s142 = sphi 0, %s140
      %s143 = sphi 0, %s142
      %s157 = sphi 0, %s143
      %s161 = sphi 0, %s161
      %s163 = sphi 0, %s161
      %s164 = sphi 0, %s163
      %s178 = sphi 0, %s164
      %s182 = sphi 0, %s182
      %s184 = sphi 0, %s182
      %s185 = sphi 0, %s184
      %s199 = sphi 0, %s185
      %s203 = sphi 0, %s203
      %s205 = sphi 0, %s203
      %s206 = sphi 0, %s205
      %s220 = sphi 0, %s206
      %s224 = sphi 0, %s224
      %s226 = sphi 0, %s224
      %s227 = sphi 0, %s226
      %s241 = sphi 0, %s227
    $region4: #{tpu_custom_call.1} parent=1 // loop_header_branch
      %25 = sbr.rel (%p23) target = $region8
    $region5: #{tpu_custom_call.1} parent=1 // loop_body
      %s27 = ssub.s32 %s22, 1
      %s28 = ssub.s32 %s22, 2
      %s29 = sadd.s32 %s22, 1
      %s30 = ssub.s32 %s22, %s29
      %p31 = scmp.eq.s32.totalorder %s30, 0
      %s33 = sadd.s32 %s32, 1
      %s34 = scalar_select %p31, %s32, %s33
      %p37 = pneg %p31
      %p38 = scmp.eq.s32.totalorder %s22, 2
      %p39 = por %p37, %p38
      %p40 = scmp.ne.s32.totalorder %s32, %s35
      %p41 = scmp.eq.s32.totalorder %s22, 0
      %p42 = por %p40, %p41
      %p43 = scmp.ne.s32.totalorder %s32, %s35
      %p44 = scmp.eq.s32.totalorder %s27, 2
      %p45 = por %p43, %p44
      %p46 = scmp.ne.s32.totalorder %s35, %s36
      %p47 = scmp.eq.s32.totalorder %s27, 0
      %p48 = por %p46, %p47
      %p49 = scmp.ne.s32.totalorder %s35, %s36
      %p50 = scmp.eq.s32.totalorder %s28, 2
      %p51 = por %p49, %p50
      %p53 = scmp.ne.s32.totalorder %s36, %s52
      %p54 = scmp.eq.s32.totalorder %s28, 0
      %p55 = por %p53, %p54
      %s57 = sadd.s32 %s56, 1
      %p60 = scmp.eq.s32.totalorder %s22, 2
      %p61 = scmp.ne.s32.totalorder %s56, %s58
      %p62 = scmp.eq.s32.totalorder %s22, 0
      %p63 = por %p61, %p62
      %p64 = scmp.ne.s32.totalorder %s56, %s58
      %p65 = scmp.eq.s32.totalorder %s27, 2
      %p66 = por %p64, %p65
      %p67 = scmp.ne.s32.totalorder %s58, %s59
      %p68 = scmp.eq.s32.totalorder %s27, 0
      %p69 = por %p67, %p68
      %p70 = scmp.ne.s32.totalorder %s58, %s59
      %p71 = scmp.eq.s32.totalorder %s28, 2
      %p72 = por %p70, %p71
      %p74 = scmp.ne.s32.totalorder %s59, %s73
      %p75 = scmp.eq.s32.totalorder %s28, 0
      %p76 = por %p74, %p75
      %s78 = sadd.s32 %s77, 1
      %p81 = scmp.eq.s32.totalorder %s22, 2
      %p82 = scmp.ne.s32.totalorder %s77, %s79
      %p83 = scmp.eq.s32.totalorder %s22, 0
      %p84 = por %p82, %p83
      %p85 = scmp.ne.s32.totalorder %s77, %s79
      %p86 = scmp.eq.s32.totalorder %s27, 2
      %p87 = por %p85, %p86
      %p88 = scmp.ne.s32.totalorder %s79, %s80
      %p89 = scmp.eq.s32.totalorder %s27, 0
      %p90 = por %p88, %p89
      %p91 = scmp.ne.s32.totalorder %s79, %s80
      %p92 = scmp.eq.s32.totalorder %s28, 2
      %p93 = por %p91, %p92
      %p95 = scmp.ne.s32.totalorder %s80, %s94
      %p96 = scmp.eq.s32.totalorder %s28, 0
      %p97 = por %p95, %p96
      %s99 = sadd.s32 %s98, 1
      %p102 = scmp.eq.s32.totalorder %s22, 2
      %p103 = scmp.ne.s32.totalorder %s98, %s100
      %p104 = scmp.eq.s32.totalorder %s22, 0
      %p105 = por %p103, %p104
      %p106 = scmp.ne.s32.totalorder %s98, %s100
      %p107 = scmp.eq.s32.totalorder %s27, 2
      %p108 = por %p106, %p107
      %p109 = scmp.ne.s32.totalorder %s100, %s101
      %p110 = scmp.eq.s32.totalorder %s27, 0
      %p111 = por %p109, %p110
      %p112 = scmp.ne.s32.totalorder %s100, %s101
      %p113 = scmp.eq.s32.totalorder %s28, 2
      %p114 = por %p112, %p113
      %p116 = scmp.ne.s32.totalorder %s101, %s115
      %p117 = scmp.eq.s32.totalorder %s28, 0
      %p118 = por %p116, %p117
      %s120 = sadd.s32 %s119, 1
      %p123 = scmp.eq.s32.totalorder %s22, 2
      %p124 = scmp.ne.s32.totalorder %s119, %s121
      %p125 = scmp.eq.s32.totalorder %s22, 0
      %p126 = por %p124, %p125
      %p127 = scmp.ne.s32.totalorder %s119, %s121
      %p128 = scmp.eq.s32.totalorder %s27, 2
      %p129 = por %p127, %p128
      %p130 = scmp.ne.s32.totalorder %s121, %s122
      %p131 = scmp.eq.s32.totalorder %s27, 0
      %p132 = por %p130, %p131
      %p133 = scmp.ne.s32.totalorder %s121, %s122
      %p134 = scmp.eq.s32.totalorder %s28, 2
      %p135 = por %p133, %p134
      %p137 = scmp.ne.s32.totalorder %s122, %s136
      %p138 = scmp.eq.s32.totalorder %s28, 0
      %p139 = por %p137, %p138
      %s141 = sadd.s32 %s140, 1
      %p144 = scmp.eq.s32.totalorder %s22, 2
      %p145 = scmp.ne.s32.totalorder %s140, %s142
      %p146 = scmp.eq.s32.totalorder %s22, 0
      %p147 = por %p145, %p146
      %p148 = scmp.ne.s32.totalorder %s140, %s142
      %p149 = scmp.eq.s32.totalorder %s27, 2
      %p150 = por %p148, %p149
      %p151 = scmp.ne.s32.totalorder %s142, %s143
      %p152 = scmp.eq.s32.totalorder %s27, 0
      %p153 = por %p151, %p152
      %p154 = scmp.ne.s32.totalorder %s142, %s143
      %p155 = scmp.eq.s32.totalorder %s28, 2
      %p156 = por %p154, %p155
      %p158 = scmp.ne.s32.totalorder %s143, %s157
      %p159 = scmp.eq.s32.totalorder %s28, 0
      %p160 = por %p158, %p159
      %s162 = sadd.s32 %s161, 1
      %p165 = scmp.eq.s32.totalorder %s22, 2
      %p166 = scmp.ne.s32.totalorder %s161, %s163
      %p167 = scmp.eq.s32.totalorder %s22, 0
      %p168 = por %p166, %p167
      %p169 = scmp.ne.s32.totalorder %s161, %s163
      %p170 = scmp.eq.s32.totalorder %s27, 2
      %p171 = por %p169, %p170
      %p172 = scmp.ne.s32.totalorder %s163, %s164
      %p173 = scmp.eq.s32.totalorder %s27, 0
      %p174 = por %p172, %p173
      %p175 = scmp.ne.s32.totalorder %s163, %s164
      %p176 = scmp.eq.s32.totalorder %s28, 2
      %p177 = por %p175, %p176
      %p179 = scmp.ne.s32.totalorder %s164, %s178
      %p180 = scmp.eq.s32.totalorder %s28, 0
      %p181 = por %p179, %p180
      %s183 = sadd.s32 %s182, 1
      %p186 = scmp.eq.s32.totalorder %s22, 2
      %p187 = scmp.ne.s32.totalorder %s182, %s184
      %p188 = scmp.eq.s32.totalorder %s22, 0
      %p189 = por %p187, %p188
      %p190 = scmp.ne.s32.totalorder %s182, %s184
      %p191 = scmp.eq.s32.totalorder %s27, 2
      %p192 = por %p190, %p191
      %p193 = scmp.ne.s32.totalorder %s184, %s185
      %p194 = scmp.eq.s32.totalorder %s27, 0
      %p195 = por %p193, %p194
      %p196 = scmp.ne.s32.totalorder %s184, %s185
      %p197 = scmp.eq.s32.totalorder %s28, 2
      %p198 = por %p196, %p197
      %p200 = scmp.ne.s32.totalorder %s185, %s199
      %p201 = scmp.eq.s32.totalorder %s28, 0
      %p202 = por %p200, %p201
      %s204 = sadd.s32 %s203, 1
      %p207 = scmp.eq.s32.totalorder %s22, 2
      %p208 = scmp.ne.s32.totalorder %s203, %s205
      %p209 = scmp.eq.s32.totalorder %s22, 0
      %p210 = por %p208, %p209
      %p211 = scmp.ne.s32.totalorder %s203, %s205
      %p212 = scmp.eq.s32.totalorder %s27, 2
      %p213 = por %p211, %p212
      %p214 = scmp.ne.s32.totalorder %s205, %s206
      %p215 = scmp.eq.s32.totalorder %s27, 0
      %p216 = por %p214, %p215
      %p217 = scmp.ne.s32.totalorder %s205, %s206
      %p218 = scmp.eq.s32.totalorder %s28, 2
      %p219 = por %p217, %p218
      %p221 = scmp.ne.s32.totalorder %s206, %s220
      %p222 = scmp.eq.s32.totalorder %s28, 0
      %p223 = por %p221, %p222
      %s225 = sadd.s32 %s224, 1
      %p228 = scmp.eq.s32.totalorder %s22, 2
      %p229 = scmp.ne.s32.totalorder %s224, %s226
      %p230 = scmp.eq.s32.totalorder %s22, 0
      %p231 = por %p229, %p230
      %p232 = scmp.ne.s32.totalorder %s224, %s226
      %p233 = scmp.eq.s32.totalorder %s27, 2
      %p234 = por %p232, %p233
      %p235 = scmp.ne.s32.totalorder %s226, %s227
      %p236 = scmp.eq.s32.totalorder %s27, 0
      %p237 = por %p235, %p236
      %p238 = scmp.ne.s32.totalorder %s226, %s227
      %p239 = scmp.eq.s32.totalorder %s28, 2
      %p240 = por %p238, %p239
      %p242 = scmp.ne.s32.totalorder %s227, %s241
      %p243 = scmp.eq.s32.totalorder %s28, 0
      %p244 = por %p242, %p243
      %p245 = scmp.le.s32.totalorder 1, %s22
      %p246 = scmp.lt.s32.totalorder %s22, 4
      %p247 = pnand %p245, %p246
      %p248 = pneg %p247
      // Predicated region
      $region9: #{tpu_custom_call.1} parent=5 // pred_check
        _
      $region10: #{tpu_custom_call.1} parent=5 // pred_check_branch
        %250 = sbr.rel (%p247) target = $region12
      $region11: #{tpu_custom_call.1} parent=5 // pred_region
        %s251 = ssub.s32 %s22, 1
        // Predicated region
        $region13: #{tpu_custom_call.1} parent=11 // pred_check
          %p252 = pneg %p69
        $region14: #{tpu_custom_call.1} parent=11 // pred_check_branch
          %254 = sbr.rel (%p252) target = $region16
        $region15: #{tpu_custom_call.1} parent=11 // pred_region
          %s256 = ssub.s32 8192, 8192
          %257 = vsyncadd [#allocation11], %s256
          %s258 = sshll.u32 [#allocation10], 4
          %s259 = int_to_ptr.vmem [resolvable:$true] %s258
          %264 = dma.hbm_to_vmem [thread:$0]  %s1, 8192, %s259, [#allocation11], 512, 512, 32
        $region16: #{tpu_custom_call.1} parent=11 // pred_fallthru
          _
        // Predicated region
        $region17: #{tpu_custom_call.1} parent=11 // pred_check
          %p265 = pneg %p90
        $region18: #{tpu_custom_call.1} parent=11 // pred_check_branch
          %267 = sbr.rel (%p265) target = $region20
        $region19: #{tpu_custom_call.1} parent=11 // pred_region
          %s269 = ssub.s32 8192, 8192
          %270 = vsyncadd [#allocation11], %s269
          %s271 = sshll.u32 [#allocation12], 4
          %s272 = int_to_ptr.vmem [resolvable:$true] %s271
          %277 = dma.hbm_to_vmem [thread:$0]  %s2, 8192, %s272, [#allocation11], 512, 512, 32
        $region20: #{tpu_custom_call.1} parent=11 // pred_fallthru
          _
        // Predicated region
        $region21: #{tpu_custom_call.1} parent=11 // pred_check
          %p278 = pneg %p111
        $region22: #{tpu_custom_call.1} parent=11 // pred_check_branch
          %280 = sbr.rel (%p278) target = $region24
        $region23: #{tpu_custom_call.1} parent=11 // pred_region
          %s282 = ssub.s32 8192, 8192
          %283 = vsyncadd [#allocation14], %s282
          %s284 = sshll.u32 [#allocation13], 4
          %s285 = int_to_ptr.vmem [resolvable:$true] %s284
          %290 = dma.hbm_to_vmem [thread:$0]  %s3, 8192, %s285, [#allocation14], 512, 512, 32
        $region24: #{tpu_custom_call.1} parent=11 // pred_fallthru
          _
        // Predicated region
        $region25: #{tpu_custom_call.1} parent=11 // pred_check
          %p291 = pneg %p132
        $region26: #{tpu_custom_call.1} parent=11 // pred_check_branch
          %293 = sbr.rel (%p291) target = $region28
        $region27: #{tpu_custom_call.1} parent=11 // pred_region
          %s295 = ssub.s32 8192, 8192
          %296 = vsyncadd [#allocation14], %s295
          %s297 = sshll.u32 [#allocation15], 4
          %s298 = int_to_ptr.vmem [resolvable:$true] %s297
          %303 = dma.hbm_to_vmem [thread:$0]  %s4, 8192, %s298, [#allocation14], 512, 512, 32
        $region28: #{tpu_custom_call.1} parent=11 // pred_fallthru
          _
        // Predicated region
        $region29: #{tpu_custom_call.1} parent=11 // pred_check
          %p304 = pneg %p153
        $region30: #{tpu_custom_call.1} parent=11 // pred_check_branch
          %306 = sbr.rel (%p304) target = $region32
        $region31: #{tpu_custom_call.1} parent=11 // pred_region
          _
        $region32: #{tpu_custom_call.1} parent=11 // pred_fallthru
          _
        // Predicated region
        $region33: #{tpu_custom_call.1} parent=11 // pred_check
          %p307 = pneg %p174
        $region34: #{tpu_custom_call.1} parent=11 // pred_check_branch
          %309 = sbr.rel (%p307) target = $region36
        $region35: #{tpu_custom_call.1} parent=11 // pred_region
          _
        $region36: #{tpu_custom_call.1} parent=11 // pred_fallthru
          _
        // Predicated region
        $region37: #{tpu_custom_call.1} parent=11 // pred_check
          %p310 = pneg %p195
        $region38: #{tpu_custom_call.1} parent=11 // pred_check_branch
          %312 = sbr.rel (%p310) target = $region40
        $region39: #{tpu_custom_call.1} parent=11 // pred_region
          %s314 = ssub.s32 2048, 2048
          %315 = vsyncadd [#allocation17], %s314
          %s316 = sshll.u32 [#allocation16], 4
          %s317 = int_to_ptr.vmem [resolvable:$true] %s316
          %322 = dma.hbm_to_vmem [thread:$0]  %s7, 2048, %s317, [#allocation17], 128, 128, 8
        $region40: #{tpu_custom_call.1} parent=11 // pred_fallthru
          _
        // Predicated region
        $region41: #{tpu_custom_call.1} parent=11 // pred_check
          %p323 = pneg %p216
        $region42: #{tpu_custom_call.1} parent=11 // pred_check_branch
          %325 = sbr.rel (%p323) target = $region44
        $region43: #{tpu_custom_call.1} parent=11 // pred_region
          _
        $region44: #{tpu_custom_call.1} parent=11 // pred_fallthru
          _
      $region12: #{tpu_custom_call.1} parent=5 // pred_fallthru
        _
      %p326 = scmp.lt.s32.totalorder %s22, 3
      // Predicated region
      $region45: #{tpu_custom_call.1} parent=5 // pred_check
        %p327 = pneg %p326
      $region46: #{tpu_custom_call.1} parent=5 // pred_check_branch
        %329 = sbr.rel (%p327) target = $region48
      $region47: #{tpu_custom_call.1} parent=5 // pred_region
        // Predicated region
        $region49: #{tpu_custom_call.1} parent=47 // pred_check
          %p330 = pneg %p42
        $region50: #{tpu_custom_call.1} parent=47 // pred_check_branch
          %332 = sbr.rel (%p330) target = $region52
        $region51: #{tpu_custom_call.1} parent=47 // pred_region
          %s333 = sand.u32 %s32, 1
          %s334 = scalar_lea.sflag [#allocation8], %s333
          %s335 = sand.u32 %s32, 1
          %s336 = smul.addr %s335, 24
          %s337 = scalar_lea.vmem [#allocation7], %s336
          %s338 = smul.u32 3, %s22
          %s340 = ssub.s32 384, 384
          %341 = vsyncadd %s334, %s340
          %s342 = smul.addr %s338, 128
          %s343 = scalar_lea.hbm %s0, %s342
          %s344 = sshll.u32 %s337, 4
          %s345 = int_to_ptr.vmem [resolvable:$true] %s344
          %350 = dma.hbm_to_vmem [thread:$0]  %s343, 384, %s345, %s334, 128, 128, 8
        $region52: #{tpu_custom_call.1} parent=47 // pred_fallthru
          _
      $region48: #{tpu_custom_call.1} parent=5 // pred_fallthru
        _
      %p351 = scmp.le.s32.totalorder 1, %s22
      %p352 = scmp.lt.s32.totalorder %s22, 4
      %p353 = pnand %p351, %p352
      %p354 = pneg %p353
      // Predicated region
      $region53: #{tpu_custom_call.1} parent=5 // pred_check
        _
      $region54: #{tpu_custom_call.1} parent=5 // pred_check_branch
        %356 = sbr.rel (%p353) target = $region56
      $region55: #{tpu_custom_call.1} parent=5 // pred_region
        %s357 = ssub.s32 %s22, 1
        %s358 = sand.u32 %s35, 1
        %s359 = scalar_lea.sflag [#allocation8], %s358
        %s360 = sand.u32 %s35, 1
        %s361 = smul.addr %s360, 24
        %s362 = scalar_lea.vmem [#allocation7], %s361
        // Predicated region
        $region57: #{tpu_custom_call.1} parent=55 // pred_check
          %p363 = pneg %p48
        $region58: #{tpu_custom_call.1} parent=55 // pred_check_branch
          %365 = sbr.rel (%p363) target = $region60
        $region59: #{tpu_custom_call.1} parent=55 // pred_region
          %366 = dma.done %s359, 384
        $region60: #{tpu_custom_call.1} parent=55 // pred_fallthru
          _
        // Predicated region
        $region61: #{tpu_custom_call.1} parent=55 // pred_check
          %p367 = pneg %p69
        $region62: #{tpu_custom_call.1} parent=55 // pred_check_branch
          %369 = sbr.rel (%p367) target = $region64
        $region63: #{tpu_custom_call.1} parent=55 // pred_region
          %370 = dma.done [#allocation11], 8192
        $region64: #{tpu_custom_call.1} parent=55 // pred_fallthru
          _
        // Predicated region
        $region65: #{tpu_custom_call.1} parent=55 // pred_check
          %p371 = pneg %p90
        $region66: #{tpu_custom_call.1} parent=55 // pred_check_branch
          %373 = sbr.rel (%p371) target = $region68
        $region67: #{tpu_custom_call.1} parent=55 // pred_region
          %374 = dma.done [#allocation11], 8192
        $region68: #{tpu_custom_call.1} parent=55 // pred_fallthru
          _
        // Predicated region
        $region69: #{tpu_custom_call.1} parent=55 // pred_check
          %p375 = pneg %p111
        $region70: #{tpu_custom_call.1} parent=55 // pred_check_branch
          %377 = sbr.rel (%p375) target = $region72
        $region71: #{tpu_custom_call.1} parent=55 // pred_region
          %378 = dma.done [#allocation14], 8192
        $region72: #{tpu_custom_call.1} parent=55 // pred_fallthru
          _
        // Predicated region
        $region73: #{tpu_custom_call.1} parent=55 // pred_check
          %p379 = pneg %p132
        $region74: #{tpu_custom_call.1} parent=55 // pred_check_branch
          %381 = sbr.rel (%p379) target = $region76
        $region75: #{tpu_custom_call.1} parent=55 // pred_region
          %382 = dma.done [#allocation14], 8192
        $region76: #{tpu_custom_call.1} parent=55 // pred_fallthru
          _
        // Predicated region
        $region77: #{tpu_custom_call.1} parent=55 // pred_check
          %p383 = pneg %p195
        $region78: #{tpu_custom_call.1} parent=55 // pred_check_branch
          %385 = sbr.rel (%p383) target = $region80
        $region79: #{tpu_custom_call.1} parent=55 // pred_region
          %386 = dma.done [#allocation17], 2048
        $region80: #{tpu_custom_call.1} parent=55 // pred_fallthru
          _
        %s387 = sand.u32 %s35, 1
        %s388 = scalar_lea.sflag [#allocation8], %s387
        %s389 = sand.u32 %s35, 1
        %s390 = smul.addr %s389, 24
        %s391 = scalar_lea.vmem [#allocation7], %s390
        %p392 = pneg %p48
        %p393 = pneg %p45
        %p394 = pneg %p69
        %p395 = pneg %p66
        %p396 = pneg %p90
        %p397 = pneg %p87
        %p398 = pneg %p111
        %p399 = pneg %p108
        %p400 = pneg %p132
        %p401 = pneg %p129
        %p402 = pneg %p153
        %p403 = pneg %p150
        %p404 = pneg %p174
        %p405 = pneg %p171
        %p406 = pneg %p195
        %p407 = pneg %p192
        %p408 = pneg %p216
        %p409 = pneg %p213
        %p410 = pneg %p237
        %p411 = pneg %p234
        %s412 = smul.u32 3, %s27
        %p413 = scmp.eq.s32.totalorder %s27, 0
        // Predicated region
        $region81: #{tpu_custom_call.1} parent=55 // pred_check
          %p414 = pneg %p413
        $region82: #{tpu_custom_call.1} parent=55 // pred_check_branch
          %416 = sbr.rel (%p414) target = $region84
        $region83: #{tpu_custom_call.1} parent=55 // pred_region
          %417 = vst [vmem:[#allocation3] sm:$0xff] 0.0
          %418 = vst [vmem:[#allocation4] sm:$0xff] 0.0
          %419 = vst [vmem:[#allocation5] sm:$0xff] 0.0
          %420 = vst [vmem:[#allocation6] sm:$0xff] 0.0
        $region84: #{tpu_custom_call.1} parent=55 // pred_fallthru
          _
        %v421 = vld [vmem:[#allocation12] sm:$0xff]
        %v422 = vld [vmem:[#allocation12 + $0x8] sm:$0xff]
        %v423 = vld [vmem:[#allocation12 + $0x10] sm:$0xff]
        %v424 = vld [vmem:[#allocation12 + $0x18] sm:$0xff]
        %v425 = vld [vmem:[#allocation12 + $0x20] sm:$0xff]
        %v426 = vld [vmem:[#allocation12 + $0x28] sm:$0xff]
        %v427 = vld [vmem:[#allocation12 + $0x30] sm:$0xff]
        %v428 = vld [vmem:[#allocation12 + $0x38] sm:$0xff]
        %v429 = vld [vmem:[#allocation12 + $0x40] sm:$0xff]
        %v430 = vld [vmem:[#allocation12 + $0x48] sm:$0xff]
        %v431 = vld [vmem:[#allocation12 + $0x50] sm:$0xff]
        %v432 = vld [vmem:[#allocation12 + $0x58] sm:$0xff]
        %v433 = vld [vmem:[#allocation12 + $0x60] sm:$0xff]
        %v434 = vld [vmem:[#allocation12 + $0x68] sm:$0xff]
        %v435 = vld [vmem:[#allocation12 + $0x70] sm:$0xff]
        %v436 = vld [vmem:[#allocation12 + $0x78] sm:$0xff]
        %v437 = vld [vmem:[#allocation12 + $0x80] sm:$0xff]
        %v438 = vld [vmem:[#allocation12 + $0x88] sm:$0xff]
        %v439 = vld [vmem:[#allocation12 + $0x90] sm:$0xff]
        %v440 = vld [vmem:[#allocation12 + $0x98] sm:$0xff]
        %v441 = vld [vmem:[#allocation12 + $0xa0] sm:$0xff]
        %v442 = vld [vmem:[#allocation12 + $0xa8] sm:$0xff]
        %v443 = vld [vmem:[#allocation12 + $0xb0] sm:$0xff]
        %v444 = vld [vmem:[#allocation12 + $0xb8] sm:$0xff]
        %v445 = vld [vmem:[#allocation12 + $0xc0] sm:$0xff]
        %v446 = vld [vmem:[#allocation12 + $0xc8] sm:$0xff]
        %v447 = vld [vmem:[#allocation12 + $0xd0] sm:$0xff]
        %v448 = vld [vmem:[#allocation12 + $0xd8] sm:$0xff]
        %v449 = vld [vmem:[#allocation12 + $0xe0] sm:$0xff]
        %v450 = vld [vmem:[#allocation12 + $0xe8] sm:$0xff]
        %v451 = vld [vmem:[#allocation12 + $0xf0] sm:$0xff]
        %v452 = vld [vmem:[#allocation12 + $0xf8] sm:$0xff]
        %v453 = vld [vmem:[#allocation12 + $0x100] sm:$0xff]
        %v454 = vld [vmem:[#allocation12 + $0x108] sm:$0xff]
        %v455 = vld [vmem:[#allocation12 + $0x110] sm:$0xff]
        %v456 = vld [vmem:[#allocation12 + $0x118] sm:$0xff]
        %v457 = vld [vmem:[#allocation12 + $0x120] sm:$0xff]
        %v458 = vld [vmem:[#allocation12 + $0x128] sm:$0xff]
        %v459 = vld [vmem:[#allocation12 + $0x130] sm:$0xff]
        %v460 = vld [vmem:[#allocation12 + $0x138] sm:$0xff]
        %v461 = vld [vmem:[#allocation12 + $0x140] sm:$0xff]
        %v462 = vld [vmem:[#allocation12 + $0x148] sm:$0xff]
        %v463 = vld [vmem:[#allocation12 + $0x150] sm:$0xff]
        %v464 = vld [vmem:[#allocation12 + $0x158] sm:$0xff]
        %v465 = vld [vmem:[#allocation12 + $0x160] sm:$0xff]
        %v466 = vld [vmem:[#allocation12 + $0x168] sm:$0xff]
        %v467 = vld [vmem:[#allocation12 + $0x170] sm:$0xff]
        %v468 = vld [vmem:[#allocation12 + $0x178] sm:$0xff]
        %v469 = vld [vmem:[#allocation12 + $0x180] sm:$0xff]
        %v470 = vld [vmem:[#allocation12 + $0x188] sm:$0xff]
        %v471 = vld [vmem:[#allocation12 + $0x190] sm:$0xff]
        %v472 = vld [vmem:[#allocation12 + $0x198] sm:$0xff]
        %v473 = vld [vmem:[#allocation12 + $0x1a0] sm:$0xff]
        %v474 = vld [vmem:[#allocation12 + $0x1a8] sm:$0xff]
        %v475 = vld [vmem:[#allocation12 + $0x1b0] sm:$0xff]
        %v476 = vld [vmem:[#allocation12 + $0x1b8] sm:$0xff]
        %v477 = vld [vmem:[#allocation12 + $0x1c0] sm:$0xff]
        %v478 = vld [vmem:[#allocation12 + $0x1c8] sm:$0xff]
        %v479 = vld [vmem:[#allocation12 + $0x1d0] sm:$0xff]
        %v480 = vld [vmem:[#allocation12 + $0x1d8] sm:$0xff]
        %v481 = vld [vmem:[#allocation12 + $0x1e0] sm:$0xff]
        %v482 = vld [vmem:[#allocation12 + $0x1e8] sm:$0xff]
        %v483 = vld [vmem:[#allocation12 + $0x1f0] sm:$0xff]
        %v484 = vld [vmem:[#allocation12 + $0x1f8] sm:$0xff]
        %v485 = vld [vmem:[#allocation13] sm:$0xff]
        %v486 = vld [vmem:[#allocation13 + $0x8] sm:$0xff]
        %v487 = vld [vmem:[#allocation13 + $0x10] sm:$0xff]
        %v488 = vld [vmem:[#allocation13 + $0x18] sm:$0xff]
        %v489 = vld [vmem:[#allocation13 + $0x20] sm:$0xff]
        %v490 = vld [vmem:[#allocation13 + $0x28] sm:$0xff]
        %v491 = vld [vmem:[#allocation13 + $0x30] sm:$0xff]
        %v492 = vld [vmem:[#allocation13 + $0x38] sm:$0xff]
        %v493 = vld [vmem:[#allocation13 + $0x40] sm:$0xff]
        %v494 = vld [vmem:[#allocation13 + $0x48] sm:$0xff]
        %v495 = vld [vmem:[#allocation13 + $0x50] sm:$0xff]
        %v496 = vld [vmem:[#allocation13 + $0x58] sm:$0xff]
        %v497 = vld [vmem:[#allocation13 + $0x60] sm:$0xff]
        %v498 = vld [vmem:[#allocation13 + $0x68] sm:$0xff]
        %v499 = vld [vmem:[#allocation13 + $0x70] sm:$0xff]
        %v500 = vld [vmem:[#allocation13 + $0x78] sm:$0xff]
        %v501 = vld [vmem:[#allocation13 + $0x80] sm:$0xff]
        %v502 = vld [vmem:[#allocation13 + $0x88] sm:$0xff]
        %v503 = vld [vmem:[#allocation13 + $0x90] sm:$0xff]
        %v504 = vld [vmem:[#allocation13 + $0x98] sm:$0xff]
        %v505 = vld [vmem:[#allocation13 + $0xa0] sm:$0xff]
        %v506 = vld [vmem:[#allocation13 + $0xa8] sm:$0xff]
        %v507 = vld [vmem:[#allocation13 + $0xb0] sm:$0xff]
        %v508 = vld [vmem:[#allocation13 + $0xb8] sm:$0xff]
        %v509 = vld [vmem:[#allocation13 + $0xc0] sm:$0xff]
        %v510 = vld [vmem:[#allocation13 + $0xc8] sm:$0xff]
        %v511 = vld [vmem:[#allocation13 + $0xd0] sm:$0xff]
        %v512 = vld [vmem:[#allocation13 + $0xd8] sm:$0xff]
        %v513 = vld [vmem:[#allocation13 + $0xe0] sm:$0xff]
        %v514 = vld [vmem:[#allocation13 + $0xe8] sm:$0xff]
        %v515 = vld [vmem:[#allocation13 + $0xf0] sm:$0xff]
        %v516 = vld [vmem:[#allocation13 + $0xf8] sm:$0xff]
        %v517 = vld [vmem:[#allocation13 + $0x100] sm:$0xff]
        %v518 = vld [vmem:[#allocation13 + $0x108] sm:$0xff]
        %v519 = vld [vmem:[#allocation13 + $0x110] sm:$0xff]
        %v520 = vld [vmem:[#allocation13 + $0x118] sm:$0xff]
        %v521 = vld [vmem:[#allocation13 + $0x120] sm:$0xff]
        %v522 = vld [vmem:[#allocation13 + $0x128] sm:$0xff]
        %v523 = vld [vmem:[#allocation13 + $0x130] sm:$0xff]
        %v524 = vld [vmem:[#allocation13 + $0x138] sm:$0xff]
        %v525 = vld [vmem:[#allocation13 + $0x140] sm:$0xff]
        %v526 = vld [vmem:[#allocation13 + $0x148] sm:$0xff]
        %v527 = vld [vmem:[#allocation13 + $0x150] sm:$0xff]
        %v528 = vld [vmem:[#allocation13 + $0x158] sm:$0xff]
        %v529 = vld [vmem:[#allocation13 + $0x160] sm:$0xff]
        %v530 = vld [vmem:[#allocation13 + $0x168] sm:$0xff]
        %v531 = vld [vmem:[#allocation13 + $0x170] sm:$0xff]
        %v532 = vld [vmem:[#allocation13 + $0x178] sm:$0xff]
        %v533 = vld [vmem:[#allocation13 + $0x180] sm:$0xff]
        %v534 = vld [vmem:[#allocation13 + $0x188] sm:$0xff]
        %v535 = vld [vmem:[#allocation13 + $0x190] sm:$0xff]
        %v536 = vld [vmem:[#allocation13 + $0x198] sm:$0xff]
        %v537 = vld [vmem:[#allocation13 + $0x1a0] sm:$0xff]
        %v538 = vld [vmem:[#allocation13 + $0x1a8] sm:$0xff]
        %v539 = vld [vmem:[#allocation13 + $0x1b0] sm:$0xff]
        %v540 = vld [vmem:[#allocation13 + $0x1b8] sm:$0xff]
        %v541 = vld [vmem:[#allocation13 + $0x1c0] sm:$0xff]
        %v542 = vld [vmem:[#allocation13 + $0x1c8] sm:$0xff]
        %v543 = vld [vmem:[#allocation13 + $0x1d0] sm:$0xff]
        %v544 = vld [vmem:[#allocation13 + $0x1d8] sm:$0xff]
        %v545 = vld [vmem:[#allocation13 + $0x1e0] sm:$0xff]
        %v546 = vld [vmem:[#allocation13 + $0x1e8] sm:$0xff]
        %v547 = vld [vmem:[#allocation13 + $0x1f0] sm:$0xff]
        %v548 = vld [vmem:[#allocation13 + $0x1f8] sm:$0xff]
        %v549 = vld [vmem:[#allocation15] sm:$0xff]
        %v550 = vld [vmem:[#allocation15 + $0x8] sm:$0xff]
        %v551 = vld [vmem:[#allocation15 + $0x10] sm:$0xff]
        %v552 = vld [vmem:[#allocation15 + $0x18] sm:$0xff]
        %v553 = vld [vmem:[#allocation15 + $0x20] sm:$0xff]
        %v554 = vld [vmem:[#allocation15 + $0x28] sm:$0xff]
        %v555 = vld [vmem:[#allocation15 + $0x30] sm:$0xff]
        %v556 = vld [vmem:[#allocation15 + $0x38] sm:$0xff]
        %v557 = vld [vmem:[#allocation15 + $0x40] sm:$0xff]
        %v558 = vld [vmem:[#allocation15 + $0x48] sm:$0xff]
        %v559 = vld [vmem:[#allocation15 + $0x50] sm:$0xff]
        %v560 = vld [vmem:[#allocation15 + $0x58] sm:$0xff]
        %v561 = vld [vmem:[#allocation15 + $0x60] sm:$0xff]
        %v562 = vld [vmem:[#allocation15 + $0x68] sm:$0xff]
        %v563 = vld [vmem:[#allocation15 + $0x70] sm:$0xff]
        %v564 = vld [vmem:[#allocation15 + $0x78] sm:$0xff]
        %v565 = vld [vmem:[#allocation15 + $0x80] sm:$0xff]
        %v566 = vld [vmem:[#allocation15 + $0x88] sm:$0xff]
        %v567 = vld [vmem:[#allocation15 + $0x90] sm:$0xff]
        %v568 = vld [vmem:[#allocation15 + $0x98] sm:$0xff]
        %v569 = vld [vmem:[#allocation15 + $0xa0] sm:$0xff]
        %v570 = vld [vmem:[#allocation15 + $0xa8] sm:$0xff]
        %v571 = vld [vmem:[#allocation15 + $0xb0] sm:$0xff]
        %v572 = vld [vmem:[#allocation15 + $0xb8] sm:$0xff]
        %v573 = vld [vmem:[#allocation15 + $0xc0] sm:$0xff]
        %v574 = vld [vmem:[#allocation15 + $0xc8] sm:$0xff]
        %v575 = vld [vmem:[#allocation15 + $0xd0] sm:$0xff]
        %v576 = vld [vmem:[#allocation15 + $0xd8] sm:$0xff]
        %v577 = vld [vmem:[#allocation15 + $0xe0] sm:$0xff]
        %v578 = vld [vmem:[#allocation15 + $0xe8] sm:$0xff]
        %v579 = vld [vmem:[#allocation15 + $0xf0] sm:$0xff]
        %v580 = vld [vmem:[#allocation15 + $0xf8] sm:$0xff]
        %v581 = vld [vmem:[#allocation15 + $0x100] sm:$0xff]
        %v582 = vld [vmem:[#allocation15 + $0x108] sm:$0xff]
        %v583 = vld [vmem:[#allocation15 + $0x110] sm:$0xff]
        %v584 = vld [vmem:[#allocation15 + $0x118] sm:$0xff]
        %v585 = vld [vmem:[#allocation15 + $0x120] sm:$0xff]
        %v586 = vld [vmem:[#allocation15 + $0x128] sm:$0xff]
        %v587 = vld [vmem:[#allocation15 + $0x130] sm:$0xff]
        %v588 = vld [vmem:[#allocation15 + $0x138] sm:$0xff]
        %v589 = vld [vmem:[#allocation15 + $0x140] sm:$0xff]
        %v590 = vld [vmem:[#allocation15 + $0x148] sm:$0xff]
        %v591 = vld [vmem:[#allocation15 + $0x150] sm:$0xff]
        %v592 = vld [vmem:[#allocation15 + $0x158] sm:$0xff]
        %v593 = vld [vmem:[#allocation15 + $0x160] sm:$0xff]
        %v594 = vld [vmem:[#allocation15 + $0x168] sm:$0xff]
        %v595 = vld [vmem:[#allocation15 + $0x170] sm:$0xff]
        %v596 = vld [vmem:[#allocation15 + $0x178] sm:$0xff]
        %v597 = vld [vmem:[#allocation15 + $0x180] sm:$0xff]
        %v598 = vld [vmem:[#allocation15 + $0x188] sm:$0xff]
        %v599 = vld [vmem:[#allocation15 + $0x190] sm:$0xff]
        %v600 = vld [vmem:[#allocation15 + $0x198] sm:$0xff]
        %v601 = vld [vmem:[#allocation15 + $0x1a0] sm:$0xff]
        %v602 = vld [vmem:[#allocation15 + $0x1a8] sm:$0xff]
        %v603 = vld [vmem:[#allocation15 + $0x1b0] sm:$0xff]
        %v604 = vld [vmem:[#allocation15 + $0x1b8] sm:$0xff]
        %v605 = vld [vmem:[#allocation15 + $0x1c0] sm:$0xff]
        %v606 = vld [vmem:[#allocation15 + $0x1c8] sm:$0xff]
        %v607 = vld [vmem:[#allocation15 + $0x1d0] sm:$0xff]
        %v608 = vld [vmem:[#allocation15 + $0x1d8] sm:$0xff]
        %v609 = vld [vmem:[#allocation15 + $0x1e0] sm:$0xff]
        %v610 = vld [vmem:[#allocation15 + $0x1e8] sm:$0xff]
        %v611 = vld [vmem:[#allocation15 + $0x1f0] sm:$0xff]
        %v612 = vld [vmem:[#allocation15 + $0x1f8] sm:$0xff]
        %v613 = vld [vmem:[%s6] sm:$0xf]
        %v615 = vlaneseq
        %v616 = vshrl.u32 %v615, 7
        %v617 = vsub.s32 0, %v616
        %v618 = vrot.slane %v613, %v617
        %v619 = vlaneseq
        %v620 = vshrl.u32 %v619, 7
        %v621 = vsub.s32 1, %v620
        %v622 = vrot.slane %v613, %v621
        %v623 = vlaneseq
        %v624 = vshrl.u32 %v623, 7
        %v625 = vsub.s32 2, %v624
        %v626 = vrot.slane %v613, %v625
        %v627 = vlaneseq
        %v628 = vshrl.u32 %v627, 7
        %v629 = vsub.s32 3, %v628
        %v630 = vrot.slane %v613, %v629
        %v635 = vld [vmem:[%s362] sm:$0xff]
        %v636 = vld [vmem:[%s362 + $0x8] sm:$0xff]
        %v637 = vld [vmem:[%s362 + $0x10] sm:$0xff]
        %v638 = vld [vmem:[#allocation10] sm:$0xff]
        %v639 = vld [vmem:[#allocation10 + $0x8] sm:$0xff]
        %v640 = vld [vmem:[#allocation10 + $0x10] sm:$0xff]
        %v641 = vld [vmem:[#allocation10 + $0x18] sm:$0xff]
        %v642 = vld [vmem:[#allocation10 + $0x20] sm:$0xff]
        %v643 = vld [vmem:[#allocation10 + $0x28] sm:$0xff]
        %v644 = vld [vmem:[#allocation10 + $0x30] sm:$0xff]
        %v645 = vld [vmem:[#allocation10 + $0x38] sm:$0xff]
        %v646 = vld [vmem:[#allocation10 + $0x40] sm:$0xff]
        %v647 = vld [vmem:[#allocation10 + $0x48] sm:$0xff]
        %v648 = vld [vmem:[#allocation10 + $0x50] sm:$0xff]
        %v649 = vld [vmem:[#allocation10 + $0x58] sm:$0xff]
        %v650 = vld [vmem:[#allocation10 + $0x60] sm:$0xff]
        %v651 = vld [vmem:[#allocation10 + $0x68] sm:$0xff]
        %v652 = vld [vmem:[#allocation10 + $0x70] sm:$0xff]
        %v653 = vld [vmem:[#allocation10 + $0x78] sm:$0xff]
        %v654 = vld [vmem:[#allocation10 + $0x80] sm:$0xff]
        %v655 = vld [vmem:[#allocation10 + $0x88] sm:$0xff]
        %v656 = vld [vmem:[#allocation10 + $0x90] sm:$0xff]
        %v657 = vld [vmem:[#allocation10 + $0x98] sm:$0xff]
        %v658 = vld [vmem:[#allocation10 + $0xa0] sm:$0xff]
        %v659 = vld [vmem:[#allocation10 + $0xa8] sm:$0xff]
        %v660 = vld [vmem:[#allocation10 + $0xb0] sm:$0xff]
        %v661 = vld [vmem:[#allocation10 + $0xb8] sm:$0xff]
        %v662 = vld [vmem:[#allocation10 + $0xc0] sm:$0xff]
        %v663 = vld [vmem:[#allocation10 + $0xc8] sm:$0xff]
        %v664 = vld [vmem:[#allocation10 + $0xd0] sm:$0xff]
        %v665 = vld [vmem:[#allocation10 + $0xd8] sm:$0xff]
        %v666 = vld [vmem:[#allocation10 + $0xe0] sm:$0xff]
        %v667 = vld [vmem:[#allocation10 + $0xe8] sm:$0xff]
        %v668 = vld [vmem:[#allocation10 + $0xf0] sm:$0xff]
        %v669 = vld [vmem:[#allocation10 + $0xf8] sm:$0xff]
        %v670 = vld [vmem:[#allocation10 + $0x100] sm:$0xff]
        %v671 = vld [vmem:[#allocation10 + $0x108] sm:$0xff]
        %v672 = vld [vmem:[#allocation10 + $0x110] sm:$0xff]
        %v673 = vld [vmem:[#allocation10 + $0x118] sm:$0xff]
        %v674 = vld [vmem:[#allocation10 + $0x120] sm:$0xff]
        %v675 = vld [vmem:[#allocation10 + $0x128] sm:$0xff]
        %v676 = vld [vmem:[#allocation10 + $0x130] sm:$0xff]
        %v677 = vld [vmem:[#allocation10 + $0x138] sm:$0xff]
        %v678 = vld [vmem:[#allocation10 + $0x140] sm:$0xff]
        %v679 = vld [vmem:[#allocation10 + $0x148] sm:$0xff]
        %v680 = vld [vmem:[#allocation10 + $0x150] sm:$0xff]
        %v681 = vld [vmem:[#allocation10 + $0x158] sm:$0xff]
        %v682 = vld [vmem:[#allocation10 + $0x160] sm:$0xff]
        %v683 = vld [vmem:[#allocation10 + $0x168] sm:$0xff]
        %v684 = vld [vmem:[#allocation10 + $0x170] sm:$0xff]
        %v685 = vld [vmem:[#allocation10 + $0x178] sm:$0xff]
        %v686 = vld [vmem:[#allocation10 + $0x180] sm:$0xff]
        %v687 = vld [vmem:[#allocation10 + $0x188] sm:$0xff]
        %v688 = vld [vmem:[#allocation10 + $0x190] sm:$0xff]
        %v689 = vld [vmem:[#allocation10 + $0x198] sm:$0xff]
        %v690 = vld [vmem:[#allocation10 + $0x1a0] sm:$0xff]
        %v691 = vld [vmem:[#allocation10 + $0x1a8] sm:$0xff]
        %v692 = vld [vmem:[#allocation10 + $0x1b0] sm:$0xff]
        %v693 = vld [vmem:[#allocation10 + $0x1b8] sm:$0xff]
        %v694 = vld [vmem:[#allocation10 + $0x1c0] sm:$0xff]
        %v695 = vld [vmem:[#allocation10 + $0x1c8] sm:$0xff]
        %v696 = vld [vmem:[#allocation10 + $0x1d0] sm:$0xff]
        %v697 = vld [vmem:[#allocation10 + $0x1d8] sm:$0xff]
        %v698 = vld [vmem:[#allocation10 + $0x1e0] sm:$0xff]
        %v699 = vld [vmem:[#allocation10 + $0x1e8] sm:$0xff]
        %v700 = vld [vmem:[#allocation10 + $0x1f0] sm:$0xff]
        %v701 = vld [vmem:[#allocation10 + $0x1f8] sm:$0xff]
        %v702 = vld [vmem:[%s5] sm:$0xf]
        %v704 = vlaneseq
        %v705 = vshrl.u32 %v704, 7
        %v706 = vsub.s32 0, %v705
        %v707 = vrot.slane %v702, %v706
        %v708 = vlaneseq
        %v709 = vshrl.u32 %v708, 7
        %v710 = vsub.s32 1, %v709
        %v711 = vrot.slane %v702, %v710
        %v712 = vlaneseq
        %v713 = vshrl.u32 %v712, 7
        %v714 = vsub.s32 2, %v713
        %v715 = vrot.slane %v702, %v714
        %v716 = vlaneseq
        %v717 = vshrl.u32 %v716, 7
        %v718 = vsub.s32 3, %v717
        %v719 = vrot.slane %v702, %v718
        %724 = vmatprep.subr.mxu0 %v639
        %725 = vmatpush1.msra.mxu0 %v638
        %726 = vmatprep.subr.mxu0 %v643
        %727 = vmatpush1.msra.mxu0 %v642
        %728 = vmatprep.subr.mxu0 %v647
        %729 = vmatpush1.msra.mxu0 %v646
        %730 = vmatprep.subr.mxu0 %v651
        %731 = vmatpush1.msra.mxu0 %v650
        %732 = vmatprep.subr.mxu0 %v655
        %733 = vmatpush1.msra.mxu0 %v654
        %734 = vmatprep.subr.mxu0 %v659
        %735 = vmatpush1.msra.mxu0 %v658
        %736 = vmatprep.subr.mxu0 %v663
        %737 = vmatpush1.msra.mxu0 %v662
        %738 = vmatprep.subr.mxu0 %v667
        %739 = vmatpush1.msra.mxu0 %v666
        %740 = vmatprep.subr.mxu0 %v671
        %741 = vmatpush1.msra.mxu0 %v670
        %742 = vmatprep.subr.mxu0 %v675
        %743 = vmatpush1.msra.mxu0 %v674
        %744 = vmatprep.subr.mxu0 %v679
        %745 = vmatpush1.msra.mxu0 %v678
        %746 = vmatprep.subr.mxu0 %v683
        %747 = vmatpush1.msra.mxu0 %v682
        %748 = vmatprep.subr.mxu0 %v687
        %749 = vmatpush1.msra.mxu0 %v686
        %750 = vmatprep.subr.mxu0 %v691
        %751 = vmatpush1.msra.mxu0 %v690
        %752 = vmatprep.subr.mxu0 %v695
        %753 = vmatpush1.msra.mxu0 %v694
        %754 = vmatprep.subr.mxu0 %v699
        %755 = vmatpush1.msra.mxu0 %v698
        %756 = vmatprep.subr.mxu0 0.0
        %757 = vmatpush1.msra.mxu0 0.0
        %758 = vmatprep.subr.mxu0 0.0
        %759 = vmatpush1.msra.mxu0 0.0
        %760 = vmatprep.subr.mxu0 0.0
        %761 = vmatpush1.msra.mxu0 0.0
        %762 = vmatprep.subr.mxu0 0.0
        %763 = vmatpush1.msra.mxu0 0.0
        %764 = vmatprep.subr.mxu0 0.0
        %765 = vmatpush1.msra.mxu0 0.0
        %766 = vmatprep.subr.mxu0 0.0
        %767 = vmatpush1.msra.mxu0 0.0
        %768 = vmatprep.subr.mxu0 0.0
        %769 = vmatpush1.msra.mxu0 0.0
        %770 = vmatprep.subr.mxu0 0.0
        %771 = vmatpush1.msra.mxu0 0.0
        %772 = vmatprep.subr.mxu0 0.0
        %773 = vmatpush1.msra.mxu0 0.0
        %774 = vmatprep.subr.mxu0 0.0
        %775 = vmatpush1.msra.mxu0 0.0
        %776 = vmatprep.subr.mxu0 0.0
        %777 = vmatpush1.msra.mxu0 0.0
        %778 = vmatprep.subr.mxu0 0.0
        %779 = vmatpush1.msra.mxu0 0.0
        %780 = vmatprep.subr.mxu0 0.0
        %781 = vmatpush1.msra.mxu0 0.0
        %782 = vmatprep.subr.mxu0 0.0
        %783 = vmatpush1.msra.mxu0 0.0
        %784 = vmatprep.subr.mxu0 0.0
        %785 = vmatpush1.msra.mxu0 0.0
        %786 = vmatprep.subr.mxu0 0.0
        %787 = vmatpush1.msra.mxu0 0.0
        %788 = vmatprep.mubr.f32.mxu0 0.0
        %789 = vmatmul.mubr.f32.gmra.mrb[0].mxu0 %v635
        %v790 = vpop.f32.mrb[0].mxu0
        %v791 = vadd.f32 %v707, %v790
        %v792 = vpop.f32.mrb[0].mxu0
        %v793 = vadd.f32 %v711, %v792
        %794 = vmatprep.mubr.f32.mxu0 0.0
        %795 = vmatmul.mubr.f32.gmra.mrb[0].mxu0 %v636
        %v796 = vpop.f32.mrb[0].mxu0
        %v797 = vadd.f32 %v707, %v796
        %v798 = vpop.f32.mrb[0].mxu0
        %v799 = vadd.f32 %v711, %v798
        %800 = vmatprep.mubr.f32.mxu0 0.0
        %801 = vmatmul.mubr.f32.gmra.mrb[0].mxu0 %v637
        %v802 = vpop.f32.mrb[0].mxu0
        %v803 = vadd.f32 %v707, %v802
        %v804 = vpop.f32.mrb[0].mxu0
        %v805 = vadd.f32 %v711, %v804
        %806 = vdwg.mxu0
        %807 = vmatprep.subr.mxu0 %v641
        %808 = vmatpush1.msra.mxu0 %v640
        %809 = vmatprep.subr.mxu0 %v645
        %810 = vmatpush1.msra.mxu0 %v644
        %811 = vmatprep.subr.mxu0 %v649
        %812 = vmatpush1.msra.mxu0 %v648
        %813 = vmatprep.subr.mxu0 %v653
        %814 = vmatpush1.msra.mxu0 %v652
        %815 = vmatprep.subr.mxu0 %v657
        %816 = vmatpush1.msra.mxu0 %v656
        %817 = vmatprep.subr.mxu0 %v661
        %818 = vmatpush1.msra.mxu0 %v660
        %819 = vmatprep.subr.mxu0 %v665
        %820 = vmatpush1.msra.mxu0 %v664
        %821 = vmatprep.subr.mxu0 %v669
        %822 = vmatpush1.msra.mxu0 %v668
        %823 = vmatprep.subr.mxu0 %v673
        %824 = vmatpush1.msra.mxu0 %v672
        %825 = vmatprep.subr.mxu0 %v677
        %826 = vmatpush1.msra.mxu0 %v676
        %827 = vmatprep.subr.mxu0 %v681
        %828 = vmatpush1.msra.mxu0 %v680
        %829 = vmatprep.subr.mxu0 %v685
        %830 = vmatpush1.msra.mxu0 %v684
        %831 = vmatprep.subr.mxu0 %v689
        %832 = vmatpush1.msra.mxu0 %v688
        %833 = vmatprep.subr.mxu0 %v693
        %834 = vmatpush1.msra.mxu0 %v692
        %835 = vmatprep.subr.mxu0 %v697
        %836 = vmatpush1.msra.mxu0 %v696
        %837 = vmatprep.subr.mxu0 %v701
        %838 = vmatpush1.msra.mxu0 %v700
        %839 = vmatprep.subr.mxu0 0.0
        %840 = vmatpush1.msra.mxu0 0.0
        %841 = vmatprep.subr.mxu0 0.0
        %842 = vmatpush1.msra.mxu0 0.0
        %843 = vmatprep.subr.mxu0 0.0
        %844 = vmatpush1.msra.mxu0 0.0
        %845 = vmatprep.subr.mxu0 0.0
        %846 = vmatpush1.msra.mxu0 0.0
        %847 = vmatprep.subr.mxu0 0.0
        %848 = vmatpush1.msra.mxu0 0.0
        %849 = vmatprep.subr.mxu0 0.0
        %850 = vmatpush1.msra.mxu0 0.0
        %851 = vmatprep.subr.mxu0 0.0
        %852 = vmatpush1.msra.mxu0 0.0
        %853 = vmatprep.subr.mxu0 0.0
        %854 = vmatpush1.msra.mxu0 0.0
        %855 = vmatprep.subr.mxu0 0.0
        %856 = vmatpush1.msra.mxu0 0.0
        %857 = vmatprep.subr.mxu0 0.0
        %858 = vmatpush1.msra.mxu0 0.0
        %859 = vmatprep.subr.mxu0 0.0
        %860 = vmatpush1.msra.mxu0 0.0
        %861 = vmatprep.subr.mxu0 0.0
        %862 = vmatpush1.msra.mxu0 0.0
        %863 = vmatprep.subr.mxu0 0.0
        %864 = vmatpush1.msra.mxu0 0.0
        %865 = vmatprep.subr.mxu0 0.0
        %866 = vmatpush1.msra.mxu0 0.0
        %867 = vmatprep.subr.mxu0 0.0
        %868 = vmatpush1.msra.mxu0 0.0
        %869 = vmatprep.subr.mxu0 0.0
        %870 = vmatpush1.msra.mxu0 0.0
        %871 = vmatprep.mubr.f32.mxu0 0.0
        %872 = vmatmul.mubr.f32.gmra.mrb[0].mxu0 %v635
        %v873 = vpop.f32.mrb[0].mxu0
        %v874 = vadd.f32 %v715, %v873
        %v875 = vpop.f32.mrb[0].mxu0
        %v876 = vadd.f32 %v719, %v875
        %877 = vmatprep.mubr.f32.mxu0 0.0
        %878 = vmatmul.mubr.f32.gmra.mrb[0].mxu0 %v636
        %v879 = vpop.f32.mrb[0].mxu0
        %v880 = vadd.f32 %v715, %v879
        %v881 = vpop.f32.mrb[0].mxu0
        %v882 = vadd.f32 %v719, %v881
        %883 = vmatprep.mubr.f32.mxu0 0.0
        %884 = vmatmul.mubr.f32.gmra.mrb[0].mxu0 %v637
        %v885 = vpop.f32.mrb[0].mxu0
        %v886 = vadd.f32 %v715, %v885
        %v887 = vpop.f32.mrb[0].mxu0
        %v888 = vadd.f32 %v719, %v887
        %889 = vdwg.mxu0
        %890 = vst [vmem:[#allocation2] sm:$0xff] %v791
        %891 = vst [vmem:[#allocation2 + $0x8] sm:$0xff] %v793
        %892 = vst [vmem:[#allocation2 + $0x10] sm:$0xff] %v874
        %893 = vst [vmem:[#allocation2 + $0x18] sm:$0xff] %v876
        %894 = vst [vmem:[#allocation2 + $0x20] sm:$0xff] %v797
        %895 = vst [vmem:[#allocation2 + $0x28] sm:$0xff] %v799
        %896 = vst [vmem:[#allocation2 + $0x30] sm:$0xff] %v880
        %897 = vst [vmem:[#allocation2 + $0x38] sm:$0xff] %v882
        %898 = vst [vmem:[#allocation2 + $0x40] sm:$0xff] %v803
        %899 = vst [vmem:[#allocation2 + $0x48] sm:$0xff] %v805
        %900 = vst [vmem:[#allocation2 + $0x50] sm:$0xff] %v886
        %901 = vst [vmem:[#allocation2 + $0x58] sm:$0xff] %v888
        %s902 = smul.u32 %s27, 3
        %v903 = vld [vmem:[#allocation3] sm:$0xff]
        %v904 = vld [vmem:[#allocation4] sm:$0xff]
        %v905 = vld [vmem:[#allocation5] sm:$0xff]
        %v906 = vld [vmem:[#allocation6] sm:$0xff]
        %907 = vmatprep.subr.mxu0 %v550
        %908 = vmatpush1.msra.mxu0 %v549
        %909 = vmatprep.subr.mxu0 %v554
        %910 = vmatpush1.msra.mxu0 %v553
        %911 = vmatprep.subr.mxu0 %v558
        %912 = vmatpush1.msra.mxu0 %v557
        %913 = vmatprep.subr.mxu0 %v562
        %914 = vmatpush1.msra.mxu0 %v561
        %915 = vmatprep.subr.mxu0 %v566
        %916 = vmatpush1.msra.mxu0 %v565
        %917 = vmatprep.subr.mxu0 %v570
        %918 = vmatpush1.msra.mxu0 %v569
        %919 = vmatprep.subr.mxu0 %v574
        %920 = vmatpush1.msra.mxu0 %v573
        %921 = vmatprep.subr.mxu0 %v578
        %922 = vmatpush1.msra.mxu0 %v577
        %923 = vmatprep.subr.mxu0 %v582
        %924 = vmatpush1.msra.mxu0 %v581
        %925 = vmatprep.subr.mxu0 %v586
        %926 = vmatpush1.msra.mxu0 %v585
        %927 = vmatprep.subr.mxu0 %v590
        %928 = vmatpush1.msra.mxu0 %v589
        %929 = vmatprep.subr.mxu0 %v594
        %930 = vmatpush1.msra.mxu0 %v593
        %931 = vmatprep.subr.mxu0 %v598
        %932 = vmatpush1.msra.mxu0 %v597
        %933 = vmatprep.subr.mxu0 %v602
        %934 = vmatpush1.msra.mxu0 %v601
        %935 = vmatprep.subr.mxu0 %v606
        %936 = vmatpush1.msra.mxu0 %v605
        %937 = vmatprep.subr.mxu0 %v610
        %938 = vmatpush1.msra.mxu0 %v609
        %939 = vmatprep.subr.mxu0 0.0
        %940 = vmatpush1.msra.mxu0 0.0
        %941 = vmatprep.subr.mxu0 0.0
        %942 = vmatpush1.msra.mxu0 0.0
        %943 = vmatprep.subr.mxu0 0.0
        %944 = vmatpush1.msra.mxu0 0.0
        %945 = vmatprep.subr.mxu0 0.0
        %946 = vmatpush1.msra.mxu0 0.0
        %947 = vmatprep.subr.mxu0 0.0
        %948 = vmatpush1.msra.mxu0 0.0
        %949 = vmatprep.subr.mxu0 0.0
        %950 = vmatpush1.msra.mxu0 0.0
        %951 = vmatprep.subr.mxu0 0.0
        %952 = vmatpush1.msra.mxu0 0.0
        %953 = vmatprep.subr.mxu0 0.0
        %954 = vmatpush1.msra.mxu0 0.0
        %955 = vmatprep.subr.mxu0 0.0
        %956 = vmatpush1.msra.mxu0 0.0
        %957 = vmatprep.subr.mxu0 0.0
        %958 = vmatpush1.msra.mxu0 0.0
        %959 = vmatprep.subr.mxu0 0.0
        %960 = vmatpush1.msra.mxu0 0.0
        %961 = vmatprep.subr.mxu0 0.0
        %962 = vmatpush1.msra.mxu0 0.0
        %963 = vmatprep.subr.mxu0 0.0
        %964 = vmatpush1.msra.mxu0 0.0
        %965 = vmatprep.subr.mxu0 0.0
        %966 = vmatpush1.msra.mxu0 0.0
        %967 = vmatprep.subr.mxu0 0.0
        %968 = vmatpush1.msra.mxu0 0.0
        %969 = vmatprep.subr.mxu0 0.0
        %970 = vmatpush1.msra.mxu0 0.0
        %971 = vmatprep.mubr.f32.mxu0 0.0
        %972 = vmatmul.mubr.f32.gmra.mrb[0].mxu0 %v905
        %v973 = vpop.f32.mrb[0].mxu0
        %v974 = vadd.f32 0.0, %v973
        %v975 = vpop.f32.mrb[0].mxu0
        %v976 = vadd.f32 0.0, %v975
        %977 = vdwg.mxu0
        %978 = vmatprep.subr.mxu0 %v552
        %979 = vmatpush1.msra.mxu0 %v551
        %980 = vmatprep.subr.mxu0 %v556
        %981 = vmatpush1.msra.mxu0 %v555
        %982 = vmatprep.subr.mxu0 %v560
        %983 = vmatpush1.msra.mxu0 %v559
        %984 = vmatprep.subr.mxu0 %v564
        %985 = vmatpush1.msra.mxu0 %v563
        %986 = vmatprep.subr.mxu0 %v568
        %987 = vmatpush1.msra.mxu0 %v567
        %988 = vmatprep.subr.mxu0 %v572
        %989 = vmatpush1.msra.mxu0 %v571
        %990 = vmatprep.subr.mxu0 %v576
        %991 = vmatpush1.msra.mxu0 %v575
        %992 = vmatprep.subr.mxu0 %v580
        %993 = vmatpush1.msra.mxu0 %v579
        %994 = vmatprep.subr.mxu0 %v584
        %995 = vmatpush1.msra.mxu0 %v583
        %996 = vmatprep.subr.mxu0 %v588
        %997 = vmatpush1.msra.mxu0 %v587
        %998 = vmatprep.subr.mxu0 %v592
        %999 = vmatpush1.msra.mxu0 %v591
        %1000 = vmatprep.subr.mxu0 %v596
        %1001 = vmatpush1.msra.mxu0 %v595
        %1002 = vmatprep.subr.mxu0 %v600
        %1003 = vmatpush1.msra.mxu0 %v599
        %1004 = vmatprep.subr.mxu0 %v604
        %1005 = vmatpush1.msra.mxu0 %v603
        %1006 = vmatprep.subr.mxu0 %v608
        %1007 = vmatpush1.msra.mxu0 %v607
        %1008 = vmatprep.subr.mxu0 %v612
        %1009 = vmatpush1.msra.mxu0 %v611
        %1010 = vmatprep.subr.mxu0 0.0
        %1011 = vmatpush1.msra.mxu0 0.0
        %1012 = vmatprep.subr.mxu0 0.0
        %1013 = vmatpush1.msra.mxu0 0.0
        %1014 = vmatprep.subr.mxu0 0.0
        %1015 = vmatpush1.msra.mxu0 0.0
        %1016 = vmatprep.subr.mxu0 0.0
        %1017 = vmatpush1.msra.mxu0 0.0
        %1018 = vmatprep.subr.mxu0 0.0
        %1019 = vmatpush1.msra.mxu0 0.0
        %1020 = vmatprep.subr.mxu0 0.0
        %1021 = vmatpush1.msra.mxu0 0.0
        %1022 = vmatprep.subr.mxu0 0.0
        %1023 = vmatpush1.msra.mxu0 0.0
        %1024 = vmatprep.subr.mxu0 0.0
        %1025 = vmatpush1.msra.mxu0 0.0
        %1026 = vmatprep.subr.mxu0 0.0
        %1027 = vmatpush1.msra.mxu0 0.0
        %1028 = vmatprep.subr.mxu0 0.0
        %1029 = vmatpush1.msra.mxu0 0.0
        %1030 = vmatprep.subr.mxu0 0.0
        %1031 = vmatpush1.msra.mxu0 0.0
        %1032 = vmatprep.subr.mxu0 0.0
        %1033 = vmatpush1.msra.mxu0 0.0
        %1034 = vmatprep.subr.mxu0 0.0
        %1035 = vmatpush1.msra.mxu0 0.0
        %1036 = vmatprep.subr.mxu0 0.0
        %1037 = vmatpush1.msra.mxu0 0.0
        %1038 = vmatprep.subr.mxu0 0.0
        %1039 = vmatpush1.msra.mxu0 0.0
        %1040 = vmatprep.subr.mxu0 0.0
        %1041 = vmatpush1.msra.mxu0 0.0
        %1042 = vmatprep.mubr.f32.mxu0 0.0
        %1043 = vmatmul.mubr.f32.gmra.mrb[0].mxu0 %v905
        %v1044 = vpop.f32.mrb[0].mxu0
        %v1045 = vadd.f32 0.0, %v1044
        %v1046 = vpop.f32.mrb[0].mxu0
        %v1047 = vadd.f32 0.0, %v1046
        %1048 = vdwg.mxu0
        %1049 = vmatprep.subr.mxu0 %v486
        %1050 = vmatpush1.msra.mxu0 %v485
        %1051 = vmatprep.subr.mxu0 %v490
        %1052 = vmatpush1.msra.mxu0 %v489
        %1053 = vmatprep.subr.mxu0 %v494
        %1054 = vmatpush1.msra.mxu0 %v493
        %1055 = vmatprep.subr.mxu0 %v498
        %1056 = vmatpush1.msra.mxu0 %v497
        %1057 = vmatprep.subr.mxu0 %v502
        %1058 = vmatpush1.msra.mxu0 %v501
        %1059 = vmatprep.subr.mxu0 %v506
        %1060 = vmatpush1.msra.mxu0 %v505
        %1061 = vmatprep.subr.mxu0 %v510
        %1062 = vmatpush1.msra.mxu0 %v509
        %1063 = vmatprep.subr.mxu0 %v514
        %1064 = vmatpush1.msra.mxu0 %v513
        %1065 = vmatprep.subr.mxu0 %v518
        %1066 = vmatpush1.msra.mxu0 %v517
        %1067 = vmatprep.subr.mxu0 %v522
        %1068 = vmatpush1.msra.mxu0 %v521
        %1069 = vmatprep.subr.mxu0 %v526
        %1070 = vmatpush1.msra.mxu0 %v525
        %1071 = vmatprep.subr.mxu0 %v530
        %1072 = vmatpush1.msra.mxu0 %v529
        %1073 = vmatprep.subr.mxu0 %v534
        %1074 = vmatpush1.msra.mxu0 %v533
        %1075 = vmatprep.subr.mxu0 %v538
        %1076 = vmatpush1.msra.mxu0 %v537
        %1077 = vmatprep.subr.mxu0 %v542
        %1078 = vmatpush1.msra.mxu0 %v541
        %1079 = vmatprep.subr.mxu0 %v546
        %1080 = vmatpush1.msra.mxu0 %v545
        %1081 = vmatprep.subr.mxu0 0.0
        %1082 = vmatpush1.msra.mxu0 0.0
        %1083 = vmatprep.subr.mxu0 0.0
        %1084 = vmatpush1.msra.mxu0 0.0
        %1085 = vmatprep.subr.mxu0 0.0
        %1086 = vmatpush1.msra.mxu0 0.0
        %1087 = vmatprep.subr.mxu0 0.0
        %1088 = vmatpush1.msra.mxu0 0.0
        %1089 = vmatprep.subr.mxu0 0.0
        %1090 = vmatpush1.msra.mxu0 0.0
        %1091 = vmatprep.subr.mxu0 0.0
        %1092 = vmatpush1.msra.mxu0 0.0
        %1093 = vmatprep.subr.mxu0 0.0
        %1094 = vmatpush1.msra.mxu0 0.0
        %1095 = vmatprep.subr.mxu0 0.0
        %1096 = vmatpush1.msra.mxu0 0.0
        %1097 = vmatprep.subr.mxu0 0.0
        %1098 = vmatpush1.msra.mxu0 0.0
        %1099 = vmatprep.subr.mxu0 0.0
        %1100 = vmatpush1.msra.mxu0 0.0
        %1101 = vmatprep.subr.mxu0 0.0
        %1102 = vmatpush1.msra.mxu0 0.0
        %1103 = vmatprep.subr.mxu0 0.0
        %1104 = vmatpush1.msra.mxu0 0.0
        %1105 = vmatprep.subr.mxu0 0.0
        %1106 = vmatpush1.msra.mxu0 0.0
        %1107 = vmatprep.subr.mxu0 0.0
        %1108 = vmatpush1.msra.mxu0 0.0
        %1109 = vmatprep.subr.mxu0 0.0
        %1110 = vmatpush1.msra.mxu0 0.0
        %1111 = vmatprep.subr.mxu0 0.0
        %1112 = vmatpush1.msra.mxu0 0.0
        %1113 = vmatprep.mubr.f32.mxu0 0.0
        %1114 = vmatmul.mubr.f32.gmra.mrb[0].mxu0 %v903
        %v1115 = vpop.f32.mrb[0].mxu0
        %v1116 = vadd.f32 %v974, %v1115
        %v1117 = vpop.f32.mrb[0].mxu0
        %v1118 = vadd.f32 %v976, %v1117
        %1119 = vdwg.mxu0
        %1120 = vmatprep.subr.mxu0 %v488
        %1121 = vmatpush1.msra.mxu0 %v487
        %1122 = vmatprep.subr.mxu0 %v492
        %1123 = vmatpush1.msra.mxu0 %v491
        %1124 = vmatprep.subr.mxu0 %v496
        %1125 = vmatpush1.msra.mxu0 %v495
        %1126 = vmatprep.subr.mxu0 %v500
        %1127 = vmatpush1.msra.mxu0 %v499
        %1128 = vmatprep.subr.mxu0 %v504
        %1129 = vmatpush1.msra.mxu0 %v503
        %1130 = vmatprep.subr.mxu0 %v508
        %1131 = vmatpush1.msra.mxu0 %v507
        %1132 = vmatprep.subr.mxu0 %v512
        %1133 = vmatpush1.msra.mxu0 %v511
        %1134 = vmatprep.subr.mxu0 %v516
        %1135 = vmatpush1.msra.mxu0 %v515
        %1136 = vmatprep.subr.mxu0 %v520
        %1137 = vmatpush1.msra.mxu0 %v519
        %1138 = vmatprep.subr.mxu0 %v524
        %1139 = vmatpush1.msra.mxu0 %v523
        %1140 = vmatprep.subr.mxu0 %v528
        %1141 = vmatpush1.msra.mxu0 %v527
        %1142 = vmatprep.subr.mxu0 %v532
        %1143 = vmatpush1.msra.mxu0 %v531
        %1144 = vmatprep.subr.mxu0 %v536
        %1145 = vmatpush1.msra.mxu0 %v535
        %1146 = vmatprep.subr.mxu0 %v540
        %1147 = vmatpush1.msra.mxu0 %v539
        %1148 = vmatprep.subr.mxu0 %v544
        %1149 = vmatpush1.msra.mxu0 %v543
        %1150 = vmatprep.subr.mxu0 %v548
        %1151 = vmatpush1.msra.mxu0 %v547
        %1152 = vmatprep.subr.mxu0 0.0
        %1153 = vmatpush1.msra.mxu0 0.0
        %1154 = vmatprep.subr.mxu0 0.0
        %1155 = vmatpush1.msra.mxu0 0.0
        %1156 = vmatprep.subr.mxu0 0.0
        %1157 = vmatpush1.msra.mxu0 0.0
        %1158 = vmatprep.subr.mxu0 0.0
        %1159 = vmatpush1.msra.mxu0 0.0
        %1160 = vmatprep.subr.mxu0 0.0
        %1161 = vmatpush1.msra.mxu0 0.0
        %1162 = vmatprep.subr.mxu0 0.0
        %1163 = vmatpush1.msra.mxu0 0.0
        %1164 = vmatprep.subr.mxu0 0.0
        %1165 = vmatpush1.msra.mxu0 0.0
        %1166 = vmatprep.subr.mxu0 0.0
        %1167 = vmatpush1.msra.mxu0 0.0
        %1168 = vmatprep.subr.mxu0 0.0
        %1169 = vmatpush1.msra.mxu0 0.0
        %1170 = vmatprep.subr.mxu0 0.0
        %1171 = vmatpush1.msra.mxu0 0.0
        %1172 = vmatprep.subr.mxu0 0.0
        %1173 = vmatpush1.msra.mxu0 0.0
        %1174 = vmatprep.subr.mxu0 0.0
        %1175 = vmatpush1.msra.mxu0 0.0
        %1176 = vmatprep.subr.mxu0 0.0
        %1177 = vmatpush1.msra.mxu0 0.0
        %1178 = vmatprep.subr.mxu0 0.0
        %1179 = vmatpush1.msra.mxu0 0.0
        %1180 = vmatprep.subr.mxu0 0.0
        %1181 = vmatpush1.msra.mxu0 0.0
        %1182 = vmatprep.subr.mxu0 0.0
        %1183 = vmatpush1.msra.mxu0 0.0
        %1184 = vmatprep.mubr.f32.mxu0 0.0
        %1185 = vmatmul.mubr.f32.gmra.mrb[0].mxu0 %v903
        %v1186 = vpop.f32.mrb[0].mxu0
        %v1187 = vadd.f32 %v1045, %v1186
        %v1188 = vpop.f32.mrb[0].mxu0
        %v1189 = vadd.f32 %v1047, %v1188
        %1190 = vdwg.mxu0
        %v1191 = vadd.f32 %v1116, %v618
        %v1192 = vadd.f32 %v1118, %v622
        %v1193 = vadd.f32 %v1187, %v626
        %v1194 = vadd.f32 %v1189, %v630
        %v1195 = vld [vmem:[#allocation2] sm:$0xff]
        %v1196 = vld [vmem:[#allocation2 + $0x8] sm:$0xff]
        %v1197 = vld [vmem:[#allocation2 + $0x10] sm:$0xff]
        %v1198 = vld [vmem:[#allocation2 + $0x18] sm:$0xff]
        %1199 = vmatprep.subr.mxu0 %v422
        %1200 = vmatpush1.msra.mxu0 %v421
        %1201 = vmatprep.subr.mxu0 %v426
        %1202 = vmatpush1.msra.mxu0 %v425
        %1203 = vmatprep.subr.mxu0 %v430
        %1204 = vmatpush1.msra.mxu0 %v429
        %1205 = vmatprep.subr.mxu0 %v434
        %1206 = vmatpush1.msra.mxu0 %v433
        %1207 = vmatprep.subr.mxu0 %v438
        %1208 = vmatpush1.msra.mxu0 %v437
        %1209 = vmatprep.subr.mxu0 %v442
        %1210 = vmatpush1.msra.mxu0 %v441
        %1211 = vmatprep.subr.mxu0 %v446
        %1212 = vmatpush1.msra.mxu0 %v445
        %1213 = vmatprep.subr.mxu0 %v450
        %1214 = vmatpush1.msra.mxu0 %v449
        %1215 = vmatprep.subr.mxu0 %v454
        %1216 = vmatpush1.msra.mxu0 %v453
        %1217 = vmatprep.subr.mxu0 %v458
        %1218 = vmatpush1.msra.mxu0 %v457
        %1219 = vmatprep.subr.mxu0 %v462
        %1220 = vmatpush1.msra.mxu0 %v461
        %1221 = vmatprep.subr.mxu0 %v466
        %1222 = vmatpush1.msra.mxu0 %v465
        %1223 = vmatprep.subr.mxu0 %v470
        %1224 = vmatpush1.msra.mxu0 %v469
        %1225 = vmatprep.subr.mxu0 %v474
        %1226 = vmatpush1.msra.mxu0 %v473
        %1227 = vmatprep.subr.mxu0 %v478
        %1228 = vmatpush1.msra.mxu0 %v477
        %1229 = vmatprep.subr.mxu0 %v482
        %1230 = vmatpush1.msra.mxu0 %v481
        %1231 = vmatprep.subr.mxu0 0.0
        %1232 = vmatpush1.msra.mxu0 0.0
        %1233 = vmatprep.subr.mxu0 0.0
        %1234 = vmatpush1.msra.mxu0 0.0
        %1235 = vmatprep.subr.mxu0 0.0
        %1236 = vmatpush1.msra.mxu0 0.0
        %1237 = vmatprep.subr.mxu0 0.0
        %1238 = vmatpush1.msra.mxu0 0.0
        %1239 = vmatprep.subr.mxu0 0.0
        %1240 = vmatpush1.msra.mxu0 0.0
        %1241 = vmatprep.subr.mxu0 0.0
        %1242 = vmatpush1.msra.mxu0 0.0
        %1243 = vmatprep.subr.mxu0 0.0
        %1244 = vmatpush1.msra.mxu0 0.0
        %1245 = vmatprep.subr.mxu0 0.0
        %1246 = vmatpush1.msra.mxu0 0.0
        %1247 = vmatprep.subr.mxu0 0.0
        %1248 = vmatpush1.msra.mxu0 0.0
        %1249 = vmatprep.subr.mxu0 0.0
        %1250 = vmatpush1.msra.mxu0 0.0
        %1251 = vmatprep.subr.mxu0 0.0
        %1252 = vmatpush1.msra.mxu0 0.0
        %1253 = vmatprep.subr.mxu0 0.0
        %1254 = vmatpush1.msra.mxu0 0.0
        %1255 = vmatprep.subr.mxu0 0.0
        %1256 = vmatpush1.msra.mxu0 0.0
        %1257 = vmatprep.subr.mxu0 0.0
        %1258 = vmatpush1.msra.mxu0 0.0
        %1259 = vmatprep.subr.mxu0 0.0
        %1260 = vmatpush1.msra.mxu0 0.0
        %1261 = vmatprep.subr.mxu0 0.0
        %1262 = vmatpush1.msra.mxu0 0.0
        %1263 = vmatprep.mubr.f32.mxu0 0.0
        %1264 = vmatmul.mubr.f32.gmra.mrb[0].mxu0 %v903
        %v1265 = vpop.f32.mrb[0].mxu0
        %v1266 = vadd.f32 0.0, %v1265
        %v1267 = vpop.f32.mrb[0].mxu0
        %v1268 = vadd.f32 0.0, %v1267
        %1269 = vdwg.mxu0
        %1270 = vmatprep.subr.mxu0 %v424
        %1271 = vmatpush1.msra.mxu0 %v423
        %1272 = vmatprep.subr.mxu0 %v428
        %1273 = vmatpush1.msra.mxu0 %v427
        %1274 = vmatprep.subr.mxu0 %v432
        %1275 = vmatpush1.msra.mxu0 %v431
        %1276 = vmatprep.subr.mxu0 %v436
        %1277 = vmatpush1.msra.mxu0 %v435
        %1278 = vmatprep.subr.mxu0 %v440
        %1279 = vmatpush1.msra.mxu0 %v439
        %1280 = vmatprep.subr.mxu0 %v444
        %1281 = vmatpush1.msra.mxu0 %v443
        %1282 = vmatprep.subr.mxu0 %v448
        %1283 = vmatpush1.msra.mxu0 %v447
        %1284 = vmatprep.subr.mxu0 %v452
        %1285 = vmatpush1.msra.mxu0 %v451
        %1286 = vmatprep.subr.mxu0 %v456
        %1287 = vmatpush1.msra.mxu0 %v455
        %1288 = vmatprep.subr.mxu0 %v460
        %1289 = vmatpush1.msra.mxu0 %v459
        %1290 = vmatprep.subr.mxu0 %v464
        %1291 = vmatpush1.msra.mxu0 %v463
        %1292 = vmatprep.subr.mxu0 %v468
        %1293 = vmatpush1.msra.mxu0 %v467
        %1294 = vmatprep.subr.mxu0 %v472
        %1295 = vmatpush1.msra.mxu0 %v471
        %1296 = vmatprep.subr.mxu0 %v476
        %1297 = vmatpush1.msra.mxu0 %v475
        %1298 = vmatprep.subr.mxu0 %v480
        %1299 = vmatpush1.msra.mxu0 %v479
        %1300 = vmatprep.subr.mxu0 %v484
        %1301 = vmatpush1.msra.mxu0 %v483
        %1302 = vmatprep.subr.mxu0 0.0
        %1303 = vmatpush1.msra.mxu0 0.0
        %1304 = vmatprep.subr.mxu0 0.0
        %1305 = vmatpush1.msra.mxu0 0.0
        %1306 = vmatprep.subr.mxu0 0.0
        %1307 = vmatpush1.msra.mxu0 0.0
        %1308 = vmatprep.subr.mxu0 0.0
        %1309 = vmatpush1.msra.mxu0 0.0
        %1310 = vmatprep.subr.mxu0 0.0
        %1311 = vmatpush1.msra.mxu0 0.0
        %1312 = vmatprep.subr.mxu0 0.0
        %1313 = vmatpush1.msra.mxu0 0.0
        %1314 = vmatprep.subr.mxu0 0.0
        %1315 = vmatpush1.msra.mxu0 0.0
        %1316 = vmatprep.subr.mxu0 0.0
        %1317 = vmatpush1.msra.mxu0 0.0
        %1318 = vmatprep.subr.mxu0 0.0
        %1319 = vmatpush1.msra.mxu0 0.0
        %1320 = vmatprep.subr.mxu0 0.0
        %1321 = vmatpush1.msra.mxu0 0.0
        %1322 = vmatprep.subr.mxu0 0.0
        %1323 = vmatpush1.msra.mxu0 0.0
        %1324 = vmatprep.subr.mxu0 0.0
        %1325 = vmatpush1.msra.mxu0 0.0
        %1326 = vmatprep.subr.mxu0 0.0
        %1327 = vmatpush1.msra.mxu0 0.0
        %1328 = vmatprep.subr.mxu0 0.0
        %1329 = vmatpush1.msra.mxu0 0.0
        %1330 = vmatprep.subr.mxu0 0.0
        %1331 = vmatpush1.msra.mxu0 0.0
        %1332 = vmatprep.subr.mxu0 0.0
        %1333 = vmatpush1.msra.mxu0 0.0
        %1334 = vmatprep.mubr.f32.mxu0 0.0
        %1335 = vmatmul.mubr.f32.gmra.mrb[0].mxu0 %v903
        %v1336 = vpop.f32.mrb[0].mxu0
        %v1337 = vadd.f32 0.0, %v1336
        %v1338 = vpop.f32.mrb[0].mxu0
        %v1339 = vadd.f32 0.0, %v1338
        %1340 = vdwg.mxu0
        %v1341 = vadd.f32 %v1195, %v1266
        %v1342 = vadd.f32 %v1196, %v1268
        %v1343 = vadd.f32 %v1197, %v1337
        %v1344 = vadd.f32 %v1198, %v1339
        %v1345 = vxor.u32 %v1191, 2147483648
        %v1346 = vmul.f32 %v1345, 1.442695
        %v1347 = vpow.pop %v1346
        %v1348 = vadd.f32 %v1347, 1.0
        %v1349 = vrcp.pop %v1348
        %v1350 = vmul.f32 1.0, %v1349
        %v1351 = vxor.u32 %v1192, 2147483648
        %v1352 = vmul.f32 %v1351, 1.442695
        %v1353 = vpow.pop %v1352
        %v1354 = vadd.f32 %v1353, 1.0
        %v1355 = vrcp.pop %v1354
        %v1356 = vmul.f32 1.0, %v1355
        %v1357 = vtanh.pop %v1193
        %v1358 = vxor.u32 %v1194, 2147483648
        %v1359 = vmul.f32 %v1358, 1.442695
        %v1360 = vpow.pop %v1359
        %v1361 = vadd.f32 %v1360, 1.0
        %v1362 = vrcp.pop %v1361
        %v1363 = vmul.f32 1.0, %v1362
        %v1364 = vmul.f32 %v1356, %v906
        %v1365 = vmul.f32 %v1350, %v1357
        %v1366 = vadd.f32 %v1364, %v1365
        %v1367 = vtanh.pop %v1366
        %v1368 = vmul.f32 %v1363, %v1367
        %v1369 = vxor.u32 %v1341, 2147483648
        %v1370 = vmul.f32 %v1369, 1.442695
        %v1371 = vpow.pop %v1370
        %v1372 = vadd.f32 %v1371, 1.0
        %v1373 = vrcp.pop %v1372
        %v1374 = vmul.f32 1.0, %v1373
        %v1375 = vxor.u32 %v1342, 2147483648
        %v1376 = vmul.f32 %v1375, 1.442695
        %v1377 = vpow.pop %v1376
        %v1378 = vadd.f32 %v1377, 1.0
        %v1379 = vrcp.pop %v1378
        %v1380 = vmul.f32 1.0, %v1379
        %v1381 = vtanh.pop %v1343
        %v1382 = vxor.u32 %v1344, 2147483648
        %v1383 = vmul.f32 %v1382, 1.442695
        %v1384 = vpow.pop %v1383
        %v1385 = vadd.f32 %v1384, 1.0
        %v1386 = vrcp.pop %v1385
        %v1387 = vmul.f32 1.0, %v1386
        %v1388 = vmul.f32 %v1380, %v904
        %v1389 = vmul.f32 %v1374, %v1381
        %v1390 = vadd.f32 %v1388, %v1389
        %v1391 = vtanh.pop %v1390
        %v1392 = vmul.f32 %v1387, %v1391
        %p1393 = scmp.lt.s32.totalorder %s902, 8
        %p1394 = scmp.ge.s32.totalorder %s902, 1
        %p1395 = pnand %p1394, %p1393
        %p1396 = pneg %p1395
        %s1397 = scalar_select %p1393, 1, 0
        %v1398 = vstv %s1397
        %vm1399 = vcmp.eq.s32.totalorder %v1398, 1
        %v1400 = vsel %vm1399, %v1392, %v903
        %v1401 = vsel %vm1399, %v1390, %v904
        %s1402 = scalar_select %p1396, 1, 0
        %v1403 = vstv %s1402
        %vm1404 = vcmp.eq.s32.totalorder %v1403, 1
        %v1405 = vsel %vm1404, %v1368, %v905
        %v1406 = vsel %vm1404, %v1366, %v906
        %s1407 = sadd.s32 %s902, 1
        %1408 = vmatprep.subr.mxu0 %v550
        %1409 = vmatpush1.msra.mxu0 %v549
        %1410 = vmatprep.subr.mxu0 %v554
        %1411 = vmatpush1.msra.mxu0 %v553
        %1412 = vmatprep.subr.mxu0 %v558
        %1413 = vmatpush1.msra.mxu0 %v557
        %1414 = vmatprep.subr.mxu0 %v562
        %1415 = vmatpush1.msra.mxu0 %v561
        %1416 = vmatprep.subr.mxu0 %v566
        %1417 = vmatpush1.msra.mxu0 %v565
        %1418 = vmatprep.subr.mxu0 %v570
        %1419 = vmatpush1.msra.mxu0 %v569
        %1420 = vmatprep.subr.mxu0 %v574
        %1421 = vmatpush1.msra.mxu0 %v573
        %1422 = vmatprep.subr.mxu0 %v578
        %1423 = vmatpush1.msra.mxu0 %v577
        %1424 = vmatprep.subr.mxu0 %v582
        %1425 = vmatpush1.msra.mxu0 %v581
        %1426 = vmatprep.subr.mxu0 %v586
        %1427 = vmatpush1.msra.mxu0 %v585
        %1428 = vmatprep.subr.mxu0 %v590
        %1429 = vmatpush1.msra.mxu0 %v589
        %1430 = vmatprep.subr.mxu0 %v594
        %1431 = vmatpush1.msra.mxu0 %v593
        %1432 = vmatprep.subr.mxu0 %v598
        %1433 = vmatpush1.msra.mxu0 %v597
        %1434 = vmatprep.subr.mxu0 %v602
        %1435 = vmatpush1.msra.mxu0 %v601
        %1436 = vmatprep.subr.mxu0 %v606
        %1437 = vmatpush1.msra.mxu0 %v605
        %1438 = vmatprep.subr.mxu0 %v610
        %1439 = vmatpush1.msra.mxu0 %v609
        %1440 = vmatprep.subr.mxu0 0.0
        %1441 = vmatpush1.msra.mxu0 0.0
        %1442 = vmatprep.subr.mxu0 0.0
        %1443 = vmatpush1.msra.mxu0 0.0
        %1444 = vmatprep.subr.mxu0 0.0
        %1445 = vmatpush1.msra.mxu0 0.0
        %1446 = vmatprep.subr.mxu0 0.0
        %1447 = vmatpush1.msra.mxu0 0.0
        %1448 = vmatprep.subr.mxu0 0.0
        %1449 = vmatpush1.msra.mxu0 0.0
        %1450 = vmatprep.subr.mxu0 0.0
        %1451 = vmatpush1.msra.mxu0 0.0
        %1452 = vmatprep.subr.mxu0 0.0
        %1453 = vmatpush1.msra.mxu0 0.0
        %1454 = vmatprep.subr.mxu0 0.0
        %1455 = vmatpush1.msra.mxu0 0.0
        %1456 = vmatprep.subr.mxu0 0.0
        %1457 = vmatpush1.msra.mxu0 0.0
        %1458 = vmatprep.subr.mxu0 0.0
        %1459 = vmatpush1.msra.mxu0 0.0
        %1460 = vmatprep.subr.mxu0 0.0
        %1461 = vmatpush1.msra.mxu0 0.0
        %1462 = vmatprep.subr.mxu0 0.0
        %1463 = vmatpush1.msra.mxu0 0.0
        %1464 = vmatprep.subr.mxu0 0.0
        %1465 = vmatpush1.msra.mxu0 0.0
        %1466 = vmatprep.subr.mxu0 0.0
        %1467 = vmatpush1.msra.mxu0 0.0
        %1468 = vmatprep.subr.mxu0 0.0
        %1469 = vmatpush1.msra.mxu0 0.0
        %1470 = vmatprep.subr.mxu0 0.0
        %1471 = vmatpush1.msra.mxu0 0.0
        %1472 = vmatprep.mubr.f32.mxu0 0.0
        %1473 = vmatmul.mubr.f32.gmra.mrb[0].mxu0 %v1405
        %v1474 = vpop.f32.mrb[0].mxu0
        %v1475 = vadd.f32 0.0, %v1474
        %v1476 = vpop.f32.mrb[0].mxu0
        %v1477 = vadd.f32 0.0, %v1476
        %1478 = vdwg.mxu0
        %1479 = vmatprep.subr.mxu0 %v552
        %1480 = vmatpush1.msra.mxu0 %v551
        %1481 = vmatprep.subr.mxu0 %v556
        %1482 = vmatpush1.msra.mxu0 %v555
        %1483 = vmatprep.subr.mxu0 %v560
        %1484 = vmatpush1.msra.mxu0 %v559
        %1485 = vmatprep.subr.mxu0 %v564
        %1486 = vmatpush1.msra.mxu0 %v563
        %1487 = vmatprep.subr.mxu0 %v568
        %1488 = vmatpush1.msra.mxu0 %v567
        %1489 = vmatprep.subr.mxu0 %v572
        %1490 = vmatpush1.msra.mxu0 %v571
        %1491 = vmatprep.subr.mxu0 %v576
        %1492 = vmatpush1.msra.mxu0 %v575
        %1493 = vmatprep.subr.mxu0 %v580
        %1494 = vmatpush1.msra.mxu0 %v579
        %1495 = vmatprep.subr.mxu0 %v584
        %1496 = vmatpush1.msra.mxu0 %v583
        %1497 = vmatprep.subr.mxu0 %v588
        %1498 = vmatpush1.msra.mxu0 %v587
        %1499 = vmatprep.subr.mxu0 %v592
        %1500 = vmatpush1.msra.mxu0 %v591
        %1501 = vmatprep.subr.mxu0 %v596
        %1502 = vmatpush1.msra.mxu0 %v595
        %1503 = vmatprep.subr.mxu0 %v600
        %1504 = vmatpush1.msra.mxu0 %v599
        %1505 = vmatprep.subr.mxu0 %v604
        %1506 = vmatpush1.msra.mxu0 %v603
        %1507 = vmatprep.subr.mxu0 %v608
        %1508 = vmatpush1.msra.mxu0 %v607
        %1509 = vmatprep.subr.mxu0 %v612
        %1510 = vmatpush1.msra.mxu0 %v611
        %1511 = vmatprep.subr.mxu0 0.0
        %1512 = vmatpush1.msra.mxu0 0.0
        %1513 = vmatprep.subr.mxu0 0.0
        %1514 = vmatpush1.msra.mxu0 0.0
        %1515 = vmatprep.subr.mxu0 0.0
        %1516 = vmatpush1.msra.mxu0 0.0
        %1517 = vmatprep.subr.mxu0 0.0
        %1518 = vmatpush1.msra.mxu0 0.0
        %1519 = vmatprep.subr.mxu0 0.0
        %1520 = vmatpush1.msra.mxu0 0.0
        %1521 = vmatprep.subr.mxu0 0.0
        %1522 = vmatpush1.msra.mxu0 0.0
        %1523 = vmatprep.subr.mxu0 0.0
        %1524 = vmatpush1.msra.mxu0 0.0
        %1525 = vmatprep.subr.mxu0 0.0
        %1526 = vmatpush1.msra.mxu0 0.0
        %1527 = vmatprep.subr.mxu0 0.0
        %1528 = vmatpush1.msra.mxu0 0.0
        %1529 = vmatprep.subr.mxu0 0.0
        %1530 = vmatpush1.msra.mxu0 0.0
        %1531 = vmatprep.subr.mxu0 0.0
        %1532 = vmatpush1.msra.mxu0 0.0
        %1533 = vmatprep.subr.mxu0 0.0
        %1534 = vmatpush1.msra.mxu0 0.0
        %1535 = vmatprep.subr.mxu0 0.0
        %1536 = vmatpush1.msra.mxu0 0.0
        %1537 = vmatprep.subr.mxu0 0.0
        %1538 = vmatpush1.msra.mxu0 0.0
        %1539 = vmatprep.subr.mxu0 0.0
        %1540 = vmatpush1.msra.mxu0 0.0
        %1541 = vmatprep.subr.mxu0 0.0
        %1542 = vmatpush1.msra.mxu0 0.0
        %1543 = vmatprep.mubr.f32.mxu0 0.0
        %1544 = vmatmul.mubr.f32.gmra.mrb[0].mxu0 %v1405
        %v1545 = vpop.f32.mrb[0].mxu0
        %v1546 = vadd.f32 0.0, %v1545
        %v1547 = vpop.f32.mrb[0].mxu0
        %v1548 = vadd.f32 0.0, %v1547
        %1549 = vdwg.mxu0
        %1550 = vmatprep.subr.mxu0 %v486
        %1551 = vmatpush1.msra.mxu0 %v485
        %1552 = vmatprep.subr.mxu0 %v490
        %1553 = vmatpush1.msra.mxu0 %v489
        %1554 = vmatprep.subr.mxu0 %v494
        %1555 = vmatpush1.msra.mxu0 %v493
        %1556 = vmatprep.subr.mxu0 %v498
        %1557 = vmatpush1.msra.mxu0 %v497
        %1558 = vmatprep.subr.mxu0 %v502
        %1559 = vmatpush1.msra.mxu0 %v501
        %1560 = vmatprep.subr.mxu0 %v506
        %1561 = vmatpush1.msra.mxu0 %v505
        %1562 = vmatprep.subr.mxu0 %v510
        %1563 = vmatpush1.msra.mxu0 %v509
        %1564 = vmatprep.subr.mxu0 %v514
        %1565 = vmatpush1.msra.mxu0 %v513
        %1566 = vmatprep.subr.mxu0 %v518
        %1567 = vmatpush1.msra.mxu0 %v517
        %1568 = vmatprep.subr.mxu0 %v522
        %1569 = vmatpush1.msra.mxu0 %v521
        %1570 = vmatprep.subr.mxu0 %v526
        %1571 = vmatpush1.msra.mxu0 %v525
        %1572 = vmatprep.subr.mxu0 %v530
        %1573 = vmatpush1.msra.mxu0 %v529
        %1574 = vmatprep.subr.mxu0 %v534
        %1575 = vmatpush1.msra.mxu0 %v533
        %1576 = vmatprep.subr.mxu0 %v538
        %1577 = vmatpush1.msra.mxu0 %v537
        %1578 = vmatprep.subr.mxu0 %v542
        %1579 = vmatpush1.msra.mxu0 %v541
        %1580 = vmatprep.subr.mxu0 %v546
        %1581 = vmatpush1.msra.mxu0 %v545
        %1582 = vmatprep.subr.mxu0 0.0
        %1583 = vmatpush1.msra.mxu0 0.0
        %1584 = vmatprep.subr.mxu0 0.0
        %1585 = vmatpush1.msra.mxu0 0.0
        %1586 = vmatprep.subr.mxu0 0.0
        %1587 = vmatpush1.msra.mxu0 0.0
        %1588 = vmatprep.subr.mxu0 0.0
        %1589 = vmatpush1.msra.mxu0 0.0
        %1590 = vmatprep.subr.mxu0 0.0
        %1591 = vmatpush1.msra.mxu0 0.0
        %1592 = vmatprep.subr.mxu0 0.0
        %1593 = vmatpush1.msra.mxu0 0.0
        %1594 = vmatprep.subr.mxu0 0.0
        %1595 = vmatpush1.msra.mxu0 0.0
        %1596 = vmatprep.subr.mxu0 0.0
        %1597 = vmatpush1.msra.mxu0 0.0
        %1598 = vmatprep.subr.mxu0 0.0
        %1599 = vmatpush1.msra.mxu0 0.0
        %1600 = vmatprep.subr.mxu0 0.0
        %1601 = vmatpush1.msra.mxu0 0.0
        %1602 = vmatprep.subr.mxu0 0.0
        %1603 = vmatpush1.msra.mxu0 0.0
        %1604 = vmatprep.subr.mxu0 0.0
        %1605 = vmatpush1.msra.mxu0 0.0
        %1606 = vmatprep.subr.mxu0 0.0
        %1607 = vmatpush1.msra.mxu0 0.0
        %1608 = vmatprep.subr.mxu0 0.0
        %1609 = vmatpush1.msra.mxu0 0.0
        %1610 = vmatprep.subr.mxu0 0.0
        %1611 = vmatpush1.msra.mxu0 0.0
        %1612 = vmatprep.subr.mxu0 0.0
        %1613 = vmatpush1.msra.mxu0 0.0
        %1614 = vmatprep.mubr.f32.mxu0 0.0
        %1615 = vmatmul.mubr.f32.gmra.mrb[0].mxu0 %v1400
        %v1616 = vpop.f32.mrb[0].mxu0
        %v1617 = vadd.f32 %v1475, %v1616
        %v1618 = vpop.f32.mrb[0].mxu0
        %v1619 = vadd.f32 %v1477, %v1618
        %1620 = vdwg.mxu0
        %1621 = vmatprep.subr.mxu0 %v488
        %1622 = vmatpush1.msra.mxu0 %v487
        %1623 = vmatprep.subr.mxu0 %v492
        %1624 = vmatpush1.msra.mxu0 %v491
        %1625 = vmatprep.subr.mxu0 %v496
        %1626 = vmatpush1.msra.mxu0 %v495
        %1627 = vmatprep.subr.mxu0 %v500
        %1628 = vmatpush1.msra.mxu0 %v499
        %1629 = vmatprep.subr.mxu0 %v504
        %1630 = vmatpush1.msra.mxu0 %v503
        %1631 = vmatprep.subr.mxu0 %v508
        %1632 = vmatpush1.msra.mxu0 %v507
        %1633 = vmatprep.subr.mxu0 %v512
        %1634 = vmatpush1.msra.mxu0 %v511
        %1635 = vmatprep.subr.mxu0 %v516
        %1636 = vmatpush1.msra.mxu0 %v515
        %1637 = vmatprep.subr.mxu0 %v520
        %1638 = vmatpush1.msra.mxu0 %v519
        %1639 = vmatprep.subr.mxu0 %v524
        %1640 = vmatpush1.msra.mxu0 %v523
        %1641 = vmatprep.subr.mxu0 %v528
        %1642 = vmatpush1.msra.mxu0 %v527
        %1643 = vmatprep.subr.mxu0 %v532
        %1644 = vmatpush1.msra.mxu0 %v531
        %1645 = vmatprep.subr.mxu0 %v536
        %1646 = vmatpush1.msra.mxu0 %v535
        %1647 = vmatprep.subr.mxu0 %v540
        %1648 = vmatpush1.msra.mxu0 %v539
        %1649 = vmatprep.subr.mxu0 %v544
        %1650 = vmatpush1.msra.mxu0 %v543
        %1651 = vmatprep.subr.mxu0 %v548
        %1652 = vmatpush1.msra.mxu0 %v547
        %1653 = vmatprep.subr.mxu0 0.0
        %1654 = vmatpush1.msra.mxu0 0.0
        %1655 = vmatprep.subr.mxu0 0.0
        %1656 = vmatpush1.msra.mxu0 0.0
        %1657 = vmatprep.subr.mxu0 0.0
        %1658 = vmatpush1.msra.mxu0 0.0
        %1659 = vmatprep.subr.mxu0 0.0
        %1660 = vmatpush1.msra.mxu0 0.0
        %1661 = vmatprep.subr.mxu0 0.0
        %1662 = vmatpush1.msra.mxu0 0.0
        %1663 = vmatprep.subr.mxu0 0.0
        %1664 = vmatpush1.msra.mxu0 0.0
        %1665 = vmatprep.subr.mxu0 0.0
        %1666 = vmatpush1.msra.mxu0 0.0
        %1667 = vmatprep.subr.mxu0 0.0
        %1668 = vmatpush1.msra.mxu0 0.0
        %1669 = vmatprep.subr.mxu0 0.0
        %1670 = vmatpush1.msra.mxu0 0.0
        %1671 = vmatprep.subr.mxu0 0.0
        %1672 = vmatpush1.msra.mxu0 0.0
        %1673 = vmatprep.subr.mxu0 0.0
        %1674 = vmatpush1.msra.mxu0 0.0
        %1675 = vmatprep.subr.mxu0 0.0
        %1676 = vmatpush1.msra.mxu0 0.0
        %1677 = vmatprep.subr.mxu0 0.0
        %1678 = vmatpush1.msra.mxu0 0.0
        %1679 = vmatprep.subr.mxu0 0.0
        %1680 = vmatpush1.msra.mxu0 0.0
        %1681 = vmatprep.subr.mxu0 0.0
        %1682 = vmatpush1.msra.mxu0 0.0
        %1683 = vmatprep.subr.mxu0 0.0
        %1684 = vmatpush1.msra.mxu0 0.0
        %1685 = vmatprep.mubr.f32.mxu0 0.0
        %1686 = vmatmul.mubr.f32.gmra.mrb[0].mxu0 %v1400
        %v1687 = vpop.f32.mrb[0].mxu0
        %v1688 = vadd.f32 %v1546, %v1687
        %v1689 = vpop.f32.mrb[0].mxu0
        %v1690 = vadd.f32 %v1548, %v1689
        %1691 = vdwg.mxu0
        %v1692 = vadd.f32 %v1617, %v618
        %v1693 = vadd.f32 %v1619, %v622
        %v1694 = vadd.f32 %v1688, %v626
        %v1695 = vadd.f32 %v1690, %v630
        %s1696 = scalar_lea.vmem [#allocation2], 32
        %v1697 = vld [vmem:[%s1696] sm:$0xff]
        %v1698 = vld [vmem:[%s1696 + $0x8] sm:$0xff]
        %v1699 = vld [vmem:[%s1696 + $0x10] sm:$0xff]
        %v1700 = vld [vmem:[%s1696 + $0x18] sm:$0xff]
        %1701 = vmatprep.subr.mxu0 %v422
        %1702 = vmatpush1.msra.mxu0 %v421
        %1703 = vmatprep.subr.mxu0 %v426
        %1704 = vmatpush1.msra.mxu0 %v425
        %1705 = vmatprep.subr.mxu0 %v430
        %1706 = vmatpush1.msra.mxu0 %v429
        %1707 = vmatprep.subr.mxu0 %v434
        %1708 = vmatpush1.msra.mxu0 %v433
        %1709 = vmatprep.subr.mxu0 %v438
        %1710 = vmatpush1.msra.mxu0 %v437
        %1711 = vmatprep.subr.mxu0 %v442
        %1712 = vmatpush1.msra.mxu0 %v441
        %1713 = vmatprep.subr.mxu0 %v446
        %1714 = vmatpush1.msra.mxu0 %v445
        %1715 = vmatprep.subr.mxu0 %v450
        %1716 = vmatpush1.msra.mxu0 %v449
        %1717 = vmatprep.subr.mxu0 %v454
        %1718 = vmatpush1.msra.mxu0 %v453
        %1719 = vmatprep.subr.mxu0 %v458
        %1720 = vmatpush1.msra.mxu0 %v457
        %1721 = vmatprep.subr.mxu0 %v462
        %1722 = vmatpush1.msra.mxu0 %v461
        %1723 = vmatprep.subr.mxu0 %v466
        %1724 = vmatpush1.msra.mxu0 %v465
        %1725 = vmatprep.subr.mxu0 %v470
        %1726 = vmatpush1.msra.mxu0 %v469
        %1727 = vmatprep.subr.mxu0 %v474
        %1728 = vmatpush1.msra.mxu0 %v473
        %1729 = vmatprep.subr.mxu0 %v478
        %1730 = vmatpush1.msra.mxu0 %v477
        %1731 = vmatprep.subr.mxu0 %v482
        %1732 = vmatpush1.msra.mxu0 %v481
        %1733 = vmatprep.subr.mxu0 0.0
        %1734 = vmatpush1.msra.mxu0 0.0
        %1735 = vmatprep.subr.mxu0 0.0
        %1736 = vmatpush1.msra.mxu0 0.0
        %1737 = vmatprep.subr.mxu0 0.0
        %1738 = vmatpush1.msra.mxu0 0.0
        %1739 = vmatprep.subr.mxu0 0.0
        %1740 = vmatpush1.msra.mxu0 0.0
        %1741 = vmatprep.subr.mxu0 0.0
        %1742 = vmatpush1.msra.mxu0 0.0
        %1743 = vmatprep.subr.mxu0 0.0
        %1744 = vmatpush1.msra.mxu0 0.0
        %1745 = vmatprep.subr.mxu0 0.0
        %1746 = vmatpush1.msra.mxu0 0.0
        %1747 = vmatprep.subr.mxu0 0.0
        %1748 = vmatpush1.msra.mxu0 0.0
        %1749 = vmatprep.subr.mxu0 0.0
        %1750 = vmatpush1.msra.mxu0 0.0
        %1751 = vmatprep.subr.mxu0 0.0
        %1752 = vmatpush1.msra.mxu0 0.0
        %1753 = vmatprep.subr.mxu0 0.0
        %1754 = vmatpush1.msra.mxu0 0.0
        %1755 = vmatprep.subr.mxu0 0.0
        %1756 = vmatpush1.msra.mxu0 0.0
        %1757 = vmatprep.subr.mxu0 0.0
        %1758 = vmatpush1.msra.mxu0 0.0
        %1759 = vmatprep.subr.mxu0 0.0
        %1760 = vmatpush1.msra.mxu0 0.0
        %1761 = vmatprep.subr.mxu0 0.0
        %1762 = vmatpush1.msra.mxu0 0.0
        %1763 = vmatprep.subr.mxu0 0.0
        %1764 = vmatpush1.msra.mxu0 0.0
        %1765 = vmatprep.mubr.f32.mxu0 0.0
        %1766 = vmatmul.mubr.f32.gmra.mrb[0].mxu0 %v1400
        %v1767 = vpop.f32.mrb[0].mxu0
        %v1768 = vadd.f32 0.0, %v1767
        %v1769 = vpop.f32.mrb[0].mxu0
        %v1770 = vadd.f32 0.0, %v1769
        %1771 = vdwg.mxu0
        %1772 = vmatprep.subr.mxu0 %v424
        %1773 = vmatpush1.msra.mxu0 %v423
        %1774 = vmatprep.subr.mxu0 %v428
        %1775 = vmatpush1.msra.mxu0 %v427
        %1776 = vmatprep.subr.mxu0 %v432
        %1777 = vmatpush1.msra.mxu0 %v431
        %1778 = vmatprep.subr.mxu0 %v436
        %1779 = vmatpush1.msra.mxu0 %v435
        %1780 = vmatprep.subr.mxu0 %v440
        %1781 = vmatpush1.msra.mxu0 %v439
        %1782 = vmatprep.subr.mxu0 %v444
        %1783 = vmatpush1.msra.mxu0 %v443
        %1784 = vmatprep.subr.mxu0 %v448
        %1785 = vmatpush1.msra.mxu0 %v447
        %1786 = vmatprep.subr.mxu0 %v452
        %1787 = vmatpush1.msra.mxu0 %v451
        %1788 = vmatprep.subr.mxu0 %v456
        %1789 = vmatpush1.msra.mxu0 %v455
        %1790 = vmatprep.subr.mxu0 %v460
        %1791 = vmatpush1.msra.mxu0 %v459
        %1792 = vmatprep.subr.mxu0 %v464
        %1793 = vmatpush1.msra.mxu0 %v463
        %1794 = vmatprep.subr.mxu0 %v468
        %1795 = vmatpush1.msra.mxu0 %v467
        %1796 = vmatprep.subr.mxu0 %v472
        %1797 = vmatpush1.msra.mxu0 %v471
        %1798 = vmatprep.subr.mxu0 %v476
        %1799 = vmatpush1.msra.mxu0 %v475
        %1800 = vmatprep.subr.mxu0 %v480
        %1801 = vmatpush1.msra.mxu0 %v479
        %1802 = vmatprep.subr.mxu0 %v484
        %1803 = vmatpush1.msra.mxu0 %v483
        %1804 = vmatprep.subr.mxu0 0.0
        %1805 = vmatpush1.msra.mxu0 0.0
        %1806 = vmatprep.subr.mxu0 0.0
        %1807 = vmatpush1.msra.mxu0 0.0
        %1808 = vmatprep.subr.mxu0 0.0
        %1809 = vmatpush1.msra.mxu0 0.0
        %1810 = vmatprep.subr.mxu0 0.0
        %1811 = vmatpush1.msra.mxu0 0.0
        %1812 = vmatprep.subr.mxu0 0.0
        %1813 = vmatpush1.msra.mxu0 0.0
        %1814 = vmatprep.subr.mxu0 0.0
        %1815 = vmatpush1.msra.mxu0 0.0
        %1816 = vmatprep.subr.mxu0 0.0
        %1817 = vmatpush1.msra.mxu0 0.0
        %1818 = vmatprep.subr.mxu0 0.0
        %1819 = vmatpush1.msra.mxu0 0.0
        %1820 = vmatprep.subr.mxu0 0.0
        %1821 = vmatpush1.msra.mxu0 0.0
        %1822 = vmatprep.subr.mxu0 0.0
        %1823 = vmatpush1.msra.mxu0 0.0
        %1824 = vmatprep.subr.mxu0 0.0
        %1825 = vmatpush1.msra.mxu0 0.0
        %1826 = vmatprep.subr.mxu0 0.0
        %1827 = vmatpush1.msra.mxu0 0.0
        %1828 = vmatprep.subr.mxu0 0.0
        %1829 = vmatpush1.msra.mxu0 0.0
        %1830 = vmatprep.subr.mxu0 0.0
        %1831 = vmatpush1.msra.mxu0 0.0
        %1832 = vmatprep.subr.mxu0 0.0
        %1833 = vmatpush1.msra.mxu0 0.0
        %1834 = vmatprep.subr.mxu0 0.0
        %1835 = vmatpush1.msra.mxu0 0.0
        %1836 = vmatprep.mubr.f32.mxu0 0.0
        %1837 = vmatmul.mubr.f32.gmra.mrb[0].mxu0 %v1400
        %v1838 = vpop.f32.mrb[0].mxu0
        %v1839 = vadd.f32 0.0, %v1838
        %v1840 = vpop.f32.mrb[0].mxu0
        %v1841 = vadd.f32 0.0, %v1840
        %1842 = vdwg.mxu0
        %v1843 = vadd.f32 %v1697, %v1768
        %v1844 = vadd.f32 %v1698, %v1770
        %v1845 = vadd.f32 %v1699, %v1839
        %v1846 = vadd.f32 %v1700, %v1841
        %v1847 = vxor.u32 %v1692, 2147483648
        %v1848 = vmul.f32 %v1847, 1.442695
        %v1849 = vpow.pop %v1848
        %v1850 = vadd.f32 %v1849, 1.0
        %v1851 = vrcp.pop %v1850
        %v1852 = vmul.f32 1.0, %v1851
        %v1853 = vxor.u32 %v1693, 2147483648
        %v1854 = vmul.f32 %v1853, 1.442695
        %v1855 = vpow.pop %v1854
        %v1856 = vadd.f32 %v1855, 1.0
        %v1857 = vrcp.pop %v1856
        %v1858 = vmul.f32 1.0, %v1857
        %v1859 = vtanh.pop %v1694
        %v1860 = vxor.u32 %v1695, 2147483648
        %v1861 = vmul.f32 %v1860, 1.442695
        %v1862 = vpow.pop %v1861
        %v1863 = vadd.f32 %v1862, 1.0
        %v1864 = vrcp.pop %v1863
        %v1865 = vmul.f32 1.0, %v1864
        %v1866 = vmul.f32 %v1858, %v1406
        %v1867 = vmul.f32 %v1852, %v1859
        %v1868 = vadd.f32 %v1866, %v1867
        %v1869 = vtanh.pop %v1868
        %v1870 = vmul.f32 %v1865, %v1869
        %v1871 = vxor.u32 %v1843, 2147483648
        %v1872 = vmul.f32 %v1871, 1.442695
        %v1873 = vpow.pop %v1872
        %v1874 = vadd.f32 %v1873, 1.0
        %v1875 = vrcp.pop %v1874
        %v1876 = vmul.f32 1.0, %v1875
        %v1877 = vxor.u32 %v1844, 2147483648
        %v1878 = vmul.f32 %v1877, 1.442695
        %v1879 = vpow.pop %v1878
        %v1880 = vadd.f32 %v1879, 1.0
        %v1881 = vrcp.pop %v1880
        %v1882 = vmul.f32 1.0, %v1881
        %v1883 = vtanh.pop %v1845
        %v1884 = vxor.u32 %v1846, 2147483648
        %v1885 = vmul.f32 %v1884, 1.442695
        %v1886 = vpow.pop %v1885
        %v1887 = vadd.f32 %v1886, 1.0
        %v1888 = vrcp.pop %v1887
        %v1889 = vmul.f32 1.0, %v1888
        %v1890 = vmul.f32 %v1882, %v1401
        %v1891 = vmul.f32 %v1876, %v1883
        %v1892 = vadd.f32 %v1890, %v1891
        %v1893 = vtanh.pop %v1892
        %v1894 = vmul.f32 %v1889, %v1893
        %p1895 = scmp.lt.s32.totalorder %s1407, 8
        %p1896 = scmp.ge.s32.totalorder %s1407, 1
        %p1897 = pnand %p1896, %p1895
        %p1898 = pneg %p1897
        %s1899 = scalar_select %p1895, 1, 0
        %v1900 = vstv %s1899
        %vm1901 = vcmp.eq.s32.totalorder %v1900, 1
        %v1902 = vsel %vm1901, %v1894, %v1400
        %v1903 = vsel %vm1901, %v1892, %v1401
        %s1904 = scalar_select %p1898, 1, 0
        %v1905 = vstv %s1904
        %vm1906 = vcmp.eq.s32.totalorder %v1905, 1
        %v1907 = vsel %vm1906, %v1870, %v1405
        %v1908 = vsel %vm1906, %v1868, %v1406
        %s1909 = sadd.s32 %s902, 2
        %1910 = vmatprep.subr.mxu0 %v550
        %1911 = vmatpush1.msra.mxu0 %v549
        %1912 = vmatprep.subr.mxu0 %v554
        %1913 = vmatpush1.msra.mxu0 %v553
        %1914 = vmatprep.subr.mxu0 %v558
        %1915 = vmatpush1.msra.mxu0 %v557
        %1916 = vmatprep.subr.mxu0 %v562
        %1917 = vmatpush1.msra.mxu0 %v561
        %1918 = vmatprep.subr.mxu0 %v566
        %1919 = vmatpush1.msra.mxu0 %v565
        %1920 = vmatprep.subr.mxu0 %v570
        %1921 = vmatpush1.msra.mxu0 %v569
        %1922 = vmatprep.subr.mxu0 %v574
        %1923 = vmatpush1.msra.mxu0 %v573
        %1924 = vmatprep.subr.mxu0 %v578
        %1925 = vmatpush1.msra.mxu0 %v577
        %1926 = vmatprep.subr.mxu0 %v582
        %1927 = vmatpush1.msra.mxu0 %v581
        %1928 = vmatprep.subr.mxu0 %v586
        %1929 = vmatpush1.msra.mxu0 %v585
        %1930 = vmatprep.subr.mxu0 %v590
        %1931 = vmatpush1.msra.mxu0 %v589
        %1932 = vmatprep.subr.mxu0 %v594
        %1933 = vmatpush1.msra.mxu0 %v593
        %1934 = vmatprep.subr.mxu0 %v598
        %1935 = vmatpush1.msra.mxu0 %v597
        %1936 = vmatprep.subr.mxu0 %v602
        %1937 = vmatpush1.msra.mxu0 %v601
        %1938 = vmatprep.subr.mxu0 %v606
        %1939 = vmatpush1.msra.mxu0 %v605
        %1940 = vmatprep.subr.mxu0 %v610
        %1941 = vmatpush1.msra.mxu0 %v609
        %1942 = vmatprep.subr.mxu0 0.0
        %1943 = vmatpush1.msra.mxu0 0.0
        %1944 = vmatprep.subr.mxu0 0.0
        %1945 = vmatpush1.msra.mxu0 0.0
        %1946 = vmatprep.subr.mxu0 0.0
        %1947 = vmatpush1.msra.mxu0 0.0
        %1948 = vmatprep.subr.mxu0 0.0
        %1949 = vmatpush1.msra.mxu0 0.0
        %1950 = vmatprep.subr.mxu0 0.0
        %1951 = vmatpush1.msra.mxu0 0.0
        %1952 = vmatprep.subr.mxu0 0.0
        %1953 = vmatpush1.msra.mxu0 0.0
        %1954 = vmatprep.subr.mxu0 0.0
        %1955 = vmatpush1.msra.mxu0 0.0
        %1956 = vmatprep.subr.mxu0 0.0
        %1957 = vmatpush1.msra.mxu0 0.0
        %1958 = vmatprep.subr.mxu0 0.0
        %1959 = vmatpush1.msra.mxu0 0.0
        %1960 = vmatprep.subr.mxu0 0.0
        %1961 = vmatpush1.msra.mxu0 0.0
        %1962 = vmatprep.subr.mxu0 0.0
        %1963 = vmatpush1.msra.mxu0 0.0
        %1964 = vmatprep.subr.mxu0 0.0
        %1965 = vmatpush1.msra.mxu0 0.0
        %1966 = vmatprep.subr.mxu0 0.0
        %1967 = vmatpush1.msra.mxu0 0.0
        %1968 = vmatprep.subr.mxu0 0.0
        %1969 = vmatpush1.msra.mxu0 0.0
        %1970 = vmatprep.subr.mxu0 0.0
        %1971 = vmatpush1.msra.mxu0 0.0
        %1972 = vmatprep.subr.mxu0 0.0
        %1973 = vmatpush1.msra.mxu0 0.0
        %1974 = vmatprep.mubr.f32.mxu0 0.0
        %1975 = vmatmul.mubr.f32.gmra.mrb[0].mxu0 %v1907
        %v1976 = vpop.f32.mrb[0].mxu0
        %v1977 = vadd.f32 0.0, %v1976
        %v1978 = vpop.f32.mrb[0].mxu0
        %v1979 = vadd.f32 0.0, %v1978
        %1980 = vdwg.mxu0
        %1981 = vmatprep.subr.mxu0 %v552
        %1982 = vmatpush1.msra.mxu0 %v551
        %1983 = vmatprep.subr.mxu0 %v556
        %1984 = vmatpush1.msra.mxu0 %v555
        %1985 = vmatprep.subr.mxu0 %v560
        %1986 = vmatpush1.msra.mxu0 %v559
        %1987 = vmatprep.subr.mxu0 %v564
        %1988 = vmatpush1.msra.mxu0 %v563
        %1989 = vmatprep.subr.mxu0 %v568
        %1990 = vmatpush1.msra.mxu0 %v567
        %1991 = vmatprep.subr.mxu0 %v572
        %1992 = vmatpush1.msra.mxu0 %v571
        %1993 = vmatprep.subr.mxu0 %v576
        %1994 = vmatpush1.msra.mxu0 %v575
        %1995 = vmatprep.subr.mxu0 %v580
        %1996 = vmatpush1.msra.mxu0 %v579
        %1997 = vmatprep.subr.mxu0 %v584
        %1998 = vmatpush1.msra.mxu0 %v583
        %1999 = vmatprep.subr.mxu0 %v588
        %2000 = vmatpush1.msra.mxu0 %v587
        %2001 = vmatprep.subr.mxu0 %v592
        %2002 = vmatpush1.msra.mxu0 %v591
        %2003 = vmatprep.subr.mxu0 %v596
        %2004 = vmatpush1.msra.mxu0 %v595
        %2005 = vmatprep.subr.mxu0 %v600
        %2006 = vmatpush1.msra.mxu0 %v599
        %2007 = vmatprep.subr.mxu0 %v604
        %2008 = vmatpush1.msra.mxu0 %v603
        %2009 = vmatprep.subr.mxu0 %v608
        %2010 = vmatpush1.msra.mxu0 %v607
        %2011 = vmatprep.subr.mxu0 %v612
        %2012 = vmatpush1.msra.mxu0 %v611
        %2013 = vmatprep.subr.mxu0 0.0
        %2014 = vmatpush1.msra.mxu0 0.0
        %2015 = vmatprep.subr.mxu0 0.0
        %2016 = vmatpush1.msra.mxu0 0.0
        %2017 = vmatprep.subr.mxu0 0.0
        %2018 = vmatpush1.msra.mxu0 0.0
        %2019 = vmatprep.subr.mxu0 0.0
        %2020 = vmatpush1.msra.mxu0 0.0
        %2021 = vmatprep.subr.mxu0 0.0
        %2022 = vmatpush1.msra.mxu0 0.0
        %2023 = vmatprep.subr.mxu0 0.0
        %2024 = vmatpush1.msra.mxu0 0.0
        %2025 = vmatprep.subr.mxu0 0.0
        %2026 = vmatpush1.msra.mxu0 0.0
        %2027 = vmatprep.subr.mxu0 0.0
        %2028 = vmatpush1.msra.mxu0 0.0
        %2029 = vmatprep.subr.mxu0 0.0
        %2030 = vmatpush1.msra.mxu0 0.0
        %2031 = vmatprep.subr.mxu0 0.0
        %2032 = vmatpush1.msra.mxu0 0.0
        %2033 = vmatprep.subr.mxu0 0.0
        %2034 = vmatpush1.msra.mxu0 0.0
        %2035 = vmatprep.subr.mxu0 0.0
        %2036 = vmatpush1.msra.mxu0 0.0
        %2037 = vmatprep.subr.mxu0 0.0
        %2038 = vmatpush1.msra.mxu0 0.0
        %2039 = vmatprep.subr.mxu0 0.0
        %2040 = vmatpush1.msra.mxu0 0.0
        %2041 = vmatprep.subr.mxu0 0.0
        %2042 = vmatpush1.msra.mxu0 0.0
        %2043 = vmatprep.subr.mxu0 0.0
        %2044 = vmatpush1.msra.mxu0 0.0
        %2045 = vmatprep.mubr.f32.mxu0 0.0
        %2046 = vmatmul.mubr.f32.gmra.mrb[0].mxu0 %v1907
        %v2047 = vpop.f32.mrb[0].mxu0
        %v2048 = vadd.f32 0.0, %v2047
        %v2049 = vpop.f32.mrb[0].mxu0
        %v2050 = vadd.f32 0.0, %v2049
        %2051 = vdwg.mxu0
        %2052 = vmatprep.subr.mxu0 %v486
        %2053 = vmatpush1.msra.mxu0 %v485
        %2054 = vmatprep.subr.mxu0 %v490
        %2055 = vmatpush1.msra.mxu0 %v489
        %2056 = vmatprep.subr.mxu0 %v494
        %2057 = vmatpush1.msra.mxu0 %v493
        %2058 = vmatprep.subr.mxu0 %v498
        %2059 = vmatpush1.msra.mxu0 %v497
        %2060 = vmatprep.subr.mxu0 %v502
        %2061 = vmatpush1.msra.mxu0 %v501
        %2062 = vmatprep.subr.mxu0 %v506
        %2063 = vmatpush1.msra.mxu0 %v505
        %2064 = vmatprep.subr.mxu0 %v510
        %2065 = vmatpush1.msra.mxu0 %v509
        %2066 = vmatprep.subr.mxu0 %v514
        %2067 = vmatpush1.msra.mxu0 %v513
        %2068 = vmatprep.subr.mxu0 %v518
        %2069 = vmatpush1.msra.mxu0 %v517
        %2070 = vmatprep.subr.mxu0 %v522
        %2071 = vmatpush1.msra.mxu0 %v521
        %2072 = vmatprep.subr.mxu0 %v526
        %2073 = vmatpush1.msra.mxu0 %v525
        %2074 = vmatprep.subr.mxu0 %v530
        %2075 = vmatpush1.msra.mxu0 %v529
        %2076 = vmatprep.subr.mxu0 %v534
        %2077 = vmatpush1.msra.mxu0 %v533
        %2078 = vmatprep.subr.mxu0 %v538
        %2079 = vmatpush1.msra.mxu0 %v537
        %2080 = vmatprep.subr.mxu0 %v542
        %2081 = vmatpush1.msra.mxu0 %v541
        %2082 = vmatprep.subr.mxu0 %v546
        %2083 = vmatpush1.msra.mxu0 %v545
        %2084 = vmatprep.subr.mxu0 0.0
        %2085 = vmatpush1.msra.mxu0 0.0
        %2086 = vmatprep.subr.mxu0 0.0
        %2087 = vmatpush1.msra.mxu0 0.0
        %2088 = vmatprep.subr.mxu0 0.0
        %2089 = vmatpush1.msra.mxu0 0.0
        %2090 = vmatprep.subr.mxu0 0.0
        %2091 = vmatpush1.msra.mxu0 0.0
        %2092 = vmatprep.subr.mxu0 0.0
        %2093 = vmatpush1.msra.mxu0 0.0
        %2094 = vmatprep.subr.mxu0 0.0
        %2095 = vmatpush1.msra.mxu0 0.0
        %2096 = vmatprep.subr.mxu0 0.0
        %2097 = vmatpush1.msra.mxu0 0.0
        %2098 = vmatprep.subr.mxu0 0.0
        %2099 = vmatpush1.msra.mxu0 0.0
        %2100 = vmatprep.subr.mxu0 0.0
        %2101 = vmatpush1.msra.mxu0 0.0
        %2102 = vmatprep.subr.mxu0 0.0
        %2103 = vmatpush1.msra.mxu0 0.0
        %2104 = vmatprep.subr.mxu0 0.0
        %2105 = vmatpush1.msra.mxu0 0.0
        %2106 = vmatprep.subr.mxu0 0.0
        %2107 = vmatpush1.msra.mxu0 0.0
        %2108 = vmatprep.subr.mxu0 0.0
        %2109 = vmatpush1.msra.mxu0 0.0
        %2110 = vmatprep.subr.mxu0 0.0
        %2111 = vmatpush1.msra.mxu0 0.0
        %2112 = vmatprep.subr.mxu0 0.0
        %2113 = vmatpush1.msra.mxu0 0.0
        %2114 = vmatprep.subr.mxu0 0.0
        %2115 = vmatpush1.msra.mxu0 0.0
        %2116 = vmatprep.mubr.f32.mxu0 0.0
        %2117 = vmatmul.mubr.f32.gmra.mrb[0].mxu0 %v1902
        %v2118 = vpop.f32.mrb[0].mxu0
        %v2119 = vadd.f32 %v1977, %v2118
        %v2120 = vpop.f32.mrb[0].mxu0
        %v2121 = vadd.f32 %v1979, %v2120
        %2122 = vdwg.mxu0
        %2123 = vmatprep.subr.mxu0 %v488
        %2124 = vmatpush1.msra.mxu0 %v487
        %2125 = vmatprep.subr.mxu0 %v492
        %2126 = vmatpush1.msra.mxu0 %v491
        %2127 = vmatprep.subr.mxu0 %v496
        %2128 = vmatpush1.msra.mxu0 %v495
        %2129 = vmatprep.subr.mxu0 %v500
        %2130 = vmatpush1.msra.mxu0 %v499
        %2131 = vmatprep.subr.mxu0 %v504
        %2132 = vmatpush1.msra.mxu0 %v503
        %2133 = vmatprep.subr.mxu0 %v508
        %2134 = vmatpush1.msra.mxu0 %v507
        %2135 = vmatprep.subr.mxu0 %v512
        %2136 = vmatpush1.msra.mxu0 %v511
        %2137 = vmatprep.subr.mxu0 %v516
        %2138 = vmatpush1.msra.mxu0 %v515
        %2139 = vmatprep.subr.mxu0 %v520
        %2140 = vmatpush1.msra.mxu0 %v519
        %2141 = vmatprep.subr.mxu0 %v524
        %2142 = vmatpush1.msra.mxu0 %v523
        %2143 = vmatprep.subr.mxu0 %v528
        %2144 = vmatpush1.msra.mxu0 %v527
        %2145 = vmatprep.subr.mxu0 %v532
        %2146 = vmatpush1.msra.mxu0 %v531
        %2147 = vmatprep.subr.mxu0 %v536
        %2148 = vmatpush1.msra.mxu0 %v535
        %2149 = vmatprep.subr.mxu0 %v540
        %2150 = vmatpush1.msra.mxu0 %v539
        %2151 = vmatprep.subr.mxu0 %v544
        %2152 = vmatpush1.msra.mxu0 %v543
        %2153 = vmatprep.subr.mxu0 %v548
        %2154 = vmatpush1.msra.mxu0 %v547
        %2155 = vmatprep.subr.mxu0 0.0
        %2156 = vmatpush1.msra.mxu0 0.0
        %2157 = vmatprep.subr.mxu0 0.0
        %2158 = vmatpush1.msra.mxu0 0.0
        %2159 = vmatprep.subr.mxu0 0.0
        %2160 = vmatpush1.msra.mxu0 0.0
        %2161 = vmatprep.subr.mxu0 0.0
        %2162 = vmatpush1.msra.mxu0 0.0
        %2163 = vmatprep.subr.mxu0 0.0
        %2164 = vmatpush1.msra.mxu0 0.0
        %2165 = vmatprep.subr.mxu0 0.0
        %2166 = vmatpush1.msra.mxu0 0.0
        %2167 = vmatprep.subr.mxu0 0.0
        %2168 = vmatpush1.msra.mxu0 0.0
        %2169 = vmatprep.subr.mxu0 0.0
        %2170 = vmatpush1.msra.mxu0 0.0
        %2171 = vmatprep.subr.mxu0 0.0
        %2172 = vmatpush1.msra.mxu0 0.0
        %2173 = vmatprep.subr.mxu0 0.0
        %2174 = vmatpush1.msra.mxu0 0.0
        %2175 = vmatprep.subr.mxu0 0.0
        %2176 = vmatpush1.msra.mxu0 0.0
        %2177 = vmatprep.subr.mxu0 0.0
        %2178 = vmatpush1.msra.mxu0 0.0
        %2179 = vmatprep.subr.mxu0 0.0
        %2180 = vmatpush1.msra.mxu0 0.0
        %2181 = vmatprep.subr.mxu0 0.0
        %2182 = vmatpush1.msra.mxu0 0.0
        %2183 = vmatprep.subr.mxu0 0.0
        %2184 = vmatpush1.msra.mxu0 0.0
        %2185 = vmatprep.subr.mxu0 0.0
        %2186 = vmatpush1.msra.mxu0 0.0
        %2187 = vmatprep.mubr.f32.mxu0 0.0
        %2188 = vmatmul.mubr.f32.gmra.mrb[0].mxu0 %v1902
        %v2189 = vpop.f32.mrb[0].mxu0
        %v2190 = vadd.f32 %v2048, %v2189
        %v2191 = vpop.f32.mrb[0].mxu0
        %v2192 = vadd.f32 %v2050, %v2191
        %2193 = vdwg.mxu0
        %v2194 = vadd.f32 %v2119, %v618
        %v2195 = vadd.f32 %v2121, %v622
        %v2196 = vadd.f32 %v2190, %v626
        %v2197 = vadd.f32 %v2192, %v630
        %s2198 = scalar_lea.vmem [#allocation2], 64
        %v2199 = vld [vmem:[%s2198] sm:$0xff]
        %v2200 = vld [vmem:[%s2198 + $0x8] sm:$0xff]
        %v2201 = vld [vmem:[%s2198 + $0x10] sm:$0xff]
        %v2202 = vld [vmem:[%s2198 + $0x18] sm:$0xff]
        %2203 = vmatprep.subr.mxu0 %v422
        %2204 = vmatpush1.msra.mxu0 %v421
        %2205 = vmatprep.subr.mxu0 %v426
        %2206 = vmatpush1.msra.mxu0 %v425
        %2207 = vmatprep.subr.mxu0 %v430
        %2208 = vmatpush1.msra.mxu0 %v429
        %2209 = vmatprep.subr.mxu0 %v434
        %2210 = vmatpush1.msra.mxu0 %v433
        %2211 = vmatprep.subr.mxu0 %v438
        %2212 = vmatpush1.msra.mxu0 %v437
        %2213 = vmatprep.subr.mxu0 %v442
        %2214 = vmatpush1.msra.mxu0 %v441
        %2215 = vmatprep.subr.mxu0 %v446
        %2216 = vmatpush1.msra.mxu0 %v445
        %2217 = vmatprep.subr.mxu0 %v450
        %2218 = vmatpush1.msra.mxu0 %v449
        %2219 = vmatprep.subr.mxu0 %v454
        %2220 = vmatpush1.msra.mxu0 %v453
        %2221 = vmatprep.subr.mxu0 %v458
        %2222 = vmatpush1.msra.mxu0 %v457
        %2223 = vmatprep.subr.mxu0 %v462
        %2224 = vmatpush1.msra.mxu0 %v461
        %2225 = vmatprep.subr.mxu0 %v466
        %2226 = vmatpush1.msra.mxu0 %v465
        %2227 = vmatprep.subr.mxu0 %v470
        %2228 = vmatpush1.msra.mxu0 %v469
        %2229 = vmatprep.subr.mxu0 %v474
        %2230 = vmatpush1.msra.mxu0 %v473
        %2231 = vmatprep.subr.mxu0 %v478
        %2232 = vmatpush1.msra.mxu0 %v477
        %2233 = vmatprep.subr.mxu0 %v482
        %2234 = vmatpush1.msra.mxu0 %v481
        %2235 = vmatprep.subr.mxu0 0.0
        %2236 = vmatpush1.msra.mxu0 0.0
        %2237 = vmatprep.subr.mxu0 0.0
        %2238 = vmatpush1.msra.mxu0 0.0
        %2239 = vmatprep.subr.mxu0 0.0
        %2240 = vmatpush1.msra.mxu0 0.0
        %2241 = vmatprep.subr.mxu0 0.0
        %2242 = vmatpush1.msra.mxu0 0.0
        %2243 = vmatprep.subr.mxu0 0.0
        %2244 = vmatpush1.msra.mxu0 0.0
        %2245 = vmatprep.subr.mxu0 0.0
        %2246 = vmatpush1.msra.mxu0 0.0
        %2247 = vmatprep.subr.mxu0 0.0
        %2248 = vmatpush1.msra.mxu0 0.0
        %2249 = vmatprep.subr.mxu0 0.0
        %2250 = vmatpush1.msra.mxu0 0.0
        %2251 = vmatprep.subr.mxu0 0.0
        %2252 = vmatpush1.msra.mxu0 0.0
        %2253 = vmatprep.subr.mxu0 0.0
        %2254 = vmatpush1.msra.mxu0 0.0
        %2255 = vmatprep.subr.mxu0 0.0
        %2256 = vmatpush1.msra.mxu0 0.0
        %2257 = vmatprep.subr.mxu0 0.0
        %2258 = vmatpush1.msra.mxu0 0.0
        %2259 = vmatprep.subr.mxu0 0.0
        %2260 = vmatpush1.msra.mxu0 0.0
        %2261 = vmatprep.subr.mxu0 0.0
        %2262 = vmatpush1.msra.mxu0 0.0
        %2263 = vmatprep.subr.mxu0 0.0
        %2264 = vmatpush1.msra.mxu0 0.0
        %2265 = vmatprep.subr.mxu0 0.0
        %2266 = vmatpush1.msra.mxu0 0.0
        %2267 = vmatprep.mubr.f32.mxu0 0.0
        %2268 = vmatmul.mubr.f32.gmra.mrb[0].mxu0 %v1902
        %v2269 = vpop.f32.mrb[0].mxu0
        %v2270 = vadd.f32 0.0, %v2269
        %v2271 = vpop.f32.mrb[0].mxu0
        %v2272 = vadd.f32 0.0, %v2271
        %2273 = vdwg.mxu0
        %2274 = vmatprep.subr.mxu0 %v424
        %2275 = vmatpush1.msra.mxu0 %v423
        %2276 = vmatprep.subr.mxu0 %v428
        %2277 = vmatpush1.msra.mxu0 %v427
        %2278 = vmatprep.subr.mxu0 %v432
        %2279 = vmatpush1.msra.mxu0 %v431
        %2280 = vmatprep.subr.mxu0 %v436
        %2281 = vmatpush1.msra.mxu0 %v435
        %2282 = vmatprep.subr.mxu0 %v440
        %2283 = vmatpush1.msra.mxu0 %v439
        %2284 = vmatprep.subr.mxu0 %v444
        %2285 = vmatpush1.msra.mxu0 %v443
        %2286 = vmatprep.subr.mxu0 %v448
        %2287 = vmatpush1.msra.mxu0 %v447
        %2288 = vmatprep.subr.mxu0 %v452
        %2289 = vmatpush1.msra.mxu0 %v451
        %2290 = vmatprep.subr.mxu0 %v456
        %2291 = vmatpush1.msra.mxu0 %v455
        %2292 = vmatprep.subr.mxu0 %v460
        %2293 = vmatpush1.msra.mxu0 %v459
        %2294 = vmatprep.subr.mxu0 %v464
        %2295 = vmatpush1.msra.mxu0 %v463
        %2296 = vmatprep.subr.mxu0 %v468
        %2297 = vmatpush1.msra.mxu0 %v467
        %2298 = vmatprep.subr.mxu0 %v472
        %2299 = vmatpush1.msra.mxu0 %v471
        %2300 = vmatprep.subr.mxu0 %v476
        %2301 = vmatpush1.msra.mxu0 %v475
        %2302 = vmatprep.subr.mxu0 %v480
        %2303 = vmatpush1.msra.mxu0 %v479
        %2304 = vmatprep.subr.mxu0 %v484
        %2305 = vmatpush1.msra.mxu0 %v483
        %2306 = vmatprep.subr.mxu0 0.0
        %2307 = vmatpush1.msra.mxu0 0.0
        %2308 = vmatprep.subr.mxu0 0.0
        %2309 = vmatpush1.msra.mxu0 0.0
        %2310 = vmatprep.subr.mxu0 0.0
        %2311 = vmatpush1.msra.mxu0 0.0
        %2312 = vmatprep.subr.mxu0 0.0
        %2313 = vmatpush1.msra.mxu0 0.0
        %2314 = vmatprep.subr.mxu0 0.0
        %2315 = vmatpush1.msra.mxu0 0.0
        %2316 = vmatprep.subr.mxu0 0.0
        %2317 = vmatpush1.msra.mxu0 0.0
        %2318 = vmatprep.subr.mxu0 0.0
        %2319 = vmatpush1.msra.mxu0 0.0
        %2320 = vmatprep.subr.mxu0 0.0
        %2321 = vmatpush1.msra.mxu0 0.0
        %2322 = vmatprep.subr.mxu0 0.0
        %2323 = vmatpush1.msra.mxu0 0.0
        %2324 = vmatprep.subr.mxu0 0.0
        %2325 = vmatpush1.msra.mxu0 0.0
        %2326 = vmatprep.subr.mxu0 0.0
        %2327 = vmatpush1.msra.mxu0 0.0
        %2328 = vmatprep.subr.mxu0 0.0
        %2329 = vmatpush1.msra.mxu0 0.0
        %2330 = vmatprep.subr.mxu0 0.0
        %2331 = vmatpush1.msra.mxu0 0.0
        %2332 = vmatprep.subr.mxu0 0.0
        %2333 = vmatpush1.msra.mxu0 0.0
        %2334 = vmatprep.subr.mxu0 0.0
        %2335 = vmatpush1.msra.mxu0 0.0
        %2336 = vmatprep.subr.mxu0 0.0
        %2337 = vmatpush1.msra.mxu0 0.0
        %2338 = vmatprep.mubr.f32.mxu0 0.0
        %2339 = vmatmul.mubr.f32.gmra.mrb[0].mxu0 %v1902
        %v2340 = vpop.f32.mrb[0].mxu0
        %v2341 = vadd.f32 0.0, %v2340
        %v2342 = vpop.f32.mrb[0].mxu0
        %v2343 = vadd.f32 0.0, %v2342
        %2344 = vdwg.mxu0
        %v2345 = vadd.f32 %v2199, %v2270
        %v2346 = vadd.f32 %v2200, %v2272
        %v2347 = vadd.f32 %v2201, %v2341
        %v2348 = vadd.f32 %v2202, %v2343
        %v2349 = vxor.u32 %v2194, 2147483648
        %v2350 = vmul.f32 %v2349, 1.442695
        %v2351 = vpow.pop %v2350
        %v2352 = vadd.f32 %v2351, 1.0
        %v2353 = vrcp.pop %v2352
        %v2354 = vmul.f32 1.0, %v2353
        %v2355 = vxor.u32 %v2195, 2147483648
        %v2356 = vmul.f32 %v2355, 1.442695
        %v2357 = vpow.pop %v2356
        %v2358 = vadd.f32 %v2357, 1.0
        %v2359 = vrcp.pop %v2358
        %v2360 = vmul.f32 1.0, %v2359
        %v2361 = vtanh.pop %v2196
        %v2362 = vxor.u32 %v2197, 2147483648
        %v2363 = vmul.f32 %v2362, 1.442695
        %v2364 = vpow.pop %v2363
        %v2365 = vadd.f32 %v2364, 1.0
        %v2366 = vrcp.pop %v2365
        %v2367 = vmul.f32 1.0, %v2366
        %v2368 = vmul.f32 %v2360, %v1908
        %v2369 = vmul.f32 %v2354, %v2361
        %v2370 = vadd.f32 %v2368, %v2369
        %v2371 = vtanh.pop %v2370
        %v2372 = vmul.f32 %v2367, %v2371
        %v2373 = vxor.u32 %v2345, 2147483648
        %v2374 = vmul.f32 %v2373, 1.442695
        %v2375 = vpow.pop %v2374
        %v2376 = vadd.f32 %v2375, 1.0
        %v2377 = vrcp.pop %v2376
        %v2378 = vmul.f32 1.0, %v2377
        %v2379 = vxor.u32 %v2346, 2147483648
        %v2380 = vmul.f32 %v2379, 1.442695
        %v2381 = vpow.pop %v2380
        %v2382 = vadd.f32 %v2381, 1.0
        %v2383 = vrcp.pop %v2382
        %v2384 = vmul.f32 1.0, %v2383
        %v2385 = vtanh.pop %v2347
        %v2386 = vxor.u32 %v2348, 2147483648
        %v2387 = vmul.f32 %v2386, 1.442695
        %v2388 = vpow.pop %v2387
        %v2389 = vadd.f32 %v2388, 1.0
        %v2390 = vrcp.pop %v2389
        %v2391 = vmul.f32 1.0, %v2390
        %v2392 = vmul.f32 %v2384, %v1903
        %v2393 = vmul.f32 %v2378, %v2385
        %v2394 = vadd.f32 %v2392, %v2393
        %v2395 = vtanh.pop %v2394
        %v2396 = vmul.f32 %v2391, %v2395
        %p2397 = scmp.lt.s32.totalorder %s1909, 8
        %p2398 = scmp.ge.s32.totalorder %s1909, 1
        %p2399 = pnand %p2398, %p2397
        %p2400 = pneg %p2399
        %s2401 = scalar_select %p2397, 1, 0
        %v2402 = vstv %s2401
        %vm2403 = vcmp.eq.s32.totalorder %v2402, 1
        %v2404 = vsel %vm2403, %v2396, %v1902
        %v2405 = vsel %vm2403, %v2394, %v1903
        %s2406 = scalar_select %p2400, 1, 0
        %v2407 = vstv %s2406
        %vm2408 = vcmp.eq.s32.totalorder %v2407, 1
        %v2409 = vsel %vm2408, %v2372, %v1907
        %v2410 = vsel %vm2408, %v2370, %v1908
        %2411 = vst [vmem:[#allocation3] sm:$0xff] %v2404
        %2412 = vst [vmem:[#allocation4] sm:$0xff] %v2405
        %2413 = vst [vmem:[#allocation5] sm:$0xff] %v2409
        %2414 = vst [vmem:[#allocation6] sm:$0xff] %v2410
        %p2415 = scmp.eq.s32.totalorder %s27, 2
        // Predicated region
        $region85: #{tpu_custom_call.1} parent=55 // pred_check
          %p2416 = pneg %p2415
        $region86: #{tpu_custom_call.1} parent=55 // pred_check_branch
          %2418 = sbr.rel (%p2416) target = $region88
        $region87: #{tpu_custom_call.1} parent=55 // pred_region
          %2419 = vmatprep.subr.mxu0 %v550
          %2420 = vmatpush1.msra.mxu0 %v549
          %2421 = vmatprep.subr.mxu0 %v554
          %2422 = vmatpush1.msra.mxu0 %v553
          %2423 = vmatprep.subr.mxu0 %v558
          %2424 = vmatpush1.msra.mxu0 %v557
          %2425 = vmatprep.subr.mxu0 %v562
          %2426 = vmatpush1.msra.mxu0 %v561
          %2427 = vmatprep.subr.mxu0 %v566
          %2428 = vmatpush1.msra.mxu0 %v565
          %2429 = vmatprep.subr.mxu0 %v570
          %2430 = vmatpush1.msra.mxu0 %v569
          %2431 = vmatprep.subr.mxu0 %v574
          %2432 = vmatpush1.msra.mxu0 %v573
          %2433 = vmatprep.subr.mxu0 %v578
          %2434 = vmatpush1.msra.mxu0 %v577
          %2435 = vmatprep.subr.mxu0 %v582
          %2436 = vmatpush1.msra.mxu0 %v581
          %2437 = vmatprep.subr.mxu0 %v586
          %2438 = vmatpush1.msra.mxu0 %v585
          %2439 = vmatprep.subr.mxu0 %v590
          %2440 = vmatpush1.msra.mxu0 %v589
          %2441 = vmatprep.subr.mxu0 %v594
          %2442 = vmatpush1.msra.mxu0 %v593
          %2443 = vmatprep.subr.mxu0 %v598
          %2444 = vmatpush1.msra.mxu0 %v597
          %2445 = vmatprep.subr.mxu0 %v602
          %2446 = vmatpush1.msra.mxu0 %v601
          %2447 = vmatprep.subr.mxu0 %v606
          %2448 = vmatpush1.msra.mxu0 %v605
          %2449 = vmatprep.subr.mxu0 %v610
          %2450 = vmatpush1.msra.mxu0 %v609
          %2451 = vmatprep.subr.mxu0 0.0
          %2452 = vmatpush1.msra.mxu0 0.0
          %2453 = vmatprep.subr.mxu0 0.0
          %2454 = vmatpush1.msra.mxu0 0.0
          %2455 = vmatprep.subr.mxu0 0.0
          %2456 = vmatpush1.msra.mxu0 0.0
          %2457 = vmatprep.subr.mxu0 0.0
          %2458 = vmatpush1.msra.mxu0 0.0
          %2459 = vmatprep.subr.mxu0 0.0
          %2460 = vmatpush1.msra.mxu0 0.0
          %2461 = vmatprep.subr.mxu0 0.0
          %2462 = vmatpush1.msra.mxu0 0.0
          %2463 = vmatprep.subr.mxu0 0.0
          %2464 = vmatpush1.msra.mxu0 0.0
          %2465 = vmatprep.subr.mxu0 0.0
          %2466 = vmatpush1.msra.mxu0 0.0
          %2467 = vmatprep.subr.mxu0 0.0
          %2468 = vmatpush1.msra.mxu0 0.0
          %2469 = vmatprep.subr.mxu0 0.0
          %2470 = vmatpush1.msra.mxu0 0.0
          %2471 = vmatprep.subr.mxu0 0.0
          %2472 = vmatpush1.msra.mxu0 0.0
          %2473 = vmatprep.subr.mxu0 0.0
          %2474 = vmatpush1.msra.mxu0 0.0
          %2475 = vmatprep.subr.mxu0 0.0
          %2476 = vmatpush1.msra.mxu0 0.0
          %2477 = vmatprep.subr.mxu0 0.0
          %2478 = vmatpush1.msra.mxu0 0.0
          %2479 = vmatprep.subr.mxu0 0.0
          %2480 = vmatpush1.msra.mxu0 0.0
          %2481 = vmatprep.subr.mxu0 0.0
          %2482 = vmatpush1.msra.mxu0 0.0
          %2483 = vmatprep.mubr.f32.mxu0 0.0
          %2484 = vmatmul.mubr.f32.gmra.mrb[0].mxu0 %v2409
          %v2485 = vpop.f32.mrb[0].mxu0
          %v2486 = vadd.f32 0.0, %v2485
          %v2487 = vpop.f32.mrb[0].mxu0
          %v2488 = vadd.f32 0.0, %v2487
          %2489 = vdwg.mxu0
          %2490 = vmatprep.subr.mxu0 %v552
          %2491 = vmatpush1.msra.mxu0 %v551
          %2492 = vmatprep.subr.mxu0 %v556
          %2493 = vmatpush1.msra.mxu0 %v555
          %2494 = vmatprep.subr.mxu0 %v560
          %2495 = vmatpush1.msra.mxu0 %v559
          %2496 = vmatprep.subr.mxu0 %v564
          %2497 = vmatpush1.msra.mxu0 %v563
          %2498 = vmatprep.subr.mxu0 %v568
          %2499 = vmatpush1.msra.mxu0 %v567
          %2500 = vmatprep.subr.mxu0 %v572
          %2501 = vmatpush1.msra.mxu0 %v571
          %2502 = vmatprep.subr.mxu0 %v576
          %2503 = vmatpush1.msra.mxu0 %v575
          %2504 = vmatprep.subr.mxu0 %v580
          %2505 = vmatpush1.msra.mxu0 %v579
          %2506 = vmatprep.subr.mxu0 %v584
          %2507 = vmatpush1.msra.mxu0 %v583
          %2508 = vmatprep.subr.mxu0 %v588
          %2509 = vmatpush1.msra.mxu0 %v587
          %2510 = vmatprep.subr.mxu0 %v592
          %2511 = vmatpush1.msra.mxu0 %v591
          %2512 = vmatprep.subr.mxu0 %v596
          %2513 = vmatpush1.msra.mxu0 %v595
          %2514 = vmatprep.subr.mxu0 %v600
          %2515 = vmatpush1.msra.mxu0 %v599
          %2516 = vmatprep.subr.mxu0 %v604
          %2517 = vmatpush1.msra.mxu0 %v603
          %2518 = vmatprep.subr.mxu0 %v608
          %2519 = vmatpush1.msra.mxu0 %v607
          %2520 = vmatprep.subr.mxu0 %v612
          %2521 = vmatpush1.msra.mxu0 %v611
          %2522 = vmatprep.subr.mxu0 0.0
          %2523 = vmatpush1.msra.mxu0 0.0
          %2524 = vmatprep.subr.mxu0 0.0
          %2525 = vmatpush1.msra.mxu0 0.0
          %2526 = vmatprep.subr.mxu0 0.0
          %2527 = vmatpush1.msra.mxu0 0.0
          %2528 = vmatprep.subr.mxu0 0.0
          %2529 = vmatpush1.msra.mxu0 0.0
          %2530 = vmatprep.subr.mxu0 0.0
          %2531 = vmatpush1.msra.mxu0 0.0
          %2532 = vmatprep.subr.mxu0 0.0
          %2533 = vmatpush1.msra.mxu0 0.0
          %2534 = vmatprep.subr.mxu0 0.0
          %2535 = vmatpush1.msra.mxu0 0.0
          %2536 = vmatprep.subr.mxu0 0.0
          %2537 = vmatpush1.msra.mxu0 0.0
          %2538 = vmatprep.subr.mxu0 0.0
          %2539 = vmatpush1.msra.mxu0 0.0
          %2540 = vmatprep.subr.mxu0 0.0
          %2541 = vmatpush1.msra.mxu0 0.0
          %2542 = vmatprep.subr.mxu0 0.0
          %2543 = vmatpush1.msra.mxu0 0.0
          %2544 = vmatprep.subr.mxu0 0.0
          %2545 = vmatpush1.msra.mxu0 0.0
          %2546 = vmatprep.subr.mxu0 0.0
          %2547 = vmatpush1.msra.mxu0 0.0
          %2548 = vmatprep.subr.mxu0 0.0
          %2549 = vmatpush1.msra.mxu0 0.0
          %2550 = vmatprep.subr.mxu0 0.0
          %2551 = vmatpush1.msra.mxu0 0.0
          %2552 = vmatprep.subr.mxu0 0.0
          %2553 = vmatpush1.msra.mxu0 0.0
          %2554 = vmatprep.mubr.f32.mxu0 0.0
          %2555 = vmatmul.mubr.f32.gmra.mrb[0].mxu0 %v2409
          %v2556 = vpop.f32.mrb[0].mxu0
          %v2557 = vadd.f32 0.0, %v2556
          %v2558 = vpop.f32.mrb[0].mxu0
          %v2559 = vadd.f32 0.0, %v2558
          %2560 = vdwg.mxu0
          %2561 = vmatprep.subr.mxu0 %v486
          %2562 = vmatpush1.msra.mxu0 %v485
          %2563 = vmatprep.subr.mxu0 %v490
          %2564 = vmatpush1.msra.mxu0 %v489
          %2565 = vmatprep.subr.mxu0 %v494
          %2566 = vmatpush1.msra.mxu0 %v493
          %2567 = vmatprep.subr.mxu0 %v498
          %2568 = vmatpush1.msra.mxu0 %v497
          %2569 = vmatprep.subr.mxu0 %v502
          %2570 = vmatpush1.msra.mxu0 %v501
          %2571 = vmatprep.subr.mxu0 %v506
          %2572 = vmatpush1.msra.mxu0 %v505
          %2573 = vmatprep.subr.mxu0 %v510
          %2574 = vmatpush1.msra.mxu0 %v509
          %2575 = vmatprep.subr.mxu0 %v514
          %2576 = vmatpush1.msra.mxu0 %v513
          %2577 = vmatprep.subr.mxu0 %v518
          %2578 = vmatpush1.msra.mxu0 %v517
          %2579 = vmatprep.subr.mxu0 %v522
          %2580 = vmatpush1.msra.mxu0 %v521
          %2581 = vmatprep.subr.mxu0 %v526
          %2582 = vmatpush1.msra.mxu0 %v525
          %2583 = vmatprep.subr.mxu0 %v530
          %2584 = vmatpush1.msra.mxu0 %v529
          %2585 = vmatprep.subr.mxu0 %v534
          %2586 = vmatpush1.msra.mxu0 %v533
          %2587 = vmatprep.subr.mxu0 %v538
          %2588 = vmatpush1.msra.mxu0 %v537
          %2589 = vmatprep.subr.mxu0 %v542
          %2590 = vmatpush1.msra.mxu0 %v541
          %2591 = vmatprep.subr.mxu0 %v546
          %2592 = vmatpush1.msra.mxu0 %v545
          %2593 = vmatprep.subr.mxu0 0.0
          %2594 = vmatpush1.msra.mxu0 0.0
          %2595 = vmatprep.subr.mxu0 0.0
          %2596 = vmatpush1.msra.mxu0 0.0
          %2597 = vmatprep.subr.mxu0 0.0
          %2598 = vmatpush1.msra.mxu0 0.0
          %2599 = vmatprep.subr.mxu0 0.0
          %2600 = vmatpush1.msra.mxu0 0.0
          %2601 = vmatprep.subr.mxu0 0.0
          %2602 = vmatpush1.msra.mxu0 0.0
          %2603 = vmatprep.subr.mxu0 0.0
          %2604 = vmatpush1.msra.mxu0 0.0
          %2605 = vmatprep.subr.mxu0 0.0
          %2606 = vmatpush1.msra.mxu0 0.0
          %2607 = vmatprep.subr.mxu0 0.0
          %2608 = vmatpush1.msra.mxu0 0.0
          %2609 = vmatprep.subr.mxu0 0.0
          %2610 = vmatpush1.msra.mxu0 0.0
          %2611 = vmatprep.subr.mxu0 0.0
          %2612 = vmatpush1.msra.mxu0 0.0
          %2613 = vmatprep.subr.mxu0 0.0
          %2614 = vmatpush1.msra.mxu0 0.0
          %2615 = vmatprep.subr.mxu0 0.0
          %2616 = vmatpush1.msra.mxu0 0.0
          %2617 = vmatprep.subr.mxu0 0.0
          %2618 = vmatpush1.msra.mxu0 0.0
          %2619 = vmatprep.subr.mxu0 0.0
          %2620 = vmatpush1.msra.mxu0 0.0
          %2621 = vmatprep.subr.mxu0 0.0
          %2622 = vmatpush1.msra.mxu0 0.0
          %2623 = vmatprep.subr.mxu0 0.0
          %2624 = vmatpush1.msra.mxu0 0.0
          %2625 = vmatprep.mubr.f32.mxu0 0.0
          %2626 = vmatmul.mubr.f32.gmra.mrb[0].mxu0 %v2404
          %v2627 = vpop.f32.mrb[0].mxu0
          %v2628 = vadd.f32 %v2486, %v2627
          %v2629 = vpop.f32.mrb[0].mxu0
          %v2630 = vadd.f32 %v2488, %v2629
          %2631 = vdwg.mxu0
          %2632 = vmatprep.subr.mxu0 %v488
          %2633 = vmatpush1.msra.mxu0 %v487
          %2634 = vmatprep.subr.mxu0 %v492
          %2635 = vmatpush1.msra.mxu0 %v491
          %2636 = vmatprep.subr.mxu0 %v496
          %2637 = vmatpush1.msra.mxu0 %v495
          %2638 = vmatprep.subr.mxu0 %v500
          %2639 = vmatpush1.msra.mxu0 %v499
          %2640 = vmatprep.subr.mxu0 %v504
          %2641 = vmatpush1.msra.mxu0 %v503
          %2642 = vmatprep.subr.mxu0 %v508
          %2643 = vmatpush1.msra.mxu0 %v507
          %2644 = vmatprep.subr.mxu0 %v512
          %2645 = vmatpush1.msra.mxu0 %v511
          %2646 = vmatprep.subr.mxu0 %v516
          %2647 = vmatpush1.msra.mxu0 %v515
          %2648 = vmatprep.subr.mxu0 %v520
          %2649 = vmatpush1.msra.mxu0 %v519
          %2650 = vmatprep.subr.mxu0 %v524
          %2651 = vmatpush1.msra.mxu0 %v523
          %2652 = vmatprep.subr.mxu0 %v528
          %2653 = vmatpush1.msra.mxu0 %v527
          %2654 = vmatprep.subr.mxu0 %v532
          %2655 = vmatpush1.msra.mxu0 %v531
          %2656 = vmatprep.subr.mxu0 %v536
          %2657 = vmatpush1.msra.mxu0 %v535
          %2658 = vmatprep.subr.mxu0 %v540
          %2659 = vmatpush1.msra.mxu0 %v539
          %2660 = vmatprep.subr.mxu0 %v544
          %2661 = vmatpush1.msra.mxu0 %v543
          %2662 = vmatprep.subr.mxu0 %v548
          %2663 = vmatpush1.msra.mxu0 %v547
          %2664 = vmatprep.subr.mxu0 0.0
          %2665 = vmatpush1.msra.mxu0 0.0
          %2666 = vmatprep.subr.mxu0 0.0
          %2667 = vmatpush1.msra.mxu0 0.0
          %2668 = vmatprep.subr.mxu0 0.0
          %2669 = vmatpush1.msra.mxu0 0.0
          %2670 = vmatprep.subr.mxu0 0.0
          %2671 = vmatpush1.msra.mxu0 0.0
          %2672 = vmatprep.subr.mxu0 0.0
          %2673 = vmatpush1.msra.mxu0 0.0
          %2674 = vmatprep.subr.mxu0 0.0
          %2675 = vmatpush1.msra.mxu0 0.0
          %2676 = vmatprep.subr.mxu0 0.0
          %2677 = vmatpush1.msra.mxu0 0.0
          %2678 = vmatprep.subr.mxu0 0.0
          %2679 = vmatpush1.msra.mxu0 0.0
          %2680 = vmatprep.subr.mxu0 0.0
          %2681 = vmatpush1.msra.mxu0 0.0
          %2682 = vmatprep.subr.mxu0 0.0
          %2683 = vmatpush1.msra.mxu0 0.0
          %2684 = vmatprep.subr.mxu0 0.0
          %2685 = vmatpush1.msra.mxu0 0.0
          %2686 = vmatprep.subr.mxu0 0.0
          %2687 = vmatpush1.msra.mxu0 0.0
          %2688 = vmatprep.subr.mxu0 0.0
          %2689 = vmatpush1.msra.mxu0 0.0
          %2690 = vmatprep.subr.mxu0 0.0
          %2691 = vmatpush1.msra.mxu0 0.0
          %2692 = vmatprep.subr.mxu0 0.0
          %2693 = vmatpush1.msra.mxu0 0.0
          %2694 = vmatprep.subr.mxu0 0.0
          %2695 = vmatpush1.msra.mxu0 0.0
          %2696 = vmatprep.mubr.f32.mxu0 0.0
          %2697 = vmatmul.mubr.f32.gmra.mrb[0].mxu0 %v2404
          %v2698 = vpop.f32.mrb[0].mxu0
          %v2699 = vadd.f32 %v2557, %v2698
          %v2700 = vpop.f32.mrb[0].mxu0
          %v2701 = vadd.f32 %v2559, %v2700
          %2702 = vdwg.mxu0
          %v2703 = vadd.f32 %v2628, %v618
          %v2704 = vadd.f32 %v2630, %v622
          %v2705 = vadd.f32 %v2699, %v626
          %v2706 = vadd.f32 %v2701, %v630
          %v2707 = vxor.u32 %v2703, 2147483648
          %v2708 = vmul.f32 %v2707, 1.442695
          %v2709 = vpow.pop %v2708
          %v2710 = vadd.f32 %v2709, 1.0
          %v2711 = vrcp.pop %v2710
          %v2712 = vmul.f32 1.0, %v2711
          %v2713 = vxor.u32 %v2704, 2147483648
          %v2714 = vmul.f32 %v2713, 1.442695
          %v2715 = vpow.pop %v2714
          %v2716 = vadd.f32 %v2715, 1.0
          %v2717 = vrcp.pop %v2716
          %v2718 = vmul.f32 1.0, %v2717
          %v2719 = vtanh.pop %v2705
          %v2720 = vxor.u32 %v2706, 2147483648
          %v2721 = vmul.f32 %v2720, 1.442695
          %v2722 = vpow.pop %v2721
          %v2723 = vadd.f32 %v2722, 1.0
          %v2724 = vrcp.pop %v2723
          %v2725 = vmul.f32 1.0, %v2724
          %v2726 = vmul.f32 %v2718, %v2410
          %v2727 = vmul.f32 %v2712, %v2719
          %v2728 = vadd.f32 %v2726, %v2727
          %v2729 = vtanh.pop %v2728
          %v2730 = vmul.f32 %v2725, %v2729
          %v2731 = vld [vmem:[#allocation16] sm:$0xff]
          %v2732 = vld [vmem:[#allocation16 + $0x8] sm:$0xff]
          %v2733 = vld [vmem:[#allocation16 + $0x10] sm:$0xff]
          %v2734 = vld [vmem:[#allocation16 + $0x18] sm:$0xff]
          %v2735 = vld [vmem:[#allocation16 + $0x20] sm:$0xff]
          %v2736 = vld [vmem:[#allocation16 + $0x28] sm:$0xff]
          %v2737 = vld [vmem:[#allocation16 + $0x30] sm:$0xff]
          %v2738 = vld [vmem:[#allocation16 + $0x38] sm:$0xff]
          %v2739 = vld [vmem:[#allocation16 + $0x40] sm:$0xff]
          %v2740 = vld [vmem:[#allocation16 + $0x48] sm:$0xff]
          %v2741 = vld [vmem:[#allocation16 + $0x50] sm:$0xff]
          %v2742 = vld [vmem:[#allocation16 + $0x58] sm:$0xff]
          %v2743 = vld [vmem:[#allocation16 + $0x60] sm:$0xff]
          %v2744 = vld [vmem:[#allocation16 + $0x68] sm:$0xff]
          %v2745 = vld [vmem:[#allocation16 + $0x70] sm:$0xff]
          %v2746 = vld [vmem:[#allocation16 + $0x78] sm:$0xff]
          %v2747 = vld [vmem:[%s8] sm:$0x1]
          %v2749 = vlaneseq
          %v2750 = vshrl.u32 %v2749, 7
          %v2751 = vsub.s32 0, %v2750
          %v2752 = vrot.slane %v2747, %v2751
          %2754 = vmatprep.subr.mxu0 0.0
          %2755 = vmatpush1.msra.mxu0 %v2731
          %2756 = vmatprep.subr.mxu0 0.0
          %2757 = vmatpush1.msra.mxu0 %v2732
          %2758 = vmatprep.subr.mxu0 0.0
          %2759 = vmatpush1.msra.mxu0 %v2733
          %2760 = vmatprep.subr.mxu0 0.0
          %2761 = vmatpush1.msra.mxu0 %v2734
          %2762 = vmatprep.subr.mxu0 0.0
          %2763 = vmatpush1.msra.mxu0 %v2735
          %2764 = vmatprep.subr.mxu0 0.0
          %2765 = vmatpush1.msra.mxu0 %v2736
          %2766 = vmatprep.subr.mxu0 0.0
          %2767 = vmatpush1.msra.mxu0 %v2737
          %2768 = vmatprep.subr.mxu0 0.0
          %2769 = vmatpush1.msra.mxu0 %v2738
          %2770 = vmatprep.subr.mxu0 0.0
          %2771 = vmatpush1.msra.mxu0 %v2739
          %2772 = vmatprep.subr.mxu0 0.0
          %2773 = vmatpush1.msra.mxu0 %v2740
          %2774 = vmatprep.subr.mxu0 0.0
          %2775 = vmatpush1.msra.mxu0 %v2741
          %2776 = vmatprep.subr.mxu0 0.0
          %2777 = vmatpush1.msra.mxu0 %v2742
          %2778 = vmatprep.subr.mxu0 0.0
          %2779 = vmatpush1.msra.mxu0 %v2743
          %2780 = vmatprep.subr.mxu0 0.0
          %2781 = vmatpush1.msra.mxu0 %v2744
          %2782 = vmatprep.subr.mxu0 0.0
          %2783 = vmatpush1.msra.mxu0 %v2745
          %2784 = vmatprep.subr.mxu0 0.0
          %2785 = vmatpush1.msra.mxu0 %v2746
          %2786 = vmatprep.subr.mxu0 0.0
          %2787 = vmatpush1.msra.mxu0 0.0
          %2788 = vmatprep.subr.mxu0 0.0
          %2789 = vmatpush1.msra.mxu0 0.0
          %2790 = vmatprep.subr.mxu0 0.0
          %2791 = vmatpush1.msra.mxu0 0.0
          %2792 = vmatprep.subr.mxu0 0.0
          %2793 = vmatpush1.msra.mxu0 0.0
          %2794 = vmatprep.subr.mxu0 0.0
          %2795 = vmatpush1.msra.mxu0 0.0
          %2796 = vmatprep.subr.mxu0 0.0
          %2797 = vmatpush1.msra.mxu0 0.0
          %2798 = vmatprep.subr.mxu0 0.0
          %2799 = vmatpush1.msra.mxu0 0.0
          %2800 = vmatprep.subr.mxu0 0.0
          %2801 = vmatpush1.msra.mxu0 0.0
          %2802 = vmatprep.subr.mxu0 0.0
          %2803 = vmatpush1.msra.mxu0 0.0
          %2804 = vmatprep.subr.mxu0 0.0
          %2805 = vmatpush1.msra.mxu0 0.0
          %2806 = vmatprep.subr.mxu0 0.0
          %2807 = vmatpush1.msra.mxu0 0.0
          %2808 = vmatprep.subr.mxu0 0.0
          %2809 = vmatpush1.msra.mxu0 0.0
          %2810 = vmatprep.subr.mxu0 0.0
          %2811 = vmatpush1.msra.mxu0 0.0
          %2812 = vmatprep.subr.mxu0 0.0
          %2813 = vmatpush1.msra.mxu0 0.0
          %2814 = vmatprep.subr.mxu0 0.0
          %2815 = vmatpush1.msra.mxu0 0.0
          %2816 = vmatprep.subr.mxu0 0.0
          %2817 = vmatpush1.msra.mxu0 0.0
          %2818 = vmatprep.mubr.f32.mxu0 0.0
          %2819 = vmatmul.mubr.f32.gmra.mrb[0].mxu0 %v2730
          %v2820 = vpop.f32.mrb[0].mxu0
          %v2821 = vadd.f32 %v2752, %v2820
          %v2822 = vpop.f32.mrb[0].mxu0
          %2823 = vdwg.mxu0
          %2824 = vst [vmem:[#allocation18] sm:$0xff] %v2821
        $region88: #{tpu_custom_call.1} parent=55 // pred_fallthru
          _
        // Predicated region
        $region89: #{tpu_custom_call.1} parent=55 // pred_check
          %p2825 = pneg %p234
        $region90: #{tpu_custom_call.1} parent=55 // pred_check_branch
          %2827 = sbr.rel (%p2825) target = $region92
        $region91: #{tpu_custom_call.1} parent=55 // pred_region
          %s2829 = ssub.s32 128, 128
          %2830 = vsyncadd [#allocation9], %s2829
          %s2832 = sshll.u32 [#allocation18], 4
          %s2833 = int_to_ptr.vmem [resolvable:$true] %s2832
          %2835 = dma.vmem_to_hbm [thread:$0]  %s2833, 128, %s9, [#allocation9]
        $region92: #{tpu_custom_call.1} parent=55 // pred_fallthru
          _
        // Predicated region
        $region93: #{tpu_custom_call.1} parent=55 // pred_check
          %p2836 = pneg %p234
        $region94: #{tpu_custom_call.1} parent=55 // pred_check_branch
          %2838 = sbr.rel (%p2836) target = $region96
        $region95: #{tpu_custom_call.1} parent=55 // pred_region
          %2839 = dma.done [#allocation9], 128
        $region96: #{tpu_custom_call.1} parent=55 // pred_fallthru
          _
      $region56: #{tpu_custom_call.1} parent=5 // pred_fallthru
        _
      %p2840 = scmp.le.s32.totalorder 2, %s22
      // Predicated region
      $region97: #{tpu_custom_call.1} parent=5 // pred_check
        %p2841 = pneg %p2840
      $region98: #{tpu_custom_call.1} parent=5 // pred_check_branch
        %2843 = sbr.rel (%p2841) target = $region100
      $region99: #{tpu_custom_call.1} parent=5 // pred_region
        %s2844 = ssub.s32 %s22, 2
      $region100: #{tpu_custom_call.1} parent=5 // pred_fallthru
        _
    $region6: #{tpu_custom_call.1} parent=1 // loop_footer
      %s26 = sadd.s32 1, %s22
    $region7: #{tpu_custom_call.1} parent=1 // loop_footer_branch
      %21 = sbr.rel target = $region3
    $region8: #{tpu_custom_call.1} parent=1 // loop_exit
      _
    %2845 = vsyncpa [#allocation8], 1
    %s2846 = scalar_lea.sflag [#allocation8], 1
    %2847 = vsyncpa %s2846, 1
    %2848 = vsyncpa [#allocation11], 1
    %2849 = vsyncpa [#allocation14], 1
    %2850 = vsyncpa [#allocation17], 1
    %2851 = vsyncpa [#allocation9], 1
    %s2852 = scalar_lea.sflag [#allocation9], 1
    %2853 = vsyncpa %s2852, 1

</llo_original>
